<compile_context>
chip_gen: v6e
topology: v6e:2x2x1
jax: 0.10.0
libtpu: 0.0.40
codegen_flags: <defaults>
</compile_context>

<pallas_src>
import functools

import jax
import jax.numpy as jnp
from jax.experimental import pallas as pl
from jax.experimental.pallas import tpu as pltpu

EPS = 1e-5
LANES = 128
VMEM_LIMIT = 32 * 1024 * 1024  # re-derived for v7x (32 MiB scoped default)


def _round_up(v, m):
    return ((v + m - 1) // m) * m


def conv_relu_stats_kernel(x_ref, w_ref, b_ref, a_ref, psum_ref, psq_ref):
    """One image per grid step.
    x_ref:  (1, H+2, W+2, Cpi)  zero-padded input tile (bf16)
    w_ref:  (9*Cpi, Cpo)        taps folded into the contraction dim (bf16)
    b_ref:  (1, Cpo)            bias (f32)
    a_ref:  (1, H*W, Cpo)       post-ReLU activation (f32, lane-dense)
    psum_ref / psq_ref: (1, 1, Cpo)  per-image partial sum / sum-of-squares
    """
    hp, wp, c = x_ref.shape[1], x_ref.shape[2], x_ref.shape[3]
    h, w = hp - 2, wp - 2

    # Load the padded tile once; do the shifted-window extraction in f32
    # (cheap, well-supported VMEM relayouts), feed the MXU with bf16 operands.
    xt = x_ref[0].astype(jnp.float32)                              # (H+2, W+2, Cpi)
    pieces = []
    for kh in range(3):
        for kw in range(3):
            pieces.append(xt[kh:kh + h, kw:kw + w, :].reshape(h * w, c))
    # In-VMEM im2col: K folded to 9*Cpi, lane-aligned concat (offsets are
    # multiples of 128), single MXU matmul instead of 9 tiny ones.
    xcol = jnp.concatenate(pieces, axis=1).astype(jnp.bfloat16)    # (H*W, 9*Cpi)

    acc = jnp.dot(xcol, w_ref[...], preferred_element_type=jnp.float32)
    acc = acc + b_ref[...]
    acc = jnp.maximum(acc, 0.0)                                    # ReLU

    a_ref[0] = acc
    # One-pass BN statistics (sum / sum-of-squares), reduced globally outside.
    psum_ref[0] = jnp.sum(acc, axis=0, keepdims=True)
    psq_ref[0] = jnp.sum(acc * acc, axis=0, keepdims=True)


def bn_normalize_kernel(a_ref, s_ref, q_ref, g_ref, bt_ref, y_ref, *, inv_count):
    """y = gamma*(a-mean)*rsqrt(var+eps)+beta, folded into one multiply-add."""
    mean = s_ref[...] * inv_count                                  # (1, Cpo)
    var = jnp.maximum(q_ref[...] * inv_count - mean * mean, 0.0)
    scale = g_ref[...] * jax.lax.rsqrt(var + EPS)
    shift = bt_ref[...] - mean * scale
    y_ref[0] = (a_ref[0] * scale + shift).astype(y_ref.dtype)


def _conv_relu_bn_stage(xp, w, b, gamma, beta, *, out_dtype):
    """One (Conv2d + ReLU + BatchNorm2d) stage.
    xp: (N, H+2, W+2, Cpi) bf16, spatially zero-padded, channels zero-padded.
    Returns y: (N, H*W, Cpo), Cpo = round_up(Cout, 128); padded channels are 0."""
    n, hp, wp, cpi = xp.shape
    h, wd = hp - 2, wp - 2
    r = h * wd
    cout, cin = w.shape[0], w.shape[1]
    cpo = _round_up(cout, LANES)

    # Fold the 3x3 taps + (padded) input channels into one K = 9*Cpi operand.
    wk = jnp.transpose(w, (2, 3, 1, 0))                                   # (3,3,Cin,Cout)
    wk = jnp.pad(wk, ((0, 0), (0, 0), (0, cpi - cin), (0, cpo - cout)))
    wk = wk.reshape(9 * cpi, cpo).astype(jnp.bfloat16)
    bp = jnp.pad(b, (0, cpo - cout)).reshape(1, cpo).astype(jnp.float32)
    gp = jnp.pad(gamma, (0, cpo - cout)).reshape(1, cpo).astype(jnp.float32)
    ep = jnp.pad(beta, (0, cpo - cout)).reshape(1, cpo).astype(jnp.float32)

    # Pass 1: conv + bias + ReLU + per-image partial BN stats (pipelined grid).
    a, psum, psq = pl.pallas_call(
        conv_relu_stats_kernel,
        grid=(n,),
        in_specs=[
            pl.BlockSpec((1, hp, wp, cpi), lambda i: (i, 0, 0, 0)),
            pl.BlockSpec((9 * cpi, cpo), lambda i: (0, 0)),
            pl.BlockSpec((1, cpo), lambda i: (0, 0)),
        ],
        out_specs=[
            pl.BlockSpec((1, r, cpo), lambda i: (i, 0, 0)),
            pl.BlockSpec((1, 1, cpo), lambda i: (i, 0, 0)),
            pl.BlockSpec((1, 1, cpo), lambda i: (i, 0, 0)),
        ],
        out_shape=[
            jax.ShapeDtypeStruct((n, r, cpo), jnp.float32),
            jax.ShapeDtypeStruct((n, 1, cpo), jnp.float32),
            jax.ShapeDtypeStruct((n, 1, cpo), jnp.float32),
        ],
        compiler_params=pltpu.CompilerParams(
            dimension_semantics=("parallel",),
            vmem_limit_bytes=VMEM_LIMIT,
        ),
    )(xp, wk, bp)

    # Tiny global reduction of per-image partial stats (N x 128 floats).
    ssum = jnp.sum(psum, axis=0)      # (1, cpo)
    ssq = jnp.sum(psq, axis=0)        # (1, cpo)

    # Pass 2: normalize with folded per-channel scale/shift (parallel grid).
    y = pl.pallas_call(
        functools.partial(bn_normalize_kernel, inv_count=1.0 / float(n * r)),
        grid=(n,),
        in_specs=[
            pl.BlockSpec((1, r, cpo), lambda i: (i, 0, 0)),
            pl.BlockSpec((1, cpo), lambda i: (0, 0)),
            pl.BlockSpec((1, cpo), lambda i: (0, 0)),
            pl.BlockSpec((1, cpo), lambda i: (0, 0)),
            pl.BlockSpec((1, cpo), lambda i: (0, 0)),
        ],
        out_specs=pl.BlockSpec((1, r, cpo), lambda i: (i, 0, 0)),
        out_shape=jax.ShapeDtypeStruct((n, r, cpo), out_dtype),
        compiler_params=pltpu.CompilerParams(
            dimension_semantics=("parallel",),
            vmem_limit_bytes=VMEM_LIMIT,
        ),
    )(a, ssum, ssq, gp, ep)
    return y


@jax.jit
def conv_block_2d(x, params):
    """ConvBlock2D forward (order='rb', kernel_size=3, num_conv=2). x: (N,Cin,H,W)."""
    n, cin, h, wd = x.shape
    cpi = _round_up(cin, LANES)

    # NCHW -> NHWC once; zero-pad spatially (conv padding) and channel-pad to 128.
    cur = jnp.transpose(x, (0, 2, 3, 1))
    cur = jnp.pad(cur, ((0, 0), (1, 1), (1, 1), (0, cpi - cin))).astype(jnp.bfloat16)

    num_stages = len(params)
    out = None
    for i, (w, b, gamma, beta) in enumerate(params):
        last = i == num_stages - 1
        y = _conv_relu_bn_stage(
            cur, w, b, gamma, beta,
            out_dtype=jnp.float32 if last else jnp.bfloat16)
        cout = w.shape[0]
        cpo = _round_up(cout, LANES)
        y = y.reshape(n, h, wd, cpo)
        if last:
            # Strip channel padding, back to NCHW only at the block boundary.
            out = jnp.transpose(y[..., :cout], (0, 3, 1, 2))
        else:
            # Stay NHWC / channel-padded (padded channels are exactly 0);
            # only re-apply the spatial zero padding for the next conv.
            cur = jnp.pad(y, ((0, 0), (1, 1), (1, 1), (0, 0)))
    return out


# ---------------- pure-JAX reference (for validation) ----------------
def _ref_stage(x, w, b, gamma, beta):
    y = jax.lax.conv_general_dilated(
        x, w, window_strides=(1, 1), padding=((1, 1), (1, 1)),
        dimension_numbers=("NCHW", "OIHW", "NCHW"),
    ) + b[None, :, None, None]
    y = jnp.maximum(y, 0.0)
    mean = jnp.mean(y, axis=(0, 2, 3), keepdims=True)
    var = jnp.mean((y - mean) ** 2, axis=(0, 2, 3), keepdims=True)
    y = (y - mean) * jax.lax.rsqrt(var + EPS)
    return y * gamma[None, :, None, None] + beta[None, :, None, None]


def _ref_block(x, params):
    for (w, b, gamma, beta) in params:
        x = _ref_stage(x, w, b, gamma, beta)
    return x


if __name__ == "__main__":
    key = jax.random.PRNGKey(0)
    N, CH_IN, CH_OUT, H, W = 2, 4, 8, 16, 16

    keys = jax.random.split(key, 9)
    x = jax.random.normal(keys[0], (N, CH_IN, H, W), jnp.float32)

    # Synthetic parameters (shapes follow nn.Conv2d / nn.BatchNorm2d).
    w1 = 0.1 * jax.random.normal(keys[1], (CH_OUT, CH_IN, 3, 3), jnp.float32)
    b1 = 0.1 * jax.random.normal(keys[2], (CH_OUT,), jnp.float32)
    g1 = 1.0 + 0.1 * jax.random.normal(keys[3], (CH_OUT,), jnp.float32)
    e1 = 0.1 * jax.random.normal(keys[4], (CH_OUT,), jnp.float32)

    w2 = 0.1 * jax.random.normal(keys[5], (CH_OUT, CH_OUT, 3, 3), jnp.float32)
    b2 = 0.1 * jax.random.normal(keys[6], (CH_OUT,), jnp.float32)
    g2 = 1.0 + 0.1 * jax.random.normal(keys[7], (CH_OUT,), jnp.float32)
    e2 = 0.1 * jax.random.normal(keys[8], (CH_OUT,), jnp.float32)

    params = ((w1, b1, g1, e1), (w2, b2, g2, e2))

    out = jax.block_until_ready(conv_block_2d(x, params))
    ref = _ref_block(x, params)

    assert out.shape == (N, CH_OUT, H, W)
    err = float(jnp.max(jnp.abs(out - ref)))
    # bf16 matmul operands (f32 accumulation) vs. the f32 reference: a few
    # 1e-3..1e-2 of absolute error on unit-scale BN outputs; 5e-2 is ample.
    assert jnp.allclose(out, ref, rtol=5e-2, atol=5e-2), f"max abs diff {err}"
    print("KERNEL_OK")
</pallas_src>

<mosaic_0001>
module attributes {stable_mosaic.version = 11 : i64} {
  func.func @conv_relu_stats_kernel(%arg0: i32, %arg1: memref<1x18x18x128xbf16, #tpu.memory_space<vmem>>, %arg2: memref<1152x128xbf16, #tpu.memory_space<vmem>>, %arg3: memref<1x128xf32, #tpu.memory_space<vmem>>, %arg4: memref<1x256x128xf32, #tpu.memory_space<vmem>>, %arg5: memref<1x1x128xf32, #tpu.memory_space<vmem>>, %arg6: memref<1x1x128xf32, #tpu.memory_space<vmem>>) attributes {dimension_semantics = [#tpu.dimension_semantics<parallel>], iteration_bounds = array<i64: 2>, scalar_prefetch = 0 : i64, scratch_operands = 0 : i64, tpu.core_type = #tpu.core_type<tc>, window_params = [{transform_indices = @transform_0, window_bounds = array<i64: 1, 18, 18, 128>}, {pipeline_mode = #tpu.pipeline_mode<synchronous>, transform_indices = @transform_1, window_bounds = array<i64: 1152, 128>}, {pipeline_mode = #tpu.pipeline_mode<synchronous>, transform_indices = @transform_2, window_bounds = array<i64: 1, 128>}, {transform_indices = @transform_3, window_bounds = array<i64: 1, 256, 128>}, {transform_indices = @transform_4, window_bounds = array<i64: 1, 1, 128>}, {transform_indices = @transform_5, window_bounds = array<i64: 1, 1, 128>}]} {
    %c0 = arith.constant 0 : index
    %c0_0 = arith.constant 0 : index
    %c0_1 = arith.constant 0 : index
    %c0_2 = arith.constant 0 : index
    %0 = vector.load %arg1[%c0, %c0_0, %c0_1, %c0_2] : memref<1x18x18x128xbf16, #tpu.memory_space<vmem>>, vector<1x18x18x128xbf16>
    %1 = vector.shape_cast %0 : vector<1x18x18x128xbf16> to vector<18x18x128xbf16>
    %2 = arith.extf %1 : vector<18x18x128xbf16> to vector<18x18x128xf32>
    %3 = vector.extract_strided_slice %2 {offsets = [0, 0, 0], sizes = [16, 16, 128], strides = [1, 1, 1]} : vector<18x18x128xf32> to vector<16x16x128xf32>
    %4 = vector.shape_cast %3 : vector<16x16x128xf32> to vector<256x128xf32>
    %5 = vector.extract_strided_slice %2 {offsets = [0, 1, 0], sizes = [16, 16, 128], strides = [1, 1, 1]} : vector<18x18x128xf32> to vector<16x16x128xf32>
    %6 = vector.shape_cast %5 : vector<16x16x128xf32> to vector<256x128xf32>
    %7 = vector.extract_strided_slice %2 {offsets = [0, 2, 0], sizes = [16, 16, 128], strides = [1, 1, 1]} : vector<18x18x128xf32> to vector<16x16x128xf32>
    %8 = vector.shape_cast %7 : vector<16x16x128xf32> to vector<256x128xf32>
    %9 = vector.extract_strided_slice %2 {offsets = [1, 0, 0], sizes = [16, 16, 128], strides = [1, 1, 1]} : vector<18x18x128xf32> to vector<16x16x128xf32>
    %10 = vector.shape_cast %9 : vector<16x16x128xf32> to vector<256x128xf32>
    %11 = vector.extract_strided_slice %2 {offsets = [1, 1, 0], sizes = [16, 16, 128], strides = [1, 1, 1]} : vector<18x18x128xf32> to vector<16x16x128xf32>
    %12 = vector.shape_cast %11 : vector<16x16x128xf32> to vector<256x128xf32>
    %13 = vector.extract_strided_slice %2 {offsets = [1, 2, 0], sizes = [16, 16, 128], strides = [1, 1, 1]} : vector<18x18x128xf32> to vector<16x16x128xf32>
    %14 = vector.shape_cast %13 : vector<16x16x128xf32> to vector<256x128xf32>
    %15 = vector.extract_strided_slice %2 {offsets = [2, 0, 0], sizes = [16, 16, 128], strides = [1, 1, 1]} : vector<18x18x128xf32> to vector<16x16x128xf32>
    %16 = vector.shape_cast %15 : vector<16x16x128xf32> to vector<256x128xf32>
    %17 = vector.extract_strided_slice %2 {offsets = [2, 1, 0], sizes = [16, 16, 128], strides = [1, 1, 1]} : vector<18x18x128xf32> to vector<16x16x128xf32>
    %18 = vector.shape_cast %17 : vector<16x16x128xf32> to vector<256x128xf32>
    %19 = vector.extract_strided_slice %2 {offsets = [2, 2, 0], sizes = [16, 16, 128], strides = [1, 1, 1]} : vector<18x18x128xf32> to vector<16x16x128xf32>
    %20 = vector.shape_cast %19 : vector<16x16x128xf32> to vector<256x128xf32>
    %21 = tpu.concatenate %4, %6, %8, %10, %12, %14, %16, %18, %20 in 1 : vector<256x128xf32>, vector<256x128xf32>, vector<256x128xf32>, vector<256x128xf32>, vector<256x128xf32>, vector<256x128xf32>, vector<256x128xf32>, vector<256x128xf32>, vector<256x128xf32> -> vector<256x1152xf32>
    %22 = arith.truncf %21 : vector<256x1152xf32> to vector<256x1152xbf16>
    %c0_3 = arith.constant 0 : index
    %c0_4 = arith.constant 0 : index
    %23 = vector.load %arg2[%c0_3, %c0_4] : memref<1152x128xbf16, #tpu.memory_space<vmem>>, vector<1152x128xbf16>
    %cst = arith.constant dense<0.000000e+00> : vector<256x128xf32>
    %24 = tpu.matmul %22, %23, %cst {dimension_numbers = #tpu.dot_dimension_numbers<[1], [0], [0], [1], [0, 0, 1, 1], [], []>} : vector<256x1152xbf16>, vector<1152x128xbf16>, vector<256x128xf32> -> vector<256x128xf32>
    %c0_5 = arith.constant 0 : index
    %c0_6 = arith.constant 0 : index
    %25 = vector.load %arg3[%c0_5, %c0_6] : memref<1x128xf32, #tpu.memory_space<vmem>>, vector<1x128xf32>
    %26 = vector.broadcast %25 : vector<1x128xf32> to vector<256x128xf32>
    %27 = arith.addf %24, %26 : vector<256x128xf32>
    %cst_7 = arith.constant 0.000000e+00 : f32
    %28 = vector.broadcast %cst_7 : f32 to vector<256x128xf32>
    %29 = arith.maximumf %27, %28 : vector<256x128xf32>
    %c0_8 = arith.constant 0 : index
    %c0_9 = arith.constant 0 : index
    %c0_10 = arith.constant 0 : index
    %30 = vector.load %arg4[%c0_8, %c0_9, %c0_10] : memref<1x256x128xf32, #tpu.memory_space<vmem>>, vector<1x256x128xf32>
    %31 = vector.shape_cast %30 : vector<1x256x128xf32> to vector<256x128xf32>
    %32 = vector.shape_cast %29 : vector<256x128xf32> to vector<1x256x128xf32>
    tpu.vector_store %arg4[%c0_8, %c0_9, %c0_10], %32 {strides = array<i32>} : memref<1x256x128xf32, #tpu.memory_space<vmem>>, vector<1x256x128xf32>,
    %cst_11 = arith.constant dense<0.000000e+00> : vector<128xf32>
    %33 = vector.multi_reduction <add>, %29, %cst_11 [0] : vector<256x128xf32> to vector<128xf32>
    %34 = vector.shape_cast %33 : vector<128xf32> to vector<1x128xf32>
    %c0_12 = arith.constant 0 : index
    %c0_13 = arith.constant 0 : index
    %c0_14 = arith.constant 0 : index
    %35 = vector.load %arg5[%c0_12, %c0_13, %c0_14] : memref<1x1x128xf32, #tpu.memory_space<vmem>>, vector<1x1x128xf32>
    %36 = vector.shape_cast %35 : vector<1x1x128xf32> to vector<1x128xf32>
    %37 = vector.shape_cast %34 : vector<1x128xf32> to vector<1x1x128xf32>
    tpu.vector_store %arg5[%c0_12, %c0_13, %c0_14], %37 {strides = array<i32>} : memref<1x1x128xf32, #tpu.memory_space<vmem>>, vector<1x1x128xf32>,
    %38 = arith.mulf %29, %29 : vector<256x128xf32>
    %cst_15 = arith.constant dense<0.000000e+00> : vector<128xf32>
    %39 = vector.multi_reduction <add>, %38, %cst_15 [0] : vector<256x128xf32> to vector<128xf32>
    %40 = vector.shape_cast %39 : vector<128xf32> to vector<1x128xf32>
    %c0_16 = arith.constant 0 : index
    %c0_17 = arith.constant 0 : index
    %c0_18 = arith.constant 0 : index
    %41 = vector.load %arg6[%c0_16, %c0_17, %c0_18] : memref<1x1x128xf32, #tpu.memory_space<vmem>>, vector<1x1x128xf32>
    %42 = vector.shape_cast %41 : vector<1x1x128xf32> to vector<1x128xf32>
    %43 = vector.shape_cast %40 : vector<1x128xf32> to vector<1x1x128xf32>
    tpu.vector_store %arg6[%c0_16, %c0_17, %c0_18], %43 {strides = array<i32>} : memref<1x1x128xf32, #tpu.memory_space<vmem>>, vector<1x1x128xf32>,
    return
  }
  func.func @transform_0(%arg0: i32) -> (i32, i32, i32, i32) {
    %c0_i32 = arith.constant 0 : i32
    %c0_i32_0 = arith.constant 0 : i32
    %c0_i32_1 = arith.constant 0 : i32
    %c0_i32_2 = arith.constant 0 : i32
    return %arg0, %c0_i32, %c0_i32_0, %c0_i32_1 : i32, i32, i32, i32
  }
  func.func @transform_1(%arg0: i32) -> (i32, i32) {
    %c0_i32 = arith.constant 0 : i32
    %c0_i32_0 = arith.constant 0 : i32
    %c0_i32_1 = arith.constant 0 : i32
    return %c0_i32, %c0_i32_0 : i32, i32
  }
  func.func @transform_2(%arg0: i32) -> (i32, i32) {
    %c0_i32 = arith.constant 0 : i32
    %c0_i32_0 = arith.constant 0 : i32
    %c0_i32_1 = arith.constant 0 : i32
    return %c0_i32, %c0_i32_0 : i32, i32
  }
  func.func @transform_3(%arg0: i32) -> (i32, i32, i32) {
    %c0_i32 = arith.constant 0 : i32
    %c0_i32_0 = arith.constant 0 : i32
    %c0_i32_1 = arith.constant 0 : i32
    return %arg0, %c0_i32, %c0_i32_0 : i32, i32, i32
  }
  func.func @transform_4(%arg0: i32) -> (i32, i32, i32) {
    %c0_i32 = arith.constant 0 : i32
    %c0_i32_0 = arith.constant 0 : i32
    %c0_i32_1 = arith.constant 0 : i32
    return %arg0, %c0_i32, %c0_i32_0 : i32, i32, i32
  }
  func.func @transform_5(%arg0: i32) -> (i32, i32, i32) {
    %c0_i32 = arith.constant 0 : i32
    %c0_i32_0 = arith.constant 0 : i32
    %c0_i32_1 = arith.constant 0 : i32
    return %arg0, %c0_i32, %c0_i32_0 : i32, i32, i32
  }
}

module attributes {stable_mosaic.version = 11 : i64} {
  func.func @bn_normalize_kernel(%arg0: i32, %arg1: memref<1x256x128xf32, #tpu.memory_space<vmem>>, %arg2: memref<1x128xf32, #tpu.memory_space<vmem>>, %arg3: memref<1x128xf32, #tpu.memory_space<vmem>>, %arg4: memref<1x128xf32, #tpu.memory_space<vmem>>, %arg5: memref<1x128xf32, #tpu.memory_space<vmem>>, %arg6: memref<1x256x128xbf16, #tpu.memory_space<vmem>>) attributes {dimension_semantics = [#tpu.dimension_semantics<parallel>], iteration_bounds = array<i64: 2>, scalar_prefetch = 0 : i64, scratch_operands = 0 : i64, tpu.core_type = #tpu.core_type<tc>, window_params = [{transform_indices = @transform_0, window_bounds = array<i64: 1, 256, 128>}, {pipeline_mode = #tpu.pipeline_mode<synchronous>, transform_indices = @transform_1, window_bounds = array<i64: 1, 128>}, {pipeline_mode = #tpu.pipeline_mode<synchronous>, transform_indices = @transform_2, window_bounds = array<i64: 1, 128>}, {pipeline_mode = #tpu.pipeline_mode<synchronous>, transform_indices = @transform_3, window_bounds = array<i64: 1, 128>}, {pipeline_mode = #tpu.pipeline_mode<synchronous>, transform_indices = @transform_4, window_bounds = array<i64: 1, 128>}, {transform_indices = @transform_5, window_bounds = array<i64: 1, 256, 128>}]} {
    %c0 = arith.constant 0 : index
    %c0_0 = arith.constant 0 : index
    %0 = vector.load %arg2[%c0, %c0_0] : memref<1x128xf32, #tpu.memory_space<vmem>>, vector<1x128xf32>
    %cst = arith.constant 0.001953125 : f32
    %1 = vector.broadcast %cst : f32 to vector<1x128xf32>
    %2 = arith.mulf %0, %1 : vector<1x128xf32>
    %c0_1 = arith.constant 0 : index
    %c0_2 = arith.constant 0 : index
    %3 = vector.load %arg3[%c0_1, %c0_2] : memref<1x128xf32, #tpu.memory_space<vmem>>, vector<1x128xf32>
    %cst_3 = arith.constant 0.001953125 : f32
    %4 = vector.broadcast %cst_3 : f32 to vector<1x128xf32>
    %5 = arith.mulf %3, %4 : vector<1x128xf32>
    %6 = arith.mulf %2, %2 : vector<1x128xf32>
    %7 = arith.subf %5, %6 : vector<1x128xf32>
    %cst_4 = arith.constant 0.000000e+00 : f32
    %8 = vector.broadcast %cst_4 : f32 to vector<1x128xf32>
    %9 = arith.maximumf %7, %8 : vector<1x128xf32>
    %c0_5 = arith.constant 0 : index
    %c0_6 = arith.constant 0 : index
    %10 = vector.load %arg4[%c0_5, %c0_6] : memref<1x128xf32, #tpu.memory_space<vmem>>, vector<1x128xf32>
    %cst_7 = arith.constant 9.99999974E-6 : f32
    %11 = vector.broadcast %cst_7 : f32 to vector<1x128xf32>
    %12 = arith.addf %9, %11 : vector<1x128xf32>
    %13 = math.rsqrt %12 : vector<1x128xf32>
    %14 = arith.mulf %10, %13 : vector<1x128xf32>
    %c0_8 = arith.constant 0 : index
    %c0_9 = arith.constant 0 : index
    %15 = vector.load %arg5[%c0_8, %c0_9] : memref<1x128xf32, #tpu.memory_space<vmem>>, vector<1x128xf32>
    %16 = arith.mulf %2, %14 : vector<1x128xf32>
    %17 = arith.subf %15, %16 : vector<1x128xf32>
    %c0_10 = arith.constant 0 : index
    %c0_11 = arith.constant 0 : index
    %c0_12 = arith.constant 0 : index
    %18 = vector.load %arg1[%c0_10, %c0_11, %c0_12] : memref<1x256x128xf32, #tpu.memory_space<vmem>>, vector<1x256x128xf32>
    %19 = vector.shape_cast %18 : vector<1x256x128xf32> to vector<256x128xf32>
    %20 = vector.broadcast %14 : vector<1x128xf32> to vector<256x128xf32>
    %21 = arith.mulf %19, %20 : vector<256x128xf32>
    %22 = vector.broadcast %17 : vector<1x128xf32> to vector<256x128xf32>
    %23 = arith.addf %21, %22 : vector<256x128xf32>
    %24 = arith.truncf %23 : vector<256x128xf32> to vector<256x128xbf16>
    %c0_13 = arith.constant 0 : index
    %c0_14 = arith.constant 0 : index
    %c0_15 = arith.constant 0 : index
    %25 = vector.load %arg6[%c0_13, %c0_14, %c0_15] : memref<1x256x128xbf16, #tpu.memory_space<vmem>>, vector<1x256x128xbf16>
    %26 = vector.shape_cast %25 : vector<1x256x128xbf16> to vector<256x128xbf16>
    %27 = vector.shape_cast %24 : vector<256x128xbf16> to vector<1x256x128xbf16>
    tpu.vector_store %arg6[%c0_13, %c0_14, %c0_15], %27 {strides = array<i32>} : memref<1x256x128xbf16, #tpu.memory_space<vmem>>, vector<1x256x128xbf16>,
    return
  }
  func.func @transform_0(%arg0: i32) -> (i32, i32, i32) {
    %c0_i32 = arith.constant 0 : i32
    %c0_i32_0 = arith.constant 0 : i32
    %c0_i32_1 = arith.constant 0 : i32
    return %arg0, %c0_i32, %c0_i32_0 : i32, i32, i32
  }
  func.func @transform_1(%arg0: i32) -> (i32, i32) {
    %c0_i32 = arith.constant 0 : i32
    %c0_i32_0 = arith.constant 0 : i32
    %c0_i32_1 = arith.constant 0 : i32
    return %c0_i32, %c0_i32_0 : i32, i32
  }
  func.func @transform_2(%arg0: i32) -> (i32, i32) {
    %c0_i32 = arith.constant 0 : i32
    %c0_i32_0 = arith.constant 0 : i32
    %c0_i32_1 = arith.constant 0 : i32
    return %c0_i32, %c0_i32_0 : i32, i32
  }
  func.func @transform_3(%arg0: i32) -> (i32, i32) {
    %c0_i32 = arith.constant 0 : i32
    %c0_i32_0 = arith.constant 0 : i32
    %c0_i32_1 = arith.constant 0 : i32
    return %c0_i32, %c0_i32_0 : i32, i32
  }
  func.func @transform_4(%arg0: i32) -> (i32, i32) {
    %c0_i32 = arith.constant 0 : i32
    %c0_i32_0 = arith.constant 0 : i32
    %c0_i32_1 = arith.constant 0 : i32
    return %c0_i32, %c0_i32_0 : i32, i32
  }
  func.func @transform_5(%arg0: i32) -> (i32, i32, i32) {
    %c0_i32 = arith.constant 0 : i32
    %c0_i32_0 = arith.constant 0 : i32
    %c0_i32_1 = arith.constant 0 : i32
    return %arg0, %c0_i32, %c0_i32_0 : i32, i32, i32
  }
}

module attributes {stable_mosaic.version = 11 : i64} {
  func.func @bn_normalize_kernel(%arg0: i32, %arg1: memref<1x256x128xf32, #tpu.memory_space<vmem>>, %arg2: memref<1x128xf32, #tpu.memory_space<vmem>>, %arg3: memref<1x128xf32, #tpu.memory_space<vmem>>, %arg4: memref<1x128xf32, #tpu.memory_space<vmem>>, %arg5: memref<1x128xf32, #tpu.memory_space<vmem>>, %arg6: memref<1x256x128xf32, #tpu.memory_space<vmem>>) attributes {dimension_semantics = [#tpu.dimension_semantics<parallel>], iteration_bounds = array<i64: 2>, scalar_prefetch = 0 : i64, scratch_operands = 0 : i64, tpu.core_type = #tpu.core_type<tc>, window_params = [{transform_indices = @transform_0, window_bounds = array<i64: 1, 256, 128>}, {pipeline_mode = #tpu.pipeline_mode<synchronous>, transform_indices = @transform_1, window_bounds = array<i64: 1, 128>}, {pipeline_mode = #tpu.pipeline_mode<synchronous>, transform_indices = @transform_2, window_bounds = array<i64: 1, 128>}, {pipeline_mode = #tpu.pipeline_mode<synchronous>, transform_indices = @transform_3, window_bounds = array<i64: 1, 128>}, {pipeline_mode = #tpu.pipeline_mode<synchronous>, transform_indices = @transform_4, window_bounds = array<i64: 1, 128>}, {transform_indices = @transform_5, window_bounds = array<i64: 1, 256, 128>}]} {
    %c0 = arith.constant 0 : index
    %c0_0 = arith.constant 0 : index
    %0 = vector.load %arg2[%c0, %c0_0] : memref<1x128xf32, #tpu.memory_space<vmem>>, vector<1x128xf32>
    %cst = arith.constant 0.001953125 : f32
    %1 = vector.broadcast %cst : f32 to vector<1x128xf32>
    %2 = arith.mulf %0, %1 : vector<1x128xf32>
    %c0_1 = arith.constant 0 : index
    %c0_2 = arith.constant 0 : index
    %3 = vector.load %arg3[%c0_1, %c0_2] : memref<1x128xf32, #tpu.memory_space<vmem>>, vector<1x128xf32>
    %cst_3 = arith.constant 0.001953125 : f32
    %4 = vector.broadcast %cst_3 : f32 to vector<1x128xf32>
    %5 = arith.mulf %3, %4 : vector<1x128xf32>
    %6 = arith.mulf %2, %2 : vector<1x128xf32>
    %7 = arith.subf %5, %6 : vector<1x128xf32>
    %cst_4 = arith.constant 0.000000e+00 : f32
    %8 = vector.broadcast %cst_4 : f32 to vector<1x128xf32>
    %9 = arith.maximumf %7, %8 : vector<1x128xf32>
    %c0_5 = arith.constant 0 : index
    %c0_6 = arith.constant 0 : index
    %10 = vector.load %arg4[%c0_5, %c0_6] : memref<1x128xf32, #tpu.memory_space<vmem>>, vector<1x128xf32>
    %cst_7 = arith.constant 9.99999974E-6 : f32
    %11 = vector.broadcast %cst_7 : f32 to vector<1x128xf32>
    %12 = arith.addf %9, %11 : vector<1x128xf32>
    %13 = math.rsqrt %12 : vector<1x128xf32>
    %14 = arith.mulf %10, %13 : vector<1x128xf32>
    %c0_8 = arith.constant 0 : index
    %c0_9 = arith.constant 0 : index
    %15 = vector.load %arg5[%c0_8, %c0_9] : memref<1x128xf32, #tpu.memory_space<vmem>>, vector<1x128xf32>
    %16 = arith.mulf %2, %14 : vector<1x128xf32>
    %17 = arith.subf %15, %16 : vector<1x128xf32>
    %c0_10 = arith.constant 0 : index
    %c0_11 = arith.constant 0 : index
    %c0_12 = arith.constant 0 : index
    %18 = vector.load %arg1[%c0_10, %c0_11, %c0_12] : memref<1x256x128xf32, #tpu.memory_space<vmem>>, vector<1x256x128xf32>
    %19 = vector.shape_cast %18 : vector<1x256x128xf32> to vector<256x128xf32>
    %20 = vector.broadcast %14 : vector<1x128xf32> to vector<256x128xf32>
    %21 = arith.mulf %19, %20 : vector<256x128xf32>
    %22 = vector.broadcast %17 : vector<1x128xf32> to vector<256x128xf32>
    %23 = arith.addf %21, %22 : vector<256x128xf32>
    %c0_13 = arith.constant 0 : index
    %c0_14 = arith.constant 0 : index
    %c0_15 = arith.constant 0 : index
    %24 = vector.load %arg6[%c0_13, %c0_14, %c0_15] : memref<1x256x128xf32, #tpu.memory_space<vmem>>, vector<1x256x128xf32>
    %25 = vector.shape_cast %24 : vector<1x256x128xf32> to vector<256x128xf32>
    %26 = vector.shape_cast %23 : vector<256x128xf32> to vector<1x256x128xf32>
    tpu.vector_store %arg6[%c0_13, %c0_14, %c0_15], %26 {strides = array<i32>} : memref<1x256x128xf32, #tpu.memory_space<vmem>>, vector<1x256x128xf32>,
    return
  }
  func.func @transform_0(%arg0: i32) -> (i32, i32, i32) {
    %c0_i32 = arith.constant 0 : i32
    %c0_i32_0 = arith.constant 0 : i32
    %c0_i32_1 = arith.constant 0 : i32
    return %arg0, %c0_i32, %c0_i32_0 : i32, i32, i32
  }
  func.func @transform_1(%arg0: i32) -> (i32, i32) {
    %c0_i32 = arith.constant 0 : i32
    %c0_i32_0 = arith.constant 0 : i32
    %c0_i32_1 = arith.constant 0 : i32
    return %c0_i32, %c0_i32_0 : i32, i32
  }
  func.func @transform_2(%arg0: i32) -> (i32, i32) {
    %c0_i32 = arith.constant 0 : i32
    %c0_i32_0 = arith.constant 0 : i32
    %c0_i32_1 = arith.constant 0 : i32
    return %c0_i32, %c0_i32_0 : i32, i32
  }
  func.func @transform_3(%arg0: i32) -> (i32, i32) {
    %c0_i32 = arith.constant 0 : i32
    %c0_i32_0 = arith.constant 0 : i32
    %c0_i32_1 = arith.constant 0 : i32
    return %c0_i32, %c0_i32_0 : i32, i32
  }
  func.func @transform_4(%arg0: i32) -> (i32, i32) {
    %c0_i32 = arith.constant 0 : i32
    %c0_i32_0 = arith.constant 0 : i32
    %c0_i32_1 = arith.constant 0 : i32
    return %c0_i32, %c0_i32_0 : i32, i32
  }
  func.func @transform_5(%arg0: i32) -> (i32, i32, i32) {
    %c0_i32 = arith.constant 0 : i32
    %c0_i32_0 = arith.constant 0 : i32
    %c0_i32_1 = arith.constant 0 : i32
    return %arg0, %c0_i32, %c0_i32_0 : i32, i32, i32
  }
}

</mosaic_0001>

<llo_original>
// kernel: conv_block_2d.5
$region0: #{conv_block_2d.5}
  #allocation0 [shape = 'u32[]', space=smem, size = 0x4, offset = 0x4, fixed_abs, tag = 'smem constant byte address 0x4 - core index']
  #allocation1 [shape = 'u32[144,128]{1,0:T(1,128)}', space=vmem, size = 0x12000, scoped, tag = 'internal scratch']
  %s0 = inlined_call_operand.vmem [shape: f32[2,256,128], index: 0, kind: input, shape index: {}]
  %s1 = inlined_call_operand.vmem [shape: f32[1,128], index: 1, kind: input, shape index: {}]
  %s2 = inlined_call_operand.vmem [shape: f32[1,128], index: 2, kind: input, shape index: {}]
  %s3 = inlined_call_operand.vmem [shape: f32[1,128], index: 3, kind: input, shape index: {}]
  %s4 = inlined_call_operand.vmem [shape: f32[1,128], index: 4, kind: input, shape index: {}]
  %s5 = inlined_call_operand.vmem [shape: bf16[2,256,128], index: 5, kind: output, shape index: {}]
  %s6 = sld [smem:[#allocation0]]
  $region53: #{conv_block_2d.5} parent=0
    _
  %s8 = ssub.s32 1, %s6
  %s9 = scalar_select 0, %s8, %s6
  loop: start=0, step=1, limit=4
  $region2: #{conv_block_2d.5} parent=0 // loop_pre_header
    _
  $region3: #{conv_block_2d.5} parent=0 // loop_header
    %s11 = sphi 0, %s15
    %p12 = scmp.ge.s32.totalorder %s11, 4
    %s21 = sphi 0, %s23
    %s24 = sphi 0, %s21
    %s25 = sphi 0, %s24
    %s41 = sphi 0, %s25
    %s45 = sphi 0, %s45
    %s47 = sphi 0, %s45
    %s48 = sphi 0, %s47
    %s62 = sphi 0, %s48
    %s66 = sphi 0, %s66
    %s68 = sphi 0, %s66
    %s69 = sphi 0, %s68
    %s83 = sphi 0, %s69
    %s87 = sphi 0, %s87
    %s89 = sphi 0, %s87
    %s90 = sphi 0, %s89
    %s104 = sphi 0, %s90
    %s108 = sphi 0, %s108
    %s110 = sphi 0, %s108
    %s111 = sphi 0, %s110
    %s125 = sphi 0, %s111
    %s131 = sphi 0, %s133
    %s134 = sphi 0, %s131
    %s135 = sphi 0, %s134
    %s151 = sphi 0, %s135
  $region4: #{conv_block_2d.5} parent=0 // loop_header_branch
    %14 = sbr.rel (%p12) target = $region8
  $region5: #{conv_block_2d.5} parent=0 // loop_body
    %s16 = ssub.s32 %s11, 1
    %s17 = ssub.s32 %s11, 2
    %s18 = sadd.s32 %s11, 1
    %s19 = ssub.s32 %s11, %s18
    %p20 = scmp.eq.s32.totalorder %s19, 0
    %s22 = sadd.s32 %s21, 1
    %s23 = scalar_select %p20, %s21, %s22
    %p26 = pneg %p20
    %p27 = scmp.eq.s32.totalorder %s11, 1
    %p28 = por %p26, %p27
    %p29 = scmp.ne.s32.totalorder %s21, %s24
    %p30 = scmp.eq.s32.totalorder %s11, 0
    %p31 = por %p29, %p30
    %p32 = scmp.ne.s32.totalorder %s21, %s24
    %p33 = scmp.eq.s32.totalorder %s16, 1
    %p34 = por %p32, %p33
    %p35 = scmp.ne.s32.totalorder %s24, %s25
    %p36 = scmp.eq.s32.totalorder %s16, 0
    %p37 = por %p35, %p36
    %p38 = scmp.ne.s32.totalorder %s24, %s25
    %p39 = scmp.eq.s32.totalorder %s17, 1
    %p40 = por %p38, %p39
    %p42 = scmp.ne.s32.totalorder %s25, %s41
    %p43 = scmp.eq.s32.totalorder %s17, 0
    %p44 = por %p42, %p43
    %s46 = sadd.s32 %s45, 1
    %p49 = scmp.eq.s32.totalorder %s11, 1
    %p50 = scmp.ne.s32.totalorder %s45, %s47
    %p51 = scmp.eq.s32.totalorder %s11, 0
    %p52 = por %p50, %p51
    %p53 = scmp.ne.s32.totalorder %s45, %s47
    %p54 = scmp.eq.s32.totalorder %s16, 1
    %p55 = por %p53, %p54
    %p56 = scmp.ne.s32.totalorder %s47, %s48
    %p57 = scmp.eq.s32.totalorder %s16, 0
    %p58 = por %p56, %p57
    %p59 = scmp.ne.s32.totalorder %s47, %s48
    %p60 = scmp.eq.s32.totalorder %s17, 1
    %p61 = por %p59, %p60
    %p63 = scmp.ne.s32.totalorder %s48, %s62
    %p64 = scmp.eq.s32.totalorder %s17, 0
    %p65 = por %p63, %p64
    %s67 = sadd.s32 %s66, 1
    %p70 = scmp.eq.s32.totalorder %s11, 1
    %p71 = scmp.ne.s32.totalorder %s66, %s68
    %p72 = scmp.eq.s32.totalorder %s11, 0
    %p73 = por %p71, %p72
    %p74 = scmp.ne.s32.totalorder %s66, %s68
    %p75 = scmp.eq.s32.totalorder %s16, 1
    %p76 = por %p74, %p75
    %p77 = scmp.ne.s32.totalorder %s68, %s69
    %p78 = scmp.eq.s32.totalorder %s16, 0
    %p79 = por %p77, %p78
    %p80 = scmp.ne.s32.totalorder %s68, %s69
    %p81 = scmp.eq.s32.totalorder %s17, 1
    %p82 = por %p80, %p81
    %p84 = scmp.ne.s32.totalorder %s69, %s83
    %p85 = scmp.eq.s32.totalorder %s17, 0
    %p86 = por %p84, %p85
    %s88 = sadd.s32 %s87, 1
    %p91 = scmp.eq.s32.totalorder %s11, 1
    %p92 = scmp.ne.s32.totalorder %s87, %s89
    %p93 = scmp.eq.s32.totalorder %s11, 0
    %p94 = por %p92, %p93
    %p95 = scmp.ne.s32.totalorder %s87, %s89
    %p96 = scmp.eq.s32.totalorder %s16, 1
    %p97 = por %p95, %p96
    %p98 = scmp.ne.s32.totalorder %s89, %s90
    %p99 = scmp.eq.s32.totalorder %s16, 0
    %p100 = por %p98, %p99
    %p101 = scmp.ne.s32.totalorder %s89, %s90
    %p102 = scmp.eq.s32.totalorder %s17, 1
    %p103 = por %p101, %p102
    %p105 = scmp.ne.s32.totalorder %s90, %s104
    %p106 = scmp.eq.s32.totalorder %s17, 0
    %p107 = por %p105, %p106
    %s109 = sadd.s32 %s108, 1
    %p112 = scmp.eq.s32.totalorder %s11, 1
    %p113 = scmp.ne.s32.totalorder %s108, %s110
    %p114 = scmp.eq.s32.totalorder %s11, 0
    %p115 = por %p113, %p114
    %p116 = scmp.ne.s32.totalorder %s108, %s110
    %p117 = scmp.eq.s32.totalorder %s16, 1
    %p118 = por %p116, %p117
    %p119 = scmp.ne.s32.totalorder %s110, %s111
    %p120 = scmp.eq.s32.totalorder %s16, 0
    %p121 = por %p119, %p120
    %p122 = scmp.ne.s32.totalorder %s110, %s111
    %p123 = scmp.eq.s32.totalorder %s17, 1
    %p124 = por %p122, %p123
    %p126 = scmp.ne.s32.totalorder %s111, %s125
    %p127 = scmp.eq.s32.totalorder %s17, 0
    %p128 = por %p126, %p127
    %s129 = ssub.s32 %s11, %s18
    %p130 = scmp.eq.s32.totalorder %s129, 0
    %s132 = sadd.s32 %s131, 1
    %s133 = scalar_select %p130, %s131, %s132
    %p136 = pneg %p130
    %p137 = scmp.eq.s32.totalorder %s11, 1
    %p138 = por %p136, %p137
    %p139 = scmp.ne.s32.totalorder %s131, %s134
    %p140 = scmp.eq.s32.totalorder %s11, 0
    %p141 = por %p139, %p140
    %p142 = scmp.ne.s32.totalorder %s131, %s134
    %p143 = scmp.eq.s32.totalorder %s16, 1
    %p144 = por %p142, %p143
    %p145 = scmp.ne.s32.totalorder %s134, %s135
    %p146 = scmp.eq.s32.totalorder %s16, 0
    %p147 = por %p145, %p146
    %p148 = scmp.ne.s32.totalorder %s134, %s135
    %p149 = scmp.eq.s32.totalorder %s17, 1
    %p150 = por %p148, %p149
    %p152 = scmp.ne.s32.totalorder %s135, %s151
    %p153 = scmp.eq.s32.totalorder %s17, 0
    %p154 = por %p152, %p153
    %p155 = scmp.le.s32.totalorder 1, %s11
    %p156 = scmp.lt.s32.totalorder %s11, 3
    %p157 = pnand %p155, %p156
    %p158 = pneg %p157
    // Predicated region
    $region9: #{conv_block_2d.5} parent=5 // pred_check
      _
    $region10: #{conv_block_2d.5} parent=5 // pred_check_branch
      %160 = sbr.rel (%p157) target = $region12
    $region11: #{conv_block_2d.5} parent=5 // pred_region
      %s161 = ssub.s32 %s11, 1
      // Predicated region
      $region13: #{conv_block_2d.5} parent=11 // pred_check
        %p162 = pneg %p58
      $region14: #{conv_block_2d.5} parent=11 // pred_check_branch
        %164 = sbr.rel (%p162) target = $region16
      $region15: #{conv_block_2d.5} parent=11 // pred_region
        _
      $region16: #{conv_block_2d.5} parent=11 // pred_fallthru
        _
      // Predicated region
      $region17: #{conv_block_2d.5} parent=11 // pred_check
        %p165 = pneg %p79
      $region18: #{conv_block_2d.5} parent=11 // pred_check_branch
        %167 = sbr.rel (%p165) target = $region20
      $region19: #{conv_block_2d.5} parent=11 // pred_region
        _
      $region20: #{conv_block_2d.5} parent=11 // pred_fallthru
        _
      // Predicated region
      $region21: #{conv_block_2d.5} parent=11 // pred_check
        %p168 = pneg %p100
      $region22: #{conv_block_2d.5} parent=11 // pred_check_branch
        %170 = sbr.rel (%p168) target = $region24
      $region23: #{conv_block_2d.5} parent=11 // pred_region
        _
      $region24: #{conv_block_2d.5} parent=11 // pred_fallthru
        _
      // Predicated region
      $region25: #{conv_block_2d.5} parent=11 // pred_check
        %p171 = pneg %p121
      $region26: #{conv_block_2d.5} parent=11 // pred_check_branch
        %173 = sbr.rel (%p171) target = $region28
      $region27: #{conv_block_2d.5} parent=11 // pred_region
        _
      $region28: #{conv_block_2d.5} parent=11 // pred_fallthru
        _
    $region12: #{conv_block_2d.5} parent=5 // pred_fallthru
      _
    %p174 = scmp.lt.s32.totalorder %s11, 2
    // Predicated region
    $region29: #{conv_block_2d.5} parent=5 // pred_check
      %p175 = pneg %p174
    $region30: #{conv_block_2d.5} parent=5 // pred_check_branch
      %177 = sbr.rel (%p175) target = $region32
    $region31: #{conv_block_2d.5} parent=5 // pred_region
      // Predicated region
      $region33: #{conv_block_2d.5} parent=31 // pred_check
        %p178 = pneg %p31
      $region34: #{conv_block_2d.5} parent=31 // pred_check_branch
        %180 = sbr.rel (%p178) target = $region36
      $region35: #{conv_block_2d.5} parent=31 // pred_region
        %p181 = scmp.lt.s32.totalorder %s11, 1
        %s182 = scalar_select %p181, %s11, 1
        %s183 = smul.addr %s182, 32
        %s184 = smul.addr %s183, 8
        %s185 = scalar_lea.vmem %s0, %s184
      $region36: #{conv_block_2d.5} parent=31 // pred_fallthru
        _
    $region32: #{conv_block_2d.5} parent=5 // pred_fallthru
      _
    %p186 = scmp.le.s32.totalorder 1, %s11
    %p187 = scmp.lt.s32.totalorder %s11, 3
    %p188 = pnand %p186, %p187
    %p189 = pneg %p188
    // Predicated region
    $region37: #{conv_block_2d.5} parent=5 // pred_check
      _
    $region38: #{conv_block_2d.5} parent=5 // pred_check_branch
      %191 = sbr.rel (%p188) target = $region40
    $region39: #{conv_block_2d.5} parent=5 // pred_region
      %s192 = ssub.s32 %s11, 1
      %p193 = scmp.lt.s32.totalorder %s16, 1
      %s194 = scalar_select %p193, %s16, 1
      %s195 = smul.addr %s194, 32
      %s196 = smul.addr %s195, 8
      %s197 = scalar_lea.vmem %s0, %s196
      %p198 = pneg %p37
      %p199 = pneg %p34
      %p200 = pneg %p58
      %p201 = pneg %p55
      %p202 = pneg %p79
      %p203 = pneg %p76
      %p204 = pneg %p100
      %p205 = pneg %p97
      %p206 = pneg %p121
      %p207 = pneg %p118
      %p208 = pneg %p147
      %p209 = pneg %p144
      %p210 = scmp.lt.s32.totalorder %s16, 1
      %s211 = scalar_select %p210, %s16, 1
      %s212 = smul.addr %s211, 32
      %s213 = smul.addr %s212, 4
      %s214 = scalar_lea.vmem %s5, %s213
      %p215 = scmp.lt.s32.totalorder %s16, 1
      %s216 = scalar_select %p215, %s16, 1
      %s217 = smul.addr %s216, 32
      %s218 = smul.addr %s217, 8
      %s219 = scalar_lea.vmem %s0, %s218
      %p220 = scmp.lt.s32.totalorder %s16, 1
      %s221 = scalar_select %p220, %s16, 1
      %s222 = smul.addr %s221, 32
      %s223 = smul.addr %s222, 4
      %s224 = scalar_lea.vmem %s5, %s223
      %v225 = vld [vmem:[%s1] sm:$0x1]
      %v226 = vmul.f32 %v225, 0.001953125
      %v227 = vld [vmem:[%s2] sm:$0x1]
      %v228 = vmul.f32 %v227, 0.001953125
      %v229 = vmul.f32 %v226, %v226
      %v230 = vsub.f32 %v228, %v229
      %v231 = vmax.f32 %v230, 0.0
      %v232 = vld [vmem:[%s3] sm:$0x1]
      %v233 = vadd.f32 %v231, 1e-05
      %v234 = vrsqrt.pop %v233
      %v235 = vmul.f32 %v232, %v234
      %v236 = vld [vmem:[%s4] sm:$0x1]
      %v237 = vmul.f32 %v226, %v235
      %v238 = vsub.f32 %v236, %v237
      %v239 = vld [vmem:[%s219] sm:$0xff]
      %v240 = vld [vmem:[%s219 + $0x8] sm:$0xff]
      %v241 = vld [vmem:[%s219 + $0x10] sm:$0xff]
      %v242 = vld [vmem:[%s219 + $0x18] sm:$0xff]
      %v243 = vld [vmem:[%s219 + $0x20] sm:$0xff]
      %v244 = vld [vmem:[%s219 + $0x28] sm:$0xff]
      %v245 = vld [vmem:[%s219 + $0x30] sm:$0xff]
      %v246 = vld [vmem:[%s219 + $0x38] sm:$0xff]
      %v247 = vld [vmem:[%s219 + $0x40] sm:$0xff]
      %v248 = vld [vmem:[%s219 + $0x48] sm:$0xff]
      %v249 = vld [vmem:[%s219 + $0x50] sm:$0xff]
      %v250 = vld [vmem:[%s219 + $0x58] sm:$0xff]
      %v251 = vld [vmem:[%s219 + $0x60] sm:$0xff]
      %v252 = vld [vmem:[%s219 + $0x68] sm:$0xff]
      %v253 = vld [vmem:[%s219 + $0x70] sm:$0xff]
      %v254 = vld [vmem:[%s219 + $0x78] sm:$0xff]
      %v255 = vld [vmem:[%s219 + $0x80] sm:$0xff]
      %v256 = vld [vmem:[%s219 + $0x88] sm:$0xff]
      %v257 = vld [vmem:[%s219 + $0x90] sm:$0xff]
      %v258 = vld [vmem:[%s219 + $0x98] sm:$0xff]
      %v259 = vld [vmem:[%s219 + $0xa0] sm:$0xff]
      %v260 = vld [vmem:[%s219 + $0xa8] sm:$0xff]
      %v261 = vld [vmem:[%s219 + $0xb0] sm:$0xff]
      %v262 = vld [vmem:[%s219 + $0xb8] sm:$0xff]
      %v263 = vld [vmem:[%s219 + $0xc0] sm:$0xff]
      %v264 = vld [vmem:[%s219 + $0xc8] sm:$0xff]
      %v265 = vld [vmem:[%s219 + $0xd0] sm:$0xff]
      %v266 = vld [vmem:[%s219 + $0xd8] sm:$0xff]
      %v267 = vld [vmem:[%s219 + $0xe0] sm:$0xff]
      %v268 = vld [vmem:[%s219 + $0xe8] sm:$0xff]
      %v269 = vld [vmem:[%s219 + $0xf0] sm:$0xff]
      %v270 = vld [vmem:[%s219 + $0xf8] sm:$0xff]
      %v272 = vlaneseq
      %v273 = vshrl.u32 %v272, 7
      %v274 = vsub.s32 0, %v273
      %v275 = vrot.slane %v235, %v274
      %v277 = vmul.f32 %v239, %v275
      %v278 = vmul.f32 %v240, %v275
      %v279 = vmul.f32 %v241, %v275
      %v280 = vmul.f32 %v242, %v275
      %v281 = vmul.f32 %v243, %v275
      %v282 = vmul.f32 %v244, %v275
      %v283 = vmul.f32 %v245, %v275
      %v284 = vmul.f32 %v246, %v275
      %v285 = vmul.f32 %v247, %v275
      %v286 = vmul.f32 %v248, %v275
      %v287 = vmul.f32 %v249, %v275
      %v288 = vmul.f32 %v250, %v275
      %v289 = vmul.f32 %v251, %v275
      %v290 = vmul.f32 %v252, %v275
      %v291 = vmul.f32 %v253, %v275
      %v292 = vmul.f32 %v254, %v275
      %v293 = vmul.f32 %v255, %v275
      %v294 = vmul.f32 %v256, %v275
      %v295 = vmul.f32 %v257, %v275
      %v296 = vmul.f32 %v258, %v275
      %v297 = vmul.f32 %v259, %v275
      %v298 = vmul.f32 %v260, %v275
      %v299 = vmul.f32 %v261, %v275
      %v300 = vmul.f32 %v262, %v275
      %v301 = vmul.f32 %v263, %v275
      %v302 = vmul.f32 %v264, %v275
      %v303 = vmul.f32 %v265, %v275
      %v304 = vmul.f32 %v266, %v275
      %v305 = vmul.f32 %v267, %v275
      %v306 = vmul.f32 %v268, %v275
      %v307 = vmul.f32 %v269, %v275
      %v308 = vmul.f32 %v270, %v275
      %v310 = vlaneseq
      %v311 = vshrl.u32 %v310, 7
      %v312 = vsub.s32 0, %v311
      %v313 = vrot.slane %v238, %v312
      %v315 = vadd.f32 %v277, %v313
      %v316 = vadd.f32 %v278, %v313
      %v317 = vadd.f32 %v279, %v313
      %v318 = vadd.f32 %v280, %v313
      %v319 = vadd.f32 %v281, %v313
      %v320 = vadd.f32 %v282, %v313
      %v321 = vadd.f32 %v283, %v313
      %v322 = vadd.f32 %v284, %v313
      %v323 = vadd.f32 %v285, %v313
      %v324 = vadd.f32 %v286, %v313
      %v325 = vadd.f32 %v287, %v313
      %v326 = vadd.f32 %v288, %v313
      %v327 = vadd.f32 %v289, %v313
      %v328 = vadd.f32 %v290, %v313
      %v329 = vadd.f32 %v291, %v313
      %v330 = vadd.f32 %v292, %v313
      %v331 = vadd.f32 %v293, %v313
      %v332 = vadd.f32 %v294, %v313
      %v333 = vadd.f32 %v295, %v313
      %v334 = vadd.f32 %v296, %v313
      %v335 = vadd.f32 %v297, %v313
      %v336 = vadd.f32 %v298, %v313
      %v337 = vadd.f32 %v299, %v313
      %v338 = vadd.f32 %v300, %v313
      %v339 = vadd.f32 %v301, %v313
      %v340 = vadd.f32 %v302, %v313
      %v341 = vadd.f32 %v303, %v313
      %v342 = vadd.f32 %v304, %v313
      %v343 = vadd.f32 %v305, %v313
      %v344 = vadd.f32 %v306, %v313
      %v345 = vadd.f32 %v307, %v313
      %v346 = vadd.f32 %v308, %v313
      %v347 = vpack.c.bf16 %v316, %v315
      %v348 = vpack.c.bf16 %v318, %v317
      %v349 = vpack.c.bf16 %v320, %v319
      %v350 = vpack.c.bf16 %v322, %v321
      %v351 = vpack.c.bf16 %v324, %v323
      %v352 = vpack.c.bf16 %v326, %v325
      %v353 = vpack.c.bf16 %v328, %v327
      %v354 = vpack.c.bf16 %v330, %v329
      %v355 = vpack.c.bf16 %v332, %v331
      %v356 = vpack.c.bf16 %v334, %v333
      %v357 = vpack.c.bf16 %v336, %v335
      %v358 = vpack.c.bf16 %v338, %v337
      %v359 = vpack.c.bf16 %v340, %v339
      %v360 = vpack.c.bf16 %v342, %v341
      %v361 = vpack.c.bf16 %v344, %v343
      %v362 = vpack.c.bf16 %v346, %v345
      %v379 = vunpack.c.l.b16 %v347
      %v380 = vunpack.c.h.b16 %v347
      %v381 = vunpack.c.l.b16 %v348
      %v382 = vunpack.c.h.b16 %v348
      %v383 = vunpack.c.l.b16 %v349
      %v384 = vunpack.c.h.b16 %v349
      %v385 = vunpack.c.l.b16 %v350
      %v386 = vunpack.c.h.b16 %v350
      %v387 = vunpack.c.l.b16 %v351
      %v388 = vunpack.c.h.b16 %v351
      %v389 = vunpack.c.l.b16 %v352
      %v390 = vunpack.c.h.b16 %v352
      %v391 = vunpack.c.l.b16 %v353
      %v392 = vunpack.c.h.b16 %v353
      %v393 = vunpack.c.l.b16 %v354
      %v394 = vunpack.c.h.b16 %v354
      %v395 = vunpack.c.l.b16 %v355
      %v396 = vunpack.c.h.b16 %v355
      %v397 = vunpack.c.l.b16 %v356
      %v398 = vunpack.c.h.b16 %v356
      %v399 = vunpack.c.l.b16 %v357
      %v400 = vunpack.c.h.b16 %v357
      %v401 = vunpack.c.l.b16 %v358
      %v402 = vunpack.c.h.b16 %v358
      %v403 = vunpack.c.l.b16 %v359
      %v404 = vunpack.c.h.b16 %v359
      %v405 = vunpack.c.l.b16 %v360
      %v406 = vunpack.c.h.b16 %v360
      %v407 = vunpack.c.l.b16 %v361
      %v408 = vunpack.c.h.b16 %v361
      %v409 = vunpack.c.l.b16 %v362
      %v410 = vunpack.c.h.b16 %v362
      %v411 = vpack.c.b16 %v379, %v379
      %v412 = vpack.c.b16 %v380, %v380
      %v413 = vpack.c.b16 %v381, %v381
      %v414 = vpack.c.b16 %v382, %v382
      %v415 = vpack.c.b16 %v383, %v383
      %v416 = vpack.c.b16 %v384, %v384
      %v417 = vpack.c.b16 %v385, %v385
      %v418 = vpack.c.b16 %v386, %v386
      %v419 = vpack.c.b16 %v387, %v387
      %v420 = vpack.c.b16 %v388, %v388
      %v421 = vpack.c.b16 %v389, %v389
      %v422 = vpack.c.b16 %v390, %v390
      %v423 = vpack.c.b16 %v391, %v391
      %v424 = vpack.c.b16 %v392, %v392
      %v425 = vpack.c.b16 %v393, %v393
      %v426 = vpack.c.b16 %v394, %v394
      %v427 = vpack.c.b16 %v395, %v395
      %v428 = vpack.c.b16 %v396, %v396
      %v429 = vpack.c.b16 %v397, %v397
      %v430 = vpack.c.b16 %v398, %v398
      %v431 = vpack.c.b16 %v399, %v399
      %v432 = vpack.c.b16 %v400, %v400
      %v433 = vpack.c.b16 %v401, %v401
      %v434 = vpack.c.b16 %v402, %v402
      %v435 = vpack.c.b16 %v403, %v403
      %v436 = vpack.c.b16 %v404, %v404
      %v437 = vpack.c.b16 %v405, %v405
      %v438 = vpack.c.b16 %v406, %v406
      %v439 = vpack.c.b16 %v407, %v407
      %v440 = vpack.c.b16 %v408, %v408
      %v441 = vpack.c.b16 %v409, %v409
      %v442 = vpack.c.b16 %v410, %v410
      %475 = vst [vmem:[%s224] sm:$0xf] %v411
      %476 = vst [vmem:[%s224 + $0x4] sm:$0xf] %v412
      %477 = vst [vmem:[%s224 + $0x8] sm:$0xf] %v413
      %478 = vst [vmem:[%s224 + $0xc] sm:$0xf] %v414
      %479 = vst [vmem:[%s224 + $0x10] sm:$0xf] %v415
      %480 = vst [vmem:[%s224 + $0x14] sm:$0xf] %v416
      %481 = vst [vmem:[%s224 + $0x18] sm:$0xf] %v417
      %482 = vst [vmem:[%s224 + $0x1c] sm:$0xf] %v418
      %483 = vst [vmem:[%s224 + $0x20] sm:$0xf] %v419
      %484 = vst [vmem:[%s224 + $0x24] sm:$0xf] %v420
      %485 = vst [vmem:[%s224 + $0x28] sm:$0xf] %v421
      %486 = vst [vmem:[%s224 + $0x2c] sm:$0xf] %v422
      %487 = vst [vmem:[%s224 + $0x30] sm:$0xf] %v423
      %488 = vst [vmem:[%s224 + $0x34] sm:$0xf] %v424
      %489 = vst [vmem:[%s224 + $0x38] sm:$0xf] %v425
      %490 = vst [vmem:[%s224 + $0x3c] sm:$0xf] %v426
      %491 = vst [vmem:[%s224 + $0x40] sm:$0xf] %v427
      %492 = vst [vmem:[%s224 + $0x44] sm:$0xf] %v428
      %493 = vst [vmem:[%s224 + $0x48] sm:$0xf] %v429
      %494 = vst [vmem:[%s224 + $0x4c] sm:$0xf] %v430
      %495 = vst [vmem:[%s224 + $0x50] sm:$0xf] %v431
      %496 = vst [vmem:[%s224 + $0x54] sm:$0xf] %v432
      %497 = vst [vmem:[%s224 + $0x58] sm:$0xf] %v433
      %498 = vst [vmem:[%s224 + $0x5c] sm:$0xf] %v434
      %499 = vst [vmem:[%s224 + $0x60] sm:$0xf] %v435
      %500 = vst [vmem:[%s224 + $0x64] sm:$0xf] %v436
      %501 = vst [vmem:[%s224 + $0x68] sm:$0xf] %v437
      %502 = vst [vmem:[%s224 + $0x6c] sm:$0xf] %v438
      %503 = vst [vmem:[%s224 + $0x70] sm:$0xf] %v439
      %504 = vst [vmem:[%s224 + $0x74] sm:$0xf] %v440
      %505 = vst [vmem:[%s224 + $0x78] sm:$0xf] %v441
      %506 = vst [vmem:[%s224 + $0x7c] sm:$0xf] %v442
      %p507 = scmp.lt.s32.totalorder %s16, 1
      %s508 = scalar_select %p507, %s16, 1
      %s509 = smul.addr %s508, 32
      %s510 = smul.addr %s509, 4
      %s511 = scalar_lea.vmem %s5, %s510
      // Predicated region
      $region41: #{conv_block_2d.5} parent=39 // pred_check
        %p512 = pneg %p144
      $region42: #{conv_block_2d.5} parent=39 // pred_check_branch
        %514 = sbr.rel (%p512) target = $region44
      $region43: #{conv_block_2d.5} parent=39 // pred_region
        _
      $region44: #{conv_block_2d.5} parent=39 // pred_fallthru
        _
    $region40: #{conv_block_2d.5} parent=5 // pred_fallthru
      _
    %p515 = scmp.le.s32.totalorder 2, %s11
    // Predicated region
    $region45: #{conv_block_2d.5} parent=5 // pred_check
      %p516 = pneg %p515
    $region46: #{conv_block_2d.5} parent=5 // pred_check_branch
      %518 = sbr.rel (%p516) target = $region48
    $region47: #{conv_block_2d.5} parent=5 // pred_region
      %s519 = ssub.s32 %s11, 2
      // Predicated region
      $region49: #{conv_block_2d.5} parent=47 // pred_check
        %p520 = pneg %p150
      $region50: #{conv_block_2d.5} parent=47 // pred_check_branch
        %522 = sbr.rel (%p520) target = $region52
      $region51: #{conv_block_2d.5} parent=47 // pred_region
        %p523 = scmp.lt.s32.totalorder %s17, 1
        %s524 = scalar_select %p523, %s17, 1
        %s525 = smul.addr %s524, 32
        %s526 = smul.addr %s525, 4
        %s527 = scalar_lea.vmem %s5, %s526
      $region52: #{conv_block_2d.5} parent=47 // pred_fallthru
        _
    $region48: #{conv_block_2d.5} parent=5 // pred_fallthru
      _
  $region6: #{conv_block_2d.5} parent=0 // loop_footer
    %s15 = sadd.s32 1, %s11
  $region7: #{conv_block_2d.5} parent=0 // loop_footer_branch
    %10 = sbr.rel target = $region3
  $region8: #{conv_block_2d.5} parent=0 // loop_exit
    _

// kernel: conv_block_2d.7
$region0: #{conv_block_2d.7}
  #allocation0 [shape = 'u32[]', space=smem, size = 0x4, offset = 0x4, fixed_abs, tag = 'smem constant byte address 0x4 - core index']
  #allocation1 [shape = 'u32[144,128]{1,0:T(1,128)}', space=vmem, size = 0x12000, scoped, tag = 'internal scratch']
  %s0 = inlined_call_operand.vmem [shape: f32[2,256,128], index: 0, kind: input, shape index: {}]
  %s1 = inlined_call_operand.vmem [shape: f32[1,128], index: 1, kind: input, shape index: {}]
  %s2 = inlined_call_operand.vmem [shape: f32[1,128], index: 2, kind: input, shape index: {}]
  %s3 = inlined_call_operand.vmem [shape: f32[1,128], index: 3, kind: input, shape index: {}]
  %s4 = inlined_call_operand.vmem [shape: f32[1,128], index: 4, kind: input, shape index: {}]
  %s5 = inlined_call_operand.vmem [shape: f32[2,256,128], index: 5, kind: output, shape index: {}]
  %s6 = sld [smem:[#allocation0]]
  $region53: #{conv_block_2d.7} parent=0
    _
  %s8 = ssub.s32 1, %s6
  %s9 = scalar_select 0, %s8, %s6
  loop: start=0, step=1, limit=4
  $region2: #{conv_block_2d.7} parent=0 // loop_pre_header
    _
  $region3: #{conv_block_2d.7} parent=0 // loop_header
    %s11 = sphi 0, %s15
    %p12 = scmp.ge.s32.totalorder %s11, 4
    %s21 = sphi 0, %s23
    %s24 = sphi 0, %s21
    %s25 = sphi 0, %s24
    %s41 = sphi 0, %s25
    %s45 = sphi 0, %s45
    %s47 = sphi 0, %s45
    %s48 = sphi 0, %s47
    %s62 = sphi 0, %s48
    %s66 = sphi 0, %s66
    %s68 = sphi 0, %s66
    %s69 = sphi 0, %s68
    %s83 = sphi 0, %s69
    %s87 = sphi 0, %s87
    %s89 = sphi 0, %s87
    %s90 = sphi 0, %s89
    %s104 = sphi 0, %s90
    %s108 = sphi 0, %s108
    %s110 = sphi 0, %s108
    %s111 = sphi 0, %s110
    %s125 = sphi 0, %s111
    %s131 = sphi 0, %s133
    %s134 = sphi 0, %s131
    %s135 = sphi 0, %s134
    %s151 = sphi 0, %s135
  $region4: #{conv_block_2d.7} parent=0 // loop_header_branch
    %14 = sbr.rel (%p12) target = $region8
  $region5: #{conv_block_2d.7} parent=0 // loop_body
    %s16 = ssub.s32 %s11, 1
    %s17 = ssub.s32 %s11, 2
    %s18 = sadd.s32 %s11, 1
    %s19 = ssub.s32 %s11, %s18
    %p20 = scmp.eq.s32.totalorder %s19, 0
    %s22 = sadd.s32 %s21, 1
    %s23 = scalar_select %p20, %s21, %s22
    %p26 = pneg %p20
    %p27 = scmp.eq.s32.totalorder %s11, 1
    %p28 = por %p26, %p27
    %p29 = scmp.ne.s32.totalorder %s21, %s24
    %p30 = scmp.eq.s32.totalorder %s11, 0
    %p31 = por %p29, %p30
    %p32 = scmp.ne.s32.totalorder %s21, %s24
    %p33 = scmp.eq.s32.totalorder %s16, 1
    %p34 = por %p32, %p33
    %p35 = scmp.ne.s32.totalorder %s24, %s25
    %p36 = scmp.eq.s32.totalorder %s16, 0
    %p37 = por %p35, %p36
    %p38 = scmp.ne.s32.totalorder %s24, %s25
    %p39 = scmp.eq.s32.totalorder %s17, 1
    %p40 = por %p38, %p39
    %p42 = scmp.ne.s32.totalorder %s25, %s41
    %p43 = scmp.eq.s32.totalorder %s17, 0
    %p44 = por %p42, %p43
    %s46 = sadd.s32 %s45, 1
    %p49 = scmp.eq.s32.totalorder %s11, 1
    %p50 = scmp.ne.s32.totalorder %s45, %s47
    %p51 = scmp.eq.s32.totalorder %s11, 0
    %p52 = por %p50, %p51
    %p53 = scmp.ne.s32.totalorder %s45, %s47
    %p54 = scmp.eq.s32.totalorder %s16, 1
    %p55 = por %p53, %p54
    %p56 = scmp.ne.s32.totalorder %s47, %s48
    %p57 = scmp.eq.s32.totalorder %s16, 0
    %p58 = por %p56, %p57
    %p59 = scmp.ne.s32.totalorder %s47, %s48
    %p60 = scmp.eq.s32.totalorder %s17, 1
    %p61 = por %p59, %p60
    %p63 = scmp.ne.s32.totalorder %s48, %s62
    %p64 = scmp.eq.s32.totalorder %s17, 0
    %p65 = por %p63, %p64
    %s67 = sadd.s32 %s66, 1
    %p70 = scmp.eq.s32.totalorder %s11, 1
    %p71 = scmp.ne.s32.totalorder %s66, %s68
    %p72 = scmp.eq.s32.totalorder %s11, 0
    %p73 = por %p71, %p72
    %p74 = scmp.ne.s32.totalorder %s66, %s68
    %p75 = scmp.eq.s32.totalorder %s16, 1
    %p76 = por %p74, %p75
    %p77 = scmp.ne.s32.totalorder %s68, %s69
    %p78 = scmp.eq.s32.totalorder %s16, 0
    %p79 = por %p77, %p78
    %p80 = scmp.ne.s32.totalorder %s68, %s69
    %p81 = scmp.eq.s32.totalorder %s17, 1
    %p82 = por %p80, %p81
    %p84 = scmp.ne.s32.totalorder %s69, %s83
    %p85 = scmp.eq.s32.totalorder %s17, 0
    %p86 = por %p84, %p85
    %s88 = sadd.s32 %s87, 1
    %p91 = scmp.eq.s32.totalorder %s11, 1
    %p92 = scmp.ne.s32.totalorder %s87, %s89
    %p93 = scmp.eq.s32.totalorder %s11, 0
    %p94 = por %p92, %p93
    %p95 = scmp.ne.s32.totalorder %s87, %s89
    %p96 = scmp.eq.s32.totalorder %s16, 1
    %p97 = por %p95, %p96
    %p98 = scmp.ne.s32.totalorder %s89, %s90
    %p99 = scmp.eq.s32.totalorder %s16, 0
    %p100 = por %p98, %p99
    %p101 = scmp.ne.s32.totalorder %s89, %s90
    %p102 = scmp.eq.s32.totalorder %s17, 1
    %p103 = por %p101, %p102
    %p105 = scmp.ne.s32.totalorder %s90, %s104
    %p106 = scmp.eq.s32.totalorder %s17, 0
    %p107 = por %p105, %p106
    %s109 = sadd.s32 %s108, 1
    %p112 = scmp.eq.s32.totalorder %s11, 1
    %p113 = scmp.ne.s32.totalorder %s108, %s110
    %p114 = scmp.eq.s32.totalorder %s11, 0
    %p115 = por %p113, %p114
    %p116 = scmp.ne.s32.totalorder %s108, %s110
    %p117 = scmp.eq.s32.totalorder %s16, 1
    %p118 = por %p116, %p117
    %p119 = scmp.ne.s32.totalorder %s110, %s111
    %p120 = scmp.eq.s32.totalorder %s16, 0
    %p121 = por %p119, %p120
    %p122 = scmp.ne.s32.totalorder %s110, %s111
    %p123 = scmp.eq.s32.totalorder %s17, 1
    %p124 = por %p122, %p123
    %p126 = scmp.ne.s32.totalorder %s111, %s125
    %p127 = scmp.eq.s32.totalorder %s17, 0
    %p128 = por %p126, %p127
    %s129 = ssub.s32 %s11, %s18
    %p130 = scmp.eq.s32.totalorder %s129, 0
    %s132 = sadd.s32 %s131, 1
    %s133 = scalar_select %p130, %s131, %s132
    %p136 = pneg %p130
    %p137 = scmp.eq.s32.totalorder %s11, 1
    %p138 = por %p136, %p137
    %p139 = scmp.ne.s32.totalorder %s131, %s134
    %p140 = scmp.eq.s32.totalorder %s11, 0
    %p141 = por %p139, %p140
    %p142 = scmp.ne.s32.totalorder %s131, %s134
    %p143 = scmp.eq.s32.totalorder %s16, 1
    %p144 = por %p142, %p143
    %p145 = scmp.ne.s32.totalorder %s134, %s135
    %p146 = scmp.eq.s32.totalorder %s16, 0
    %p147 = por %p145, %p146
    %p148 = scmp.ne.s32.totalorder %s134, %s135
    %p149 = scmp.eq.s32.totalorder %s17, 1
    %p150 = por %p148, %p149
    %p152 = scmp.ne.s32.totalorder %s135, %s151
    %p153 = scmp.eq.s32.totalorder %s17, 0
    %p154 = por %p152, %p153
    %p155 = scmp.le.s32.totalorder 1, %s11
    %p156 = scmp.lt.s32.totalorder %s11, 3
    %p157 = pnand %p155, %p156
    %p158 = pneg %p157
    // Predicated region
    $region9: #{conv_block_2d.7} parent=5 // pred_check
      _
    $region10: #{conv_block_2d.7} parent=5 // pred_check_branch
      %160 = sbr.rel (%p157) target = $region12
    $region11: #{conv_block_2d.7} parent=5 // pred_region
      %s161 = ssub.s32 %s11, 1
      // Predicated region
      $region13: #{conv_block_2d.7} parent=11 // pred_check
        %p162 = pneg %p58
      $region14: #{conv_block_2d.7} parent=11 // pred_check_branch
        %164 = sbr.rel (%p162) target = $region16
      $region15: #{conv_block_2d.7} parent=11 // pred_region
        _
      $region16: #{conv_block_2d.7} parent=11 // pred_fallthru
        _
      // Predicated region
      $region17: #{conv_block_2d.7} parent=11 // pred_check
        %p165 = pneg %p79
      $region18: #{conv_block_2d.7} parent=11 // pred_check_branch
        %167 = sbr.rel (%p165) target = $region20
      $region19: #{conv_block_2d.7} parent=11 // pred_region
        _
      $region20: #{conv_block_2d.7} parent=11 // pred_fallthru
        _
      // Predicated region
      $region21: #{conv_block_2d.7} parent=11 // pred_check
        %p168 = pneg %p100
      $region22: #{conv_block_2d.7} parent=11 // pred_check_branch
        %170 = sbr.rel (%p168) target = $region24
      $region23: #{conv_block_2d.7} parent=11 // pred_region
        _
      $region24: #{conv_block_2d.7} parent=11 // pred_fallthru
        _
      // Predicated region
      $region25: #{conv_block_2d.7} parent=11 // pred_check
        %p171 = pneg %p121
      $region26: #{conv_block_2d.7} parent=11 // pred_check_branch
        %173 = sbr.rel (%p171) target = $region28
      $region27: #{conv_block_2d.7} parent=11 // pred_region
        _
      $region28: #{conv_block_2d.7} parent=11 // pred_fallthru
        _
    $region12: #{conv_block_2d.7} parent=5 // pred_fallthru
      _
    %p174 = scmp.lt.s32.totalorder %s11, 2
    // Predicated region
    $region29: #{conv_block_2d.7} parent=5 // pred_check
      %p175 = pneg %p174
    $region30: #{conv_block_2d.7} parent=5 // pred_check_branch
      %177 = sbr.rel (%p175) target = $region32
    $region31: #{conv_block_2d.7} parent=5 // pred_region
      // Predicated region
      $region33: #{conv_block_2d.7} parent=31 // pred_check
        %p178 = pneg %p31
      $region34: #{conv_block_2d.7} parent=31 // pred_check_branch
        %180 = sbr.rel (%p178) target = $region36
      $region35: #{conv_block_2d.7} parent=31 // pred_region
        %p181 = scmp.lt.s32.totalorder %s11, 1
        %s182 = scalar_select %p181, %s11, 1
        %s183 = smul.addr %s182, 32
        %s184 = smul.addr %s183, 8
        %s185 = scalar_lea.vmem %s0, %s184
      $region36: #{conv_block_2d.7} parent=31 // pred_fallthru
        _
    $region32: #{conv_block_2d.7} parent=5 // pred_fallthru
      _
    %p186 = scmp.le.s32.totalorder 1, %s11
    %p187 = scmp.lt.s32.totalorder %s11, 3
    %p188 = pnand %p186, %p187
    %p189 = pneg %p188
    // Predicated region
    $region37: #{conv_block_2d.7} parent=5 // pred_check
      _
    $region38: #{conv_block_2d.7} parent=5 // pred_check_branch
      %191 = sbr.rel (%p188) target = $region40
    $region39: #{conv_block_2d.7} parent=5 // pred_region
      %s192 = ssub.s32 %s11, 1
      %p193 = scmp.lt.s32.totalorder %s16, 1
      %s194 = scalar_select %p193, %s16, 1
      %s195 = smul.addr %s194, 32
      %s196 = smul.addr %s195, 8
      %s197 = scalar_lea.vmem %s0, %s196
      %p198 = pneg %p37
      %p199 = pneg %p34
      %p200 = pneg %p58
      %p201 = pneg %p55
      %p202 = pneg %p79
      %p203 = pneg %p76
      %p204 = pneg %p100
      %p205 = pneg %p97
      %p206 = pneg %p121
      %p207 = pneg %p118
      %p208 = pneg %p147
      %p209 = pneg %p144
      %p210 = scmp.lt.s32.totalorder %s16, 1
      %s211 = scalar_select %p210, %s16, 1
      %s212 = smul.addr %s211, 32
      %s213 = smul.addr %s212, 8
      %s214 = scalar_lea.vmem %s5, %s213
      %p215 = scmp.lt.s32.totalorder %s16, 1
      %s216 = scalar_select %p215, %s16, 1
      %s217 = smul.addr %s216, 32
      %s218 = smul.addr %s217, 8
      %s219 = scalar_lea.vmem %s0, %s218
      %p220 = scmp.lt.s32.totalorder %s16, 1
      %s221 = scalar_select %p220, %s16, 1
      %s222 = smul.addr %s221, 32
      %s223 = smul.addr %s222, 8
      %s224 = scalar_lea.vmem %s5, %s223
      %v225 = vld [vmem:[%s1] sm:$0x1]
      %v226 = vmul.f32 %v225, 0.001953125
      %v227 = vld [vmem:[%s2] sm:$0x1]
      %v228 = vmul.f32 %v227, 0.001953125
      %v229 = vmul.f32 %v226, %v226
      %v230 = vsub.f32 %v228, %v229
      %v231 = vmax.f32 %v230, 0.0
      %v232 = vld [vmem:[%s3] sm:$0x1]
      %v233 = vadd.f32 %v231, 1e-05
      %v234 = vrsqrt.pop %v233
      %v235 = vmul.f32 %v232, %v234
      %v236 = vld [vmem:[%s4] sm:$0x1]
      %v237 = vmul.f32 %v226, %v235
      %v238 = vsub.f32 %v236, %v237
      %v239 = vld [vmem:[%s219] sm:$0xff]
      %v240 = vld [vmem:[%s219 + $0x8] sm:$0xff]
      %v241 = vld [vmem:[%s219 + $0x10] sm:$0xff]
      %v242 = vld [vmem:[%s219 + $0x18] sm:$0xff]
      %v243 = vld [vmem:[%s219 + $0x20] sm:$0xff]
      %v244 = vld [vmem:[%s219 + $0x28] sm:$0xff]
      %v245 = vld [vmem:[%s219 + $0x30] sm:$0xff]
      %v246 = vld [vmem:[%s219 + $0x38] sm:$0xff]
      %v247 = vld [vmem:[%s219 + $0x40] sm:$0xff]
      %v248 = vld [vmem:[%s219 + $0x48] sm:$0xff]
      %v249 = vld [vmem:[%s219 + $0x50] sm:$0xff]
      %v250 = vld [vmem:[%s219 + $0x58] sm:$0xff]
      %v251 = vld [vmem:[%s219 + $0x60] sm:$0xff]
      %v252 = vld [vmem:[%s219 + $0x68] sm:$0xff]
      %v253 = vld [vmem:[%s219 + $0x70] sm:$0xff]
      %v254 = vld [vmem:[%s219 + $0x78] sm:$0xff]
      %v255 = vld [vmem:[%s219 + $0x80] sm:$0xff]
      %v256 = vld [vmem:[%s219 + $0x88] sm:$0xff]
      %v257 = vld [vmem:[%s219 + $0x90] sm:$0xff]
      %v258 = vld [vmem:[%s219 + $0x98] sm:$0xff]
      %v259 = vld [vmem:[%s219 + $0xa0] sm:$0xff]
      %v260 = vld [vmem:[%s219 + $0xa8] sm:$0xff]
      %v261 = vld [vmem:[%s219 + $0xb0] sm:$0xff]
      %v262 = vld [vmem:[%s219 + $0xb8] sm:$0xff]
      %v263 = vld [vmem:[%s219 + $0xc0] sm:$0xff]
      %v264 = vld [vmem:[%s219 + $0xc8] sm:$0xff]
      %v265 = vld [vmem:[%s219 + $0xd0] sm:$0xff]
      %v266 = vld [vmem:[%s219 + $0xd8] sm:$0xff]
      %v267 = vld [vmem:[%s219 + $0xe0] sm:$0xff]
      %v268 = vld [vmem:[%s219 + $0xe8] sm:$0xff]
      %v269 = vld [vmem:[%s219 + $0xf0] sm:$0xff]
      %v270 = vld [vmem:[%s219 + $0xf8] sm:$0xff]
      %v272 = vlaneseq
      %v273 = vshrl.u32 %v272, 7
      %v274 = vsub.s32 0, %v273
      %v275 = vrot.slane %v235, %v274
      %v277 = vmul.f32 %v239, %v275
      %v278 = vmul.f32 %v240, %v275
      %v279 = vmul.f32 %v241, %v275
      %v280 = vmul.f32 %v242, %v275
      %v281 = vmul.f32 %v243, %v275
      %v282 = vmul.f32 %v244, %v275
      %v283 = vmul.f32 %v245, %v275
      %v284 = vmul.f32 %v246, %v275
      %v285 = vmul.f32 %v247, %v275
      %v286 = vmul.f32 %v248, %v275
      %v287 = vmul.f32 %v249, %v275
      %v288 = vmul.f32 %v250, %v275
      %v289 = vmul.f32 %v251, %v275
      %v290 = vmul.f32 %v252, %v275
      %v291 = vmul.f32 %v253, %v275
      %v292 = vmul.f32 %v254, %v275
      %v293 = vmul.f32 %v255, %v275
      %v294 = vmul.f32 %v256, %v275
      %v295 = vmul.f32 %v257, %v275
      %v296 = vmul.f32 %v258, %v275
      %v297 = vmul.f32 %v259, %v275
      %v298 = vmul.f32 %v260, %v275
      %v299 = vmul.f32 %v261, %v275
      %v300 = vmul.f32 %v262, %v275
      %v301 = vmul.f32 %v263, %v275
      %v302 = vmul.f32 %v264, %v275
      %v303 = vmul.f32 %v265, %v275
      %v304 = vmul.f32 %v266, %v275
      %v305 = vmul.f32 %v267, %v275
      %v306 = vmul.f32 %v268, %v275
      %v307 = vmul.f32 %v269, %v275
      %v308 = vmul.f32 %v270, %v275
      %v310 = vlaneseq
      %v311 = vshrl.u32 %v310, 7
      %v312 = vsub.s32 0, %v311
      %v313 = vrot.slane %v238, %v312
      %v315 = vadd.f32 %v277, %v313
      %v316 = vadd.f32 %v278, %v313
      %v317 = vadd.f32 %v279, %v313
      %v318 = vadd.f32 %v280, %v313
      %v319 = vadd.f32 %v281, %v313
      %v320 = vadd.f32 %v282, %v313
      %v321 = vadd.f32 %v283, %v313
      %v322 = vadd.f32 %v284, %v313
      %v323 = vadd.f32 %v285, %v313
      %v324 = vadd.f32 %v286, %v313
      %v325 = vadd.f32 %v287, %v313
      %v326 = vadd.f32 %v288, %v313
      %v327 = vadd.f32 %v289, %v313
      %v328 = vadd.f32 %v290, %v313
      %v329 = vadd.f32 %v291, %v313
      %v330 = vadd.f32 %v292, %v313
      %v331 = vadd.f32 %v293, %v313
      %v332 = vadd.f32 %v294, %v313
      %v333 = vadd.f32 %v295, %v313
      %v334 = vadd.f32 %v296, %v313
      %v335 = vadd.f32 %v297, %v313
      %v336 = vadd.f32 %v298, %v313
      %v337 = vadd.f32 %v299, %v313
      %v338 = vadd.f32 %v300, %v313
      %v339 = vadd.f32 %v301, %v313
      %v340 = vadd.f32 %v302, %v313
      %v341 = vadd.f32 %v303, %v313
      %v342 = vadd.f32 %v304, %v313
      %v343 = vadd.f32 %v305, %v313
      %v344 = vadd.f32 %v306, %v313
      %v345 = vadd.f32 %v307, %v313
      %v346 = vadd.f32 %v308, %v313
      %347 = vst [vmem:[%s224] sm:$0xff] %v315
      %348 = vst [vmem:[%s224 + $0x8] sm:$0xff] %v316
      %349 = vst [vmem:[%s224 + $0x10] sm:$0xff] %v317
      %350 = vst [vmem:[%s224 + $0x18] sm:$0xff] %v318
      %351 = vst [vmem:[%s224 + $0x20] sm:$0xff] %v319
      %352 = vst [vmem:[%s224 + $0x28] sm:$0xff] %v320
      %353 = vst [vmem:[%s224 + $0x30] sm:$0xff] %v321
      %354 = vst [vmem:[%s224 + $0x38] sm:$0xff] %v322
      %355 = vst [vmem:[%s224 + $0x40] sm:$0xff] %v323
      %356 = vst [vmem:[%s224 + $0x48] sm:$0xff] %v324
      %357 = vst [vmem:[%s224 + $0x50] sm:$0xff] %v325
      %358 = vst [vmem:[%s224 + $0x58] sm:$0xff] %v326
      %359 = vst [vmem:[%s224 + $0x60] sm:$0xff] %v327
      %360 = vst [vmem:[%s224 + $0x68] sm:$0xff] %v328
      %361 = vst [vmem:[%s224 + $0x70] sm:$0xff] %v329
      %362 = vst [vmem:[%s224 + $0x78] sm:$0xff] %v330
      %363 = vst [vmem:[%s224 + $0x80] sm:$0xff] %v331
      %364 = vst [vmem:[%s224 + $0x88] sm:$0xff] %v332
      %365 = vst [vmem:[%s224 + $0x90] sm:$0xff] %v333
      %366 = vst [vmem:[%s224 + $0x98] sm:$0xff] %v334
      %367 = vst [vmem:[%s224 + $0xa0] sm:$0xff] %v335
      %368 = vst [vmem:[%s224 + $0xa8] sm:$0xff] %v336
      %369 = vst [vmem:[%s224 + $0xb0] sm:$0xff] %v337
      %370 = vst [vmem:[%s224 + $0xb8] sm:$0xff] %v338
      %371 = vst [vmem:[%s224 + $0xc0] sm:$0xff] %v339
      %372 = vst [vmem:[%s224 + $0xc8] sm:$0xff] %v340
      %373 = vst [vmem:[%s224 + $0xd0] sm:$0xff] %v341
      %374 = vst [vmem:[%s224 + $0xd8] sm:$0xff] %v342
      %375 = vst [vmem:[%s224 + $0xe0] sm:$0xff] %v343
      %376 = vst [vmem:[%s224 + $0xe8] sm:$0xff] %v344
      %377 = vst [vmem:[%s224 + $0xf0] sm:$0xff] %v345
      %378 = vst [vmem:[%s224 + $0xf8] sm:$0xff] %v346
      %p379 = scmp.lt.s32.totalorder %s16, 1
      %s380 = scalar_select %p379, %s16, 1
      %s381 = smul.addr %s380, 32
      %s382 = smul.addr %s381, 8
      %s383 = scalar_lea.vmem %s5, %s382
      // Predicated region
      $region41: #{conv_block_2d.7} parent=39 // pred_check
        %p384 = pneg %p144
      $region42: #{conv_block_2d.7} parent=39 // pred_check_branch
        %386 = sbr.rel (%p384) target = $region44
      $region43: #{conv_block_2d.7} parent=39 // pred_region
        _
      $region44: #{conv_block_2d.7} parent=39 // pred_fallthru
        _
    $region40: #{conv_block_2d.7} parent=5 // pred_fallthru
      _
    %p387 = scmp.le.s32.totalorder 2, %s11
    // Predicated region
    $region45: #{conv_block_2d.7} parent=5 // pred_check
      %p388 = pneg %p387
    $region46: #{conv_block_2d.7} parent=5 // pred_check_branch
      %390 = sbr.rel (%p388) target = $region48
    $region47: #{conv_block_2d.7} parent=5 // pred_region
      %s391 = ssub.s32 %s11, 2
      // Predicated region
      $region49: #{conv_block_2d.7} parent=47 // pred_check
        %p392 = pneg %p150
      $region50: #{conv_block_2d.7} parent=47 // pred_check_branch
        %394 = sbr.rel (%p392) target = $region52
      $region51: #{conv_block_2d.7} parent=47 // pred_region
        %p395 = scmp.lt.s32.totalorder %s17, 1
        %s396 = scalar_select %p395, %s17, 1
        %s397 = smul.addr %s396, 32
        %s398 = smul.addr %s397, 8
        %s399 = scalar_lea.vmem %s5, %s398
      $region52: #{conv_block_2d.7} parent=47 // pred_fallthru
        _
    $region48: #{conv_block_2d.7} parent=5 // pred_fallthru
      _
  $region6: #{conv_block_2d.7} parent=0 // loop_footer
    %s15 = sadd.s32 1, %s11
  $region7: #{conv_block_2d.7} parent=0 // loop_footer_branch
    %10 = sbr.rel target = $region3
  $region8: #{conv_block_2d.7} parent=0 // loop_exit
    _

// kernel: conv_block_2d.4
$region0: #{conv_block_2d.4}
  #allocation0 [shape = 'u32[]', space=smem, size = 0x4, offset = 0x4, fixed_abs, tag = 'smem constant byte address 0x4 - core index']
  #allocation1 [shape = 'u32[144,128]{1,0:T(1,128)}', space=vmem, size = 0x12000, scoped, tag = 'internal scratch']
  %s0 = inlined_call_operand.vmem [shape: bf16[2,18,18,128], index: 0, kind: input, shape index: {}]
  %s1 = inlined_call_operand.vmem [shape: bf16[1152,128], index: 1, kind: input, shape index: {}]
  %s2 = inlined_call_operand.vmem [shape: f32[1,128], index: 2, kind: input, shape index: {}]
  %s3 = inlined_call_operand.vmem [shape: f32[2,256,128], index: 3, kind: output, shape index: {0}]
  %s4 = inlined_call_operand.vmem [shape: f32[2,1,128], index: 4, kind: output, shape index: {1}]
  %s5 = inlined_call_operand.vmem [shape: f32[2,1,128], index: 5, kind: output, shape index: {2}]
  %6 = xla_tuple %s3, %s4, %s5
  %s7 = sld [smem:[#allocation0]]
  $region61: #{conv_block_2d.4} parent=0
    _
  %s9 = ssub.s32 1, %s7
  %s10 = scalar_select 0, %s9, %s7
  loop: start=0, step=1, limit=4
  $region2: #{conv_block_2d.4} parent=0 // loop_pre_header
    _
  $region3: #{conv_block_2d.4} parent=0 // loop_header
    %s12 = sphi 0, %s16
    %p13 = scmp.ge.s32.totalorder %s12, 4
    %s22 = sphi 0, %s24
    %s25 = sphi 0, %s22
    %s26 = sphi 0, %s25
    %s42 = sphi 0, %s26
    %s46 = sphi 0, %s46
    %s48 = sphi 0, %s46
    %s49 = sphi 0, %s48
    %s63 = sphi 0, %s49
    %s67 = sphi 0, %s67
    %s69 = sphi 0, %s67
    %s70 = sphi 0, %s69
    %s84 = sphi 0, %s70
    %s90 = sphi 0, %s92
    %s93 = sphi 0, %s90
    %s94 = sphi 0, %s93
    %s110 = sphi 0, %s94
    %s116 = sphi 0, %s118
    %s119 = sphi 0, %s116
    %s120 = sphi 0, %s119
    %s136 = sphi 0, %s120
    %s142 = sphi 0, %s144
    %s145 = sphi 0, %s142
    %s146 = sphi 0, %s145
    %s162 = sphi 0, %s146
  $region4: #{conv_block_2d.4} parent=0 // loop_header_branch
    %15 = sbr.rel (%p13) target = $region8
  $region5: #{conv_block_2d.4} parent=0 // loop_body
    %s17 = ssub.s32 %s12, 1
    %s18 = ssub.s32 %s12, 2
    %s19 = sadd.s32 %s12, 1
    %s20 = ssub.s32 %s12, %s19
    %p21 = scmp.eq.s32.totalorder %s20, 0
    %s23 = sadd.s32 %s22, 1
    %s24 = scalar_select %p21, %s22, %s23
    %p27 = pneg %p21
    %p28 = scmp.eq.s32.totalorder %s12, 1
    %p29 = por %p27, %p28
    %p30 = scmp.ne.s32.totalorder %s22, %s25
    %p31 = scmp.eq.s32.totalorder %s12, 0
    %p32 = por %p30, %p31
    %p33 = scmp.ne.s32.totalorder %s22, %s25
    %p34 = scmp.eq.s32.totalorder %s17, 1
    %p35 = por %p33, %p34
    %p36 = scmp.ne.s32.totalorder %s25, %s26
    %p37 = scmp.eq.s32.totalorder %s17, 0
    %p38 = por %p36, %p37
    %p39 = scmp.ne.s32.totalorder %s25, %s26
    %p40 = scmp.eq.s32.totalorder %s18, 1
    %p41 = por %p39, %p40
    %p43 = scmp.ne.s32.totalorder %s26, %s42
    %p44 = scmp.eq.s32.totalorder %s18, 0
    %p45 = por %p43, %p44
    %s47 = sadd.s32 %s46, 1
    %p50 = scmp.eq.s32.totalorder %s12, 1
    %p51 = scmp.ne.s32.totalorder %s46, %s48
    %p52 = scmp.eq.s32.totalorder %s12, 0
    %p53 = por %p51, %p52
    %p54 = scmp.ne.s32.totalorder %s46, %s48
    %p55 = scmp.eq.s32.totalorder %s17, 1
    %p56 = por %p54, %p55
    %p57 = scmp.ne.s32.totalorder %s48, %s49
    %p58 = scmp.eq.s32.totalorder %s17, 0
    %p59 = por %p57, %p58
    %p60 = scmp.ne.s32.totalorder %s48, %s49
    %p61 = scmp.eq.s32.totalorder %s18, 1
    %p62 = por %p60, %p61
    %p64 = scmp.ne.s32.totalorder %s49, %s63
    %p65 = scmp.eq.s32.totalorder %s18, 0
    %p66 = por %p64, %p65
    %s68 = sadd.s32 %s67, 1
    %p71 = scmp.eq.s32.totalorder %s12, 1
    %p72 = scmp.ne.s32.totalorder %s67, %s69
    %p73 = scmp.eq.s32.totalorder %s12, 0
    %p74 = por %p72, %p73
    %p75 = scmp.ne.s32.totalorder %s67, %s69
    %p76 = scmp.eq.s32.totalorder %s17, 1
    %p77 = por %p75, %p76
    %p78 = scmp.ne.s32.totalorder %s69, %s70
    %p79 = scmp.eq.s32.totalorder %s17, 0
    %p80 = por %p78, %p79
    %p81 = scmp.ne.s32.totalorder %s69, %s70
    %p82 = scmp.eq.s32.totalorder %s18, 1
    %p83 = por %p81, %p82
    %p85 = scmp.ne.s32.totalorder %s70, %s84
    %p86 = scmp.eq.s32.totalorder %s18, 0
    %p87 = por %p85, %p86
    %s88 = ssub.s32 %s12, %s19
    %p89 = scmp.eq.s32.totalorder %s88, 0
    %s91 = sadd.s32 %s90, 1
    %s92 = scalar_select %p89, %s90, %s91
    %p95 = pneg %p89
    %p96 = scmp.eq.s32.totalorder %s12, 1
    %p97 = por %p95, %p96
    %p98 = scmp.ne.s32.totalorder %s90, %s93
    %p99 = scmp.eq.s32.totalorder %s12, 0
    %p100 = por %p98, %p99
    %p101 = scmp.ne.s32.totalorder %s90, %s93
    %p102 = scmp.eq.s32.totalorder %s17, 1
    %p103 = por %p101, %p102
    %p104 = scmp.ne.s32.totalorder %s93, %s94
    %p105 = scmp.eq.s32.totalorder %s17, 0
    %p106 = por %p104, %p105
    %p107 = scmp.ne.s32.totalorder %s93, %s94
    %p108 = scmp.eq.s32.totalorder %s18, 1
    %p109 = por %p107, %p108
    %p111 = scmp.ne.s32.totalorder %s94, %s110
    %p112 = scmp.eq.s32.totalorder %s18, 0
    %p113 = por %p111, %p112
    %s114 = ssub.s32 %s12, %s19
    %p115 = scmp.eq.s32.totalorder %s114, 0
    %s117 = sadd.s32 %s116, 1
    %s118 = scalar_select %p115, %s116, %s117
    %p121 = pneg %p115
    %p122 = scmp.eq.s32.totalorder %s12, 1
    %p123 = por %p121, %p122
    %p124 = scmp.ne.s32.totalorder %s116, %s119
    %p125 = scmp.eq.s32.totalorder %s12, 0
    %p126 = por %p124, %p125
    %p127 = scmp.ne.s32.totalorder %s116, %s119
    %p128 = scmp.eq.s32.totalorder %s17, 1
    %p129 = por %p127, %p128
    %p130 = scmp.ne.s32.totalorder %s119, %s120
    %p131 = scmp.eq.s32.totalorder %s17, 0
    %p132 = por %p130, %p131
    %p133 = scmp.ne.s32.totalorder %s119, %s120
    %p134 = scmp.eq.s32.totalorder %s18, 1
    %p135 = por %p133, %p134
    %p137 = scmp.ne.s32.totalorder %s120, %s136
    %p138 = scmp.eq.s32.totalorder %s18, 0
    %p139 = por %p137, %p138
    %s140 = ssub.s32 %s12, %s19
    %p141 = scmp.eq.s32.totalorder %s140, 0
    %s143 = sadd.s32 %s142, 1
    %s144 = scalar_select %p141, %s142, %s143
    %p147 = pneg %p141
    %p148 = scmp.eq.s32.totalorder %s12, 1
    %p149 = por %p147, %p148
    %p150 = scmp.ne.s32.totalorder %s142, %s145
    %p151 = scmp.eq.s32.totalorder %s12, 0
    %p152 = por %p150, %p151
    %p153 = scmp.ne.s32.totalorder %s142, %s145
    %p154 = scmp.eq.s32.totalorder %s17, 1
    %p155 = por %p153, %p154
    %p156 = scmp.ne.s32.totalorder %s145, %s146
    %p157 = scmp.eq.s32.totalorder %s17, 0
    %p158 = por %p156, %p157
    %p159 = scmp.ne.s32.totalorder %s145, %s146
    %p160 = scmp.eq.s32.totalorder %s18, 1
    %p161 = por %p159, %p160
    %p163 = scmp.ne.s32.totalorder %s146, %s162
    %p164 = scmp.eq.s32.totalorder %s18, 0
    %p165 = por %p163, %p164
    %p166 = scmp.le.s32.totalorder 1, %s12
    %p167 = scmp.lt.s32.totalorder %s12, 3
    %p168 = pnand %p166, %p167
    %p169 = pneg %p168
    // Predicated region
    $region9: #{conv_block_2d.4} parent=5 // pred_check
      _
    $region10: #{conv_block_2d.4} parent=5 // pred_check_branch
      %171 = sbr.rel (%p168) target = $region12
    $region11: #{conv_block_2d.4} parent=5 // pred_region
      %s172 = ssub.s32 %s12, 1
      // Predicated region
      $region13: #{conv_block_2d.4} parent=11 // pred_check
        %p173 = pneg %p59
      $region14: #{conv_block_2d.4} parent=11 // pred_check_branch
        %175 = sbr.rel (%p173) target = $region16
      $region15: #{conv_block_2d.4} parent=11 // pred_region
        _
      $region16: #{conv_block_2d.4} parent=11 // pred_fallthru
        _
      // Predicated region
      $region17: #{conv_block_2d.4} parent=11 // pred_check
        %p176 = pneg %p80
      $region18: #{conv_block_2d.4} parent=11 // pred_check_branch
        %178 = sbr.rel (%p176) target = $region20
      $region19: #{conv_block_2d.4} parent=11 // pred_region
        _
      $region20: #{conv_block_2d.4} parent=11 // pred_fallthru
        _
    $region12: #{conv_block_2d.4} parent=5 // pred_fallthru
      _
    %p179 = scmp.lt.s32.totalorder %s12, 2
    // Predicated region
    $region21: #{conv_block_2d.4} parent=5 // pred_check
      %p180 = pneg %p179
    $region22: #{conv_block_2d.4} parent=5 // pred_check_branch
      %182 = sbr.rel (%p180) target = $region24
    $region23: #{conv_block_2d.4} parent=5 // pred_region
      // Predicated region
      $region25: #{conv_block_2d.4} parent=23 // pred_check
        %p183 = pneg %p32
      $region26: #{conv_block_2d.4} parent=23 // pred_check_branch
        %185 = sbr.rel (%p183) target = $region28
      $region27: #{conv_block_2d.4} parent=23 // pred_region
        %p186 = scmp.lt.s32.totalorder %s12, 1
        %s187 = scalar_select %p186, %s12, 1
        %s188 = smul.addr %s187, 54
        %s189 = smul.addr %s188, 4
        %s190 = scalar_lea.vmem %s0, %s189
      $region28: #{conv_block_2d.4} parent=23 // pred_fallthru
        _
    $region24: #{conv_block_2d.4} parent=5 // pred_fallthru
      _
    %p191 = scmp.le.s32.totalorder 1, %s12
    %p192 = scmp.lt.s32.totalorder %s12, 3
    %p193 = pnand %p191, %p192
    %p194 = pneg %p193
    // Predicated region
    $region29: #{conv_block_2d.4} parent=5 // pred_check
      _
    $region30: #{conv_block_2d.4} parent=5 // pred_check_branch
      %196 = sbr.rel (%p193) target = $region32
    $region31: #{conv_block_2d.4} parent=5 // pred_region
      %s197 = ssub.s32 %s12, 1
      %p198 = scmp.lt.s32.totalorder %s17, 1
      %s199 = scalar_select %p198, %s17, 1
      %s200 = smul.addr %s199, 54
      %s201 = smul.addr %s200, 4
      %s202 = scalar_lea.vmem %s0, %s201
      %p203 = pneg %p38
      %p204 = pneg %p35
      %p205 = pneg %p59
      %p206 = pneg %p56
      %p207 = pneg %p80
      %p208 = pneg %p77
      %p209 = pneg %p106
      %p210 = pneg %p103
      %p211 = scmp.lt.s32.totalorder %s17, 1
      %s212 = scalar_select %p211, %s17, 1
      %s213 = smul.addr %s212, 32
      %s214 = smul.addr %s213, 8
      %s215 = scalar_lea.vmem %s3, %s214
      %p216 = pneg %p132
      %p217 = pneg %p129
      %p218 = scmp.lt.s32.totalorder %s17, 1
      %s219 = scalar_select %p218, %s17, 1
      %s220 = scalar_lea.vmem %s4, %s219
      %p221 = pneg %p158
      %p222 = pneg %p155
      %p223 = scmp.lt.s32.totalorder %s17, 1
      %s224 = scalar_select %p223, %s17, 1
      %s225 = scalar_lea.vmem %s5, %s224
      %p226 = scmp.lt.s32.totalorder %s17, 1
      %s227 = scalar_select %p226, %s17, 1
      %s228 = smul.addr %s227, 54
      %s229 = smul.addr %s228, 4
      %s230 = scalar_lea.vmem %s0, %s229
      %p231 = scmp.lt.s32.totalorder %s17, 1
      %s232 = scalar_select %p231, %s17, 1
      %s233 = smul.addr %s232, 32
      %s234 = smul.addr %s233, 8
      %s235 = scalar_lea.vmem %s3, %s234
      %p236 = scmp.lt.s32.totalorder %s17, 1
      %s237 = scalar_select %p236, %s17, 1
      %s238 = scalar_lea.vmem %s4, %s237
      %p239 = scmp.lt.s32.totalorder %s17, 1
      %s240 = scalar_select %p239, %s17, 1
      %s241 = scalar_lea.vmem %s5, %s240
      %v243 = vld [vmem:[%s230] sm:$0xf]
      %v244 = vld [vmem:[%s230 + $0x4] sm:$0xf]
      %v245 = vld [vmem:[%s230 + $0x8] sm:$0x1]
      %v246 = vld [vmem:[%s230 + $0xc] sm:$0xf]
      %v247 = vld [vmem:[%s230 + $0x10] sm:$0xf]
      %v248 = vld [vmem:[%s230 + $0x14] sm:$0x1]
      %v249 = vld [vmem:[%s230 + $0x18] sm:$0xf]
      %v250 = vld [vmem:[%s230 + $0x1c] sm:$0xf]
      %v251 = vld [vmem:[%s230 + $0x20] sm:$0x1]
      %v252 = vld [vmem:[%s230 + $0x24] sm:$0xf]
      %v253 = vld [vmem:[%s230 + $0x28] sm:$0xf]
      %v254 = vld [vmem:[%s230 + $0x2c] sm:$0x1]
      %v255 = vld [vmem:[%s230 + $0x30] sm:$0xf]
      %v256 = vld [vmem:[%s230 + $0x34] sm:$0xf]
      %v257 = vld [vmem:[%s230 + $0x38] sm:$0x1]
      %v258 = vld [vmem:[%s230 + $0x3c] sm:$0xf]
      %v259 = vld [vmem:[%s230 + $0x40] sm:$0xf]
      %v260 = vld [vmem:[%s230 + $0x44] sm:$0x1]
      %v261 = vld [vmem:[%s230 + $0x48] sm:$0xf]
      %v262 = vld [vmem:[%s230 + $0x4c] sm:$0xf]
      %v263 = vld [vmem:[%s230 + $0x50] sm:$0x1]
      %v264 = vld [vmem:[%s230 + $0x54] sm:$0xf]
      %v265 = vld [vmem:[%s230 + $0x58] sm:$0xf]
      %v266 = vld [vmem:[%s230 + $0x5c] sm:$0x1]
      %v267 = vld [vmem:[%s230 + $0x60] sm:$0xf]
      %v268 = vld [vmem:[%s230 + $0x64] sm:$0xf]
      %v269 = vld [vmem:[%s230 + $0x68] sm:$0x1]
      %v270 = vld [vmem:[%s230 + $0x6c] sm:$0xf]
      %v271 = vld [vmem:[%s230 + $0x70] sm:$0xf]
      %v272 = vld [vmem:[%s230 + $0x74] sm:$0x1]
      %v273 = vld [vmem:[%s230 + $0x78] sm:$0xf]
      %v274 = vld [vmem:[%s230 + $0x7c] sm:$0xf]
      %v275 = vld [vmem:[%s230 + $0x80] sm:$0x1]
      %v276 = vld [vmem:[%s230 + $0x84] sm:$0xf]
      %v277 = vld [vmem:[%s230 + $0x88] sm:$0xf]
      %v278 = vld [vmem:[%s230 + $0x8c] sm:$0x1]
      %v279 = vld [vmem:[%s230 + $0x90] sm:$0xf]
      %v280 = vld [vmem:[%s230 + $0x94] sm:$0xf]
      %v281 = vld [vmem:[%s230 + $0x98] sm:$0x1]
      %v282 = vld [vmem:[%s230 + $0x9c] sm:$0xf]
      %v283 = vld [vmem:[%s230 + $0xa0] sm:$0xf]
      %v284 = vld [vmem:[%s230 + $0xa4] sm:$0x1]
      %v285 = vld [vmem:[%s230 + $0xa8] sm:$0xf]
      %v286 = vld [vmem:[%s230 + $0xac] sm:$0xf]
      %v287 = vld [vmem:[%s230 + $0xb0] sm:$0x1]
      %v288 = vld [vmem:[%s230 + $0xb4] sm:$0xf]
      %v289 = vld [vmem:[%s230 + $0xb8] sm:$0xf]
      %v290 = vld [vmem:[%s230 + $0xbc] sm:$0x1]
      %v291 = vld [vmem:[%s230 + $0xc0] sm:$0xf]
      %v292 = vld [vmem:[%s230 + $0xc4] sm:$0xf]
      %v293 = vld [vmem:[%s230 + $0xc8] sm:$0x1]
      %v294 = vld [vmem:[%s230 + $0xcc] sm:$0xf]
      %v295 = vld [vmem:[%s230 + $0xd0] sm:$0xf]
      %v296 = vld [vmem:[%s230 + $0xd4] sm:$0x1]
      %v297 = vunpack.c.l.bf16 %v243
      %v298 = vunpack.c.l.bf16 %v244
      %v299 = vunpack.c.l.bf16 %v245
      %v300 = vunpack.c.l.bf16 %v246
      %v301 = vunpack.c.l.bf16 %v247
      %v302 = vunpack.c.l.bf16 %v248
      %v303 = vunpack.c.l.bf16 %v249
      %v304 = vunpack.c.l.bf16 %v250
      %v305 = vunpack.c.l.bf16 %v251
      %v306 = vunpack.c.l.bf16 %v252
      %v307 = vunpack.c.l.bf16 %v253
      %v308 = vunpack.c.l.bf16 %v254
      %v309 = vunpack.c.l.bf16 %v255
      %v310 = vunpack.c.l.bf16 %v256
      %v311 = vunpack.c.l.bf16 %v257
      %v312 = vunpack.c.l.bf16 %v258
      %v313 = vunpack.c.l.bf16 %v259
      %v314 = vunpack.c.l.bf16 %v260
      %v315 = vunpack.c.l.bf16 %v261
      %v316 = vunpack.c.l.bf16 %v262
      %v317 = vunpack.c.l.bf16 %v263
      %v318 = vunpack.c.l.bf16 %v264
      %v319 = vunpack.c.l.bf16 %v265
      %v320 = vunpack.c.l.bf16 %v266
      %v321 = vunpack.c.l.bf16 %v267
      %v322 = vunpack.c.l.bf16 %v268
      %v323 = vunpack.c.l.bf16 %v269
      %v324 = vunpack.c.l.bf16 %v270
      %v325 = vunpack.c.l.bf16 %v271
      %v326 = vunpack.c.l.bf16 %v272
      %v327 = vunpack.c.l.bf16 %v273
      %v328 = vunpack.c.l.bf16 %v274
      %v329 = vunpack.c.l.bf16 %v275
      %v330 = vunpack.c.l.bf16 %v276
      %v331 = vunpack.c.l.bf16 %v277
      %v332 = vunpack.c.l.bf16 %v278
      %v333 = vunpack.c.l.bf16 %v279
      %v334 = vunpack.c.l.bf16 %v280
      %v335 = vunpack.c.l.bf16 %v281
      %v336 = vunpack.c.l.bf16 %v282
      %v337 = vunpack.c.l.bf16 %v283
      %v338 = vunpack.c.l.bf16 %v284
      %v339 = vunpack.c.l.bf16 %v285
      %v340 = vunpack.c.l.bf16 %v286
      %v341 = vunpack.c.l.bf16 %v287
      %v342 = vunpack.c.l.bf16 %v288
      %v343 = vunpack.c.l.bf16 %v289
      %v344 = vunpack.c.l.bf16 %v290
      %v345 = vunpack.c.l.bf16 %v291
      %v346 = vunpack.c.l.bf16 %v292
      %v347 = vunpack.c.l.bf16 %v293
      %v348 = vunpack.c.l.bf16 %v294
      %v349 = vunpack.c.l.bf16 %v295
      %v350 = vunpack.c.l.bf16 %v296
      %vm399 = vcmask 1046528
      %v400 = vrot.slane %v297, 1
      %v401 = vrot.slane %v298, 1
      %v402 = vsel %vm399, %v400, %v401
      %v403 = vrot.slane %v299, 1
      %v404 = vsel %vm399, %v401, %v403
      %v405 = vrot.slane %v300, 1
      %v406 = vrot.slane %v301, 1
      %v407 = vsel %vm399, %v405, %v406
      %v408 = vrot.slane %v302, 1
      %v409 = vsel %vm399, %v406, %v408
      %v410 = vrot.slane %v303, 1
      %v411 = vrot.slane %v304, 1
      %v412 = vsel %vm399, %v410, %v411
      %v413 = vrot.slane %v305, 1
      %v414 = vsel %vm399, %v411, %v413
      %v415 = vrot.slane %v306, 1
      %v416 = vrot.slane %v307, 1
      %v417 = vsel %vm399, %v415, %v416
      %v418 = vrot.slane %v308, 1
      %v419 = vsel %vm399, %v416, %v418
      %v420 = vrot.slane %v309, 1
      %v421 = vrot.slane %v310, 1
      %v422 = vsel %vm399, %v420, %v421
      %v423 = vrot.slane %v311, 1
      %v424 = vsel %vm399, %v421, %v423
      %v425 = vrot.slane %v312, 1
      %v426 = vrot.slane %v313, 1
      %v427 = vsel %vm399, %v425, %v426
      %v428 = vrot.slane %v314, 1
      %v429 = vsel %vm399, %v426, %v428
      %v430 = vrot.slane %v315, 1
      %v431 = vrot.slane %v316, 1
      %v432 = vsel %vm399, %v430, %v431
      %v433 = vrot.slane %v317, 1
      %v434 = vsel %vm399, %v431, %v433
      %v435 = vrot.slane %v318, 1
      %v436 = vrot.slane %v319, 1
      %v437 = vsel %vm399, %v435, %v436
      %v438 = vrot.slane %v320, 1
      %v439 = vsel %vm399, %v436, %v438
      %v440 = vrot.slane %v321, 1
      %v441 = vrot.slane %v322, 1
      %v442 = vsel %vm399, %v440, %v441
      %v443 = vrot.slane %v323, 1
      %v444 = vsel %vm399, %v441, %v443
      %v445 = vrot.slane %v324, 1
      %v446 = vrot.slane %v325, 1
      %v447 = vsel %vm399, %v445, %v446
      %v448 = vrot.slane %v326, 1
      %v449 = vsel %vm399, %v446, %v448
      %v450 = vrot.slane %v327, 1
      %v451 = vrot.slane %v328, 1
      %v452 = vsel %vm399, %v450, %v451
      %v453 = vrot.slane %v329, 1
      %v454 = vsel %vm399, %v451, %v453
      %v455 = vrot.slane %v330, 1
      %v456 = vrot.slane %v331, 1
      %v457 = vsel %vm399, %v455, %v456
      %v458 = vrot.slane %v332, 1
      %v459 = vsel %vm399, %v456, %v458
      %v460 = vrot.slane %v333, 1
      %v461 = vrot.slane %v334, 1
      %v462 = vsel %vm399, %v460, %v461
      %v463 = vrot.slane %v335, 1
      %v464 = vsel %vm399, %v461, %v463
      %v465 = vrot.slane %v336, 1
      %v466 = vrot.slane %v337, 1
      %v467 = vsel %vm399, %v465, %v466
      %v468 = vrot.slane %v338, 1
      %v469 = vsel %vm399, %v466, %v468
      %v470 = vrot.slane %v339, 1
      %v471 = vrot.slane %v340, 1
      %v472 = vsel %vm399, %v470, %v471
      %v473 = vrot.slane %v341, 1
      %v474 = vsel %vm399, %v471, %v473
      %v475 = vrot.slane %v342, 1
      %v476 = vrot.slane %v343, 1
      %v477 = vsel %vm399, %v475, %v476
      %v478 = vrot.slane %v344, 1
      %v479 = vsel %vm399, %v476, %v478
      %vm512 = vcmask 1045504
      %v513 = vrot.slane %v297, 2
      %v514 = vrot.slane %v298, 2
      %v515 = vsel %vm512, %v513, %v514
      %v516 = vrot.slane %v299, 2
      %v517 = vsel %vm512, %v514, %v516
      %v518 = vrot.slane %v300, 2
      %v519 = vrot.slane %v301, 2
      %v520 = vsel %vm512, %v518, %v519
      %v521 = vrot.slane %v302, 2
      %v522 = vsel %vm512, %v519, %v521
      %v523 = vrot.slane %v303, 2
      %v524 = vrot.slane %v304, 2
      %v525 = vsel %vm512, %v523, %v524
      %v526 = vrot.slane %v305, 2
      %v527 = vsel %vm512, %v524, %v526
      %v528 = vrot.slane %v306, 2
      %v529 = vrot.slane %v307, 2
      %v530 = vsel %vm512, %v528, %v529
      %v531 = vrot.slane %v308, 2
      %v532 = vsel %vm512, %v529, %v531
      %v533 = vrot.slane %v309, 2
      %v534 = vrot.slane %v310, 2
      %v535 = vsel %vm512, %v533, %v534
      %v536 = vrot.slane %v311, 2
      %v537 = vsel %vm512, %v534, %v536
      %v538 = vrot.slane %v312, 2
      %v539 = vrot.slane %v313, 2
      %v540 = vsel %vm512, %v538, %v539
      %v541 = vrot.slane %v314, 2
      %v542 = vsel %vm512, %v539, %v541
      %v543 = vrot.slane %v315, 2
      %v544 = vrot.slane %v316, 2
      %v545 = vsel %vm512, %v543, %v544
      %v546 = vrot.slane %v317, 2
      %v547 = vsel %vm512, %v544, %v546
      %v548 = vrot.slane %v318, 2
      %v549 = vrot.slane %v319, 2
      %v550 = vsel %vm512, %v548, %v549
      %v551 = vrot.slane %v320, 2
      %v552 = vsel %vm512, %v549, %v551
      %v553 = vrot.slane %v321, 2
      %v554 = vrot.slane %v322, 2
      %v555 = vsel %vm512, %v553, %v554
      %v556 = vrot.slane %v323, 2
      %v557 = vsel %vm512, %v554, %v556
      %v558 = vrot.slane %v324, 2
      %v559 = vrot.slane %v325, 2
      %v560 = vsel %vm512, %v558, %v559
      %v561 = vrot.slane %v326, 2
      %v562 = vsel %vm512, %v559, %v561
      %v563 = vrot.slane %v327, 2
      %v564 = vrot.slane %v328, 2
      %v565 = vsel %vm512, %v563, %v564
      %v566 = vrot.slane %v329, 2
      %v567 = vsel %vm512, %v564, %v566
      %v568 = vrot.slane %v330, 2
      %v569 = vrot.slane %v331, 2
      %v570 = vsel %vm512, %v568, %v569
      %v571 = vrot.slane %v332, 2
      %v572 = vsel %vm512, %v569, %v571
      %v573 = vrot.slane %v333, 2
      %v574 = vrot.slane %v334, 2
      %v575 = vsel %vm512, %v573, %v574
      %v576 = vrot.slane %v335, 2
      %v577 = vsel %vm512, %v574, %v576
      %v578 = vrot.slane %v336, 2
      %v579 = vrot.slane %v337, 2
      %v580 = vsel %vm512, %v578, %v579
      %v581 = vrot.slane %v338, 2
      %v582 = vsel %vm512, %v579, %v581
      %v583 = vrot.slane %v339, 2
      %v584 = vrot.slane %v340, 2
      %v585 = vsel %vm512, %v583, %v584
      %v586 = vrot.slane %v341, 2
      %v587 = vsel %vm512, %v584, %v586
      %v588 = vrot.slane %v342, 2
      %v589 = vrot.slane %v343, 2
      %v590 = vsel %vm512, %v588, %v589
      %v591 = vrot.slane %v344, 2
      %v592 = vsel %vm512, %v589, %v591
      %v628 = vrot.slane %v345, 1
      %v629 = vrot.slane %v346, 1
      %v630 = vsel %vm399, %v628, %v629
      %v631 = vrot.slane %v347, 1
      %v632 = vsel %vm399, %v629, %v631
      %v635 = vrot.slane %v345, 2
      %v636 = vrot.slane %v346, 2
      %v637 = vsel %vm512, %v635, %v636
      %v638 = vrot.slane %v347, 2
      %v639 = vsel %vm512, %v636, %v638
      %v645 = vrot.slane %v348, 1
      %v646 = vrot.slane %v349, 1
      %v647 = vsel %vm399, %v645, %v646
      %v648 = vrot.slane %v350, 1
      %v649 = vsel %vm399, %v646, %v648
      %v652 = vrot.slane %v348, 2
      %v653 = vrot.slane %v349, 2
      %v654 = vsel %vm512, %v652, %v653
      %v655 = vrot.slane %v350, 2
      %v656 = vsel %vm512, %v653, %v655
      %v659 = vpack.c.bf16 %v298, %v297
      %v660 = vpack.c.bf16 %v404, %v402
      %v661 = vpack.c.bf16 %v517, %v515
      %v662 = vpack.c.bf16 %v301, %v300
      %v663 = vpack.c.bf16 %v409, %v407
      %v664 = vpack.c.bf16 %v522, %v520
      %v665 = vpack.c.bf16 %v304, %v303
      %v666 = vpack.c.bf16 %v414, %v412
      %v667 = vpack.c.bf16 %v527, %v525
      %v668 = vpack.c.bf16 %v307, %v306
      %v669 = vpack.c.bf16 %v419, %v417
      %v670 = vpack.c.bf16 %v532, %v530
      %v671 = vpack.c.bf16 %v310, %v309
      %v672 = vpack.c.bf16 %v424, %v422
      %v673 = vpack.c.bf16 %v537, %v535
      %v674 = vpack.c.bf16 %v313, %v312
      %v675 = vpack.c.bf16 %v429, %v427
      %v676 = vpack.c.bf16 %v542, %v540
      %v677 = vpack.c.bf16 %v316, %v315
      %v678 = vpack.c.bf16 %v434, %v432
      %v679 = vpack.c.bf16 %v547, %v545
      %v680 = vpack.c.bf16 %v319, %v318
      %v681 = vpack.c.bf16 %v439, %v437
      %v682 = vpack.c.bf16 %v552, %v550
      %v683 = vpack.c.bf16 %v322, %v321
      %v684 = vpack.c.bf16 %v444, %v442
      %v685 = vpack.c.bf16 %v557, %v555
      %v686 = vpack.c.bf16 %v325, %v324
      %v687 = vpack.c.bf16 %v449, %v447
      %v688 = vpack.c.bf16 %v562, %v560
      %v689 = vpack.c.bf16 %v328, %v327
      %v690 = vpack.c.bf16 %v454, %v452
      %v691 = vpack.c.bf16 %v567, %v565
      %v692 = vpack.c.bf16 %v331, %v330
      %v693 = vpack.c.bf16 %v459, %v457
      %v694 = vpack.c.bf16 %v572, %v570
      %v695 = vpack.c.bf16 %v334, %v333
      %v696 = vpack.c.bf16 %v464, %v462
      %v697 = vpack.c.bf16 %v577, %v575
      %v698 = vpack.c.bf16 %v337, %v336
      %v699 = vpack.c.bf16 %v469, %v467
      %v700 = vpack.c.bf16 %v582, %v580
      %v701 = vpack.c.bf16 %v340, %v339
      %v702 = vpack.c.bf16 %v474, %v472
      %v703 = vpack.c.bf16 %v587, %v585
      %v704 = vpack.c.bf16 %v343, %v342
      %v705 = vpack.c.bf16 %v479, %v477
      %v706 = vpack.c.bf16 %v592, %v590
      %v707 = vpack.c.bf16 %v346, %v345
      %v708 = vpack.c.bf16 %v632, %v630
      %v709 = vpack.c.bf16 %v639, %v637
      %v710 = vpack.c.bf16 %v349, %v348
      %v711 = vpack.c.bf16 %v649, %v647
      %v712 = vpack.c.bf16 %v656, %v654
      %v713 = vld [vmem:[%s1] sm:$0xf]
      %v714 = vld [vmem:[%s1 + $0x4] sm:$0xf]
      %v715 = vld [vmem:[%s1 + $0x8] sm:$0xf]
      %v716 = vld [vmem:[%s1 + $0xc] sm:$0xf]
      %v717 = vld [vmem:[%s1 + $0x10] sm:$0xf]
      %v718 = vld [vmem:[%s1 + $0x14] sm:$0xf]
      %v719 = vld [vmem:[%s1 + $0x18] sm:$0xf]
      %v720 = vld [vmem:[%s1 + $0x1c] sm:$0xf]
      %v721 = vld [vmem:[%s1 + $0x20] sm:$0xf]
      %v722 = vld [vmem:[%s1 + $0x24] sm:$0xf]
      %v723 = vld [vmem:[%s1 + $0x28] sm:$0xf]
      %v724 = vld [vmem:[%s1 + $0x2c] sm:$0xf]
      %v725 = vld [vmem:[%s1 + $0x30] sm:$0xf]
      %v726 = vld [vmem:[%s1 + $0x34] sm:$0xf]
      %v727 = vld [vmem:[%s1 + $0x38] sm:$0xf]
      %v728 = vld [vmem:[%s1 + $0x3c] sm:$0xf]
      %v729 = vld [vmem:[%s1 + $0x40] sm:$0xf]
      %v730 = vld [vmem:[%s1 + $0x44] sm:$0xf]
      %v731 = vld [vmem:[%s1 + $0x48] sm:$0xf]
      %v732 = vld [vmem:[%s1 + $0x4c] sm:$0xf]
      %v733 = vld [vmem:[%s1 + $0x50] sm:$0xf]
      %v734 = vld [vmem:[%s1 + $0x54] sm:$0xf]
      %v735 = vld [vmem:[%s1 + $0x58] sm:$0xf]
      %v736 = vld [vmem:[%s1 + $0x5c] sm:$0xf]
      %v737 = vld [vmem:[%s1 + $0x60] sm:$0xf]
      %v738 = vld [vmem:[%s1 + $0x64] sm:$0xf]
      %v739 = vld [vmem:[%s1 + $0x68] sm:$0xf]
      %v740 = vld [vmem:[%s1 + $0x6c] sm:$0xf]
      %v741 = vld [vmem:[%s1 + $0x70] sm:$0xf]
      %v742 = vld [vmem:[%s1 + $0x74] sm:$0xf]
      %v743 = vld [vmem:[%s1 + $0x78] sm:$0xf]
      %v744 = vld [vmem:[%s1 + $0x7c] sm:$0xf]
      %v745 = vld [vmem:[%s1 + $0x80] sm:$0xf]
      %v746 = vld [vmem:[%s1 + $0x84] sm:$0xf]
      %v747 = vld [vmem:[%s1 + $0x88] sm:$0xf]
      %v748 = vld [vmem:[%s1 + $0x8c] sm:$0xf]
      %v749 = vld [vmem:[%s1 + $0x90] sm:$0xf]
      %v750 = vld [vmem:[%s1 + $0x94] sm:$0xf]
      %v751 = vld [vmem:[%s1 + $0x98] sm:$0xf]
      %v752 = vld [vmem:[%s1 + $0x9c] sm:$0xf]
      %v753 = vld [vmem:[%s1 + $0xa0] sm:$0xf]
      %v754 = vld [vmem:[%s1 + $0xa4] sm:$0xf]
      %v755 = vld [vmem:[%s1 + $0xa8] sm:$0xf]
      %v756 = vld [vmem:[%s1 + $0xac] sm:$0xf]
      %v757 = vld [vmem:[%s1 + $0xb0] sm:$0xf]
      %v758 = vld [vmem:[%s1 + $0xb4] sm:$0xf]
      %v759 = vld [vmem:[%s1 + $0xb8] sm:$0xf]
      %v760 = vld [vmem:[%s1 + $0xbc] sm:$0xf]
      %v761 = vld [vmem:[%s1 + $0xc0] sm:$0xf]
      %v762 = vld [vmem:[%s1 + $0xc4] sm:$0xf]
      %v763 = vld [vmem:[%s1 + $0xc8] sm:$0xf]
      %v764 = vld [vmem:[%s1 + $0xcc] sm:$0xf]
      %v765 = vld [vmem:[%s1 + $0xd0] sm:$0xf]
      %v766 = vld [vmem:[%s1 + $0xd4] sm:$0xf]
      %v767 = vld [vmem:[%s1 + $0xd8] sm:$0xf]
      %v768 = vld [vmem:[%s1 + $0xdc] sm:$0xf]
      %v769 = vld [vmem:[%s1 + $0xe0] sm:$0xf]
      %v770 = vld [vmem:[%s1 + $0xe4] sm:$0xf]
      %v771 = vld [vmem:[%s1 + $0xe8] sm:$0xf]
      %v772 = vld [vmem:[%s1 + $0xec] sm:$0xf]
      %v773 = vld [vmem:[%s1 + $0xf0] sm:$0xf]
      %v774 = vld [vmem:[%s1 + $0xf4] sm:$0xf]
      %v775 = vld [vmem:[%s1 + $0xf8] sm:$0xf]
      %v776 = vld [vmem:[%s1 + $0xfc] sm:$0xf]
      %v777 = vld [vmem:[%s1 + $0x100] sm:$0xf]
      %v778 = vld [vmem:[%s1 + $0x104] sm:$0xf]
      %v779 = vld [vmem:[%s1 + $0x108] sm:$0xf]
      %v780 = vld [vmem:[%s1 + $0x10c] sm:$0xf]
      %v781 = vld [vmem:[%s1 + $0x110] sm:$0xf]
      %v782 = vld [vmem:[%s1 + $0x114] sm:$0xf]
      %v783 = vld [vmem:[%s1 + $0x118] sm:$0xf]
      %v784 = vld [vmem:[%s1 + $0x11c] sm:$0xf]
      %v785 = vld [vmem:[%s1 + $0x120] sm:$0xf]
      %v786 = vld [vmem:[%s1 + $0x124] sm:$0xf]
      %v787 = vld [vmem:[%s1 + $0x128] sm:$0xf]
      %v788 = vld [vmem:[%s1 + $0x12c] sm:$0xf]
      %v789 = vld [vmem:[%s1 + $0x130] sm:$0xf]
      %v790 = vld [vmem:[%s1 + $0x134] sm:$0xf]
      %v791 = vld [vmem:[%s1 + $0x138] sm:$0xf]
      %v792 = vld [vmem:[%s1 + $0x13c] sm:$0xf]
      %v793 = vld [vmem:[%s1 + $0x140] sm:$0xf]
      %v794 = vld [vmem:[%s1 + $0x144] sm:$0xf]
      %v795 = vld [vmem:[%s1 + $0x148] sm:$0xf]
      %v796 = vld [vmem:[%s1 + $0x14c] sm:$0xf]
      %v797 = vld [vmem:[%s1 + $0x150] sm:$0xf]
      %v798 = vld [vmem:[%s1 + $0x154] sm:$0xf]
      %v799 = vld [vmem:[%s1 + $0x158] sm:$0xf]
      %v800 = vld [vmem:[%s1 + $0x15c] sm:$0xf]
      %v801 = vld [vmem:[%s1 + $0x160] sm:$0xf]
      %v802 = vld [vmem:[%s1 + $0x164] sm:$0xf]
      %v803 = vld [vmem:[%s1 + $0x168] sm:$0xf]
      %v804 = vld [vmem:[%s1 + $0x16c] sm:$0xf]
      %v805 = vld [vmem:[%s1 + $0x170] sm:$0xf]
      %v806 = vld [vmem:[%s1 + $0x174] sm:$0xf]
      %v807 = vld [vmem:[%s1 + $0x178] sm:$0xf]
      %v808 = vld [vmem:[%s1 + $0x17c] sm:$0xf]
      %v809 = vld [vmem:[%s1 + $0x180] sm:$0xf]
      %v810 = vld [vmem:[%s1 + $0x184] sm:$0xf]
      %v811 = vld [vmem:[%s1 + $0x188] sm:$0xf]
      %v812 = vld [vmem:[%s1 + $0x18c] sm:$0xf]
      %v813 = vld [vmem:[%s1 + $0x190] sm:$0xf]
      %v814 = vld [vmem:[%s1 + $0x194] sm:$0xf]
      %v815 = vld [vmem:[%s1 + $0x198] sm:$0xf]
      %v816 = vld [vmem:[%s1 + $0x19c] sm:$0xf]
      %v817 = vld [vmem:[%s1 + $0x1a0] sm:$0xf]
      %v818 = vld [vmem:[%s1 + $0x1a4] sm:$0xf]
      %v819 = vld [vmem:[%s1 + $0x1a8] sm:$0xf]
      %v820 = vld [vmem:[%s1 + $0x1ac] sm:$0xf]
      %v821 = vld [vmem:[%s1 + $0x1b0] sm:$0xf]
      %v822 = vld [vmem:[%s1 + $0x1b4] sm:$0xf]
      %v823 = vld [vmem:[%s1 + $0x1b8] sm:$0xf]
      %v824 = vld [vmem:[%s1 + $0x1bc] sm:$0xf]
      %v825 = vld [vmem:[%s1 + $0x1c0] sm:$0xf]
      %v826 = vld [vmem:[%s1 + $0x1c4] sm:$0xf]
      %v827 = vld [vmem:[%s1 + $0x1c8] sm:$0xf]
      %v828 = vld [vmem:[%s1 + $0x1cc] sm:$0xf]
      %v829 = vld [vmem:[%s1 + $0x1d0] sm:$0xf]
      %v830 = vld [vmem:[%s1 + $0x1d4] sm:$0xf]
      %v831 = vld [vmem:[%s1 + $0x1d8] sm:$0xf]
      %v832 = vld [vmem:[%s1 + $0x1dc] sm:$0xf]
      %v833 = vld [vmem:[%s1 + $0x1e0] sm:$0xf]
      %v834 = vld [vmem:[%s1 + $0x1e4] sm:$0xf]
      %v835 = vld [vmem:[%s1 + $0x1e8] sm:$0xf]
      %v836 = vld [vmem:[%s1 + $0x1ec] sm:$0xf]
      %v837 = vld [vmem:[%s1 + $0x1f0] sm:$0xf]
      %v838 = vld [vmem:[%s1 + $0x1f4] sm:$0xf]
      %v839 = vld [vmem:[%s1 + $0x1f8] sm:$0xf]
      %v840 = vld [vmem:[%s1 + $0x1fc] sm:$0xf]
      %v841 = vld [vmem:[%s1 + $0x200] sm:$0xf]
      %v842 = vld [vmem:[%s1 + $0x204] sm:$0xf]
      %v843 = vld [vmem:[%s1 + $0x208] sm:$0xf]
      %v844 = vld [vmem:[%s1 + $0x20c] sm:$0xf]
      %v845 = vld [vmem:[%s1 + $0x210] sm:$0xf]
      %v846 = vld [vmem:[%s1 + $0x214] sm:$0xf]
      %v847 = vld [vmem:[%s1 + $0x218] sm:$0xf]
      %v848 = vld [vmem:[%s1 + $0x21c] sm:$0xf]
      %v849 = vld [vmem:[%s1 + $0x220] sm:$0xf]
      %v850 = vld [vmem:[%s1 + $0x224] sm:$0xf]
      %v851 = vld [vmem:[%s1 + $0x228] sm:$0xf]
      %v852 = vld [vmem:[%s1 + $0x22c] sm:$0xf]
      %v853 = vld [vmem:[%s1 + $0x230] sm:$0xf]
      %v854 = vld [vmem:[%s1 + $0x234] sm:$0xf]
      %v855 = vld [vmem:[%s1 + $0x238] sm:$0xf]
      %v856 = vld [vmem:[%s1 + $0x23c] sm:$0xf]
      %v857 = vld [vmem:[%s2] sm:$0x1]
      %v859 = vlaneseq
      %v860 = vshrl.u32 %v859, 7
      %v861 = vsub.s32 0, %v860
      %v862 = vrot.slane %v857, %v861
      %v1008 = vunpack.c.l.b16 %v713
      %v1009 = vunpack.c.l.b16 %v714
      %v1010 = vunpack.c.l.b16 %v715
      %v1011 = vunpack.c.l.b16 %v716
      %v1012 = vunpack.c.l.b16 %v717
      %v1013 = vunpack.c.l.b16 %v718
      %v1014 = vunpack.c.l.b16 %v719
      %v1015 = vunpack.c.l.b16 %v720
      %v1016 = vunpack.c.l.b16 %v721
      %v1017 = vunpack.c.l.b16 %v722
      %v1018 = vunpack.c.l.b16 %v723
      %v1019 = vunpack.c.l.b16 %v724
      %v1020 = vunpack.c.l.b16 %v725
      %v1021 = vunpack.c.l.b16 %v726
      %v1022 = vunpack.c.l.b16 %v727
      %v1023 = vunpack.c.l.b16 %v728
      %v1024 = vunpack.c.l.b16 %v729
      %v1025 = vunpack.c.l.b16 %v730
      %v1026 = vunpack.c.l.b16 %v731
      %v1027 = vunpack.c.l.b16 %v732
      %v1028 = vunpack.c.l.b16 %v733
      %v1029 = vunpack.c.l.b16 %v734
      %v1030 = vunpack.c.l.b16 %v735
      %v1031 = vunpack.c.l.b16 %v736
      %v1032 = vunpack.c.l.b16 %v737
      %v1033 = vunpack.c.l.b16 %v738
      %v1034 = vunpack.c.l.b16 %v739
      %v1035 = vunpack.c.l.b16 %v740
      %v1036 = vunpack.c.l.b16 %v741
      %v1037 = vunpack.c.l.b16 %v742
      %v1038 = vunpack.c.l.b16 %v743
      %v1039 = vunpack.c.l.b16 %v744
      %v1040 = vunpack.c.l.b16 %v745
      %v1041 = vunpack.c.l.b16 %v746
      %v1042 = vunpack.c.l.b16 %v747
      %v1043 = vunpack.c.l.b16 %v748
      %v1044 = vunpack.c.l.b16 %v749
      %v1045 = vunpack.c.l.b16 %v750
      %v1046 = vunpack.c.l.b16 %v751
      %v1047 = vunpack.c.l.b16 %v752
      %v1048 = vunpack.c.l.b16 %v753
      %v1049 = vunpack.c.l.b16 %v754
      %v1050 = vunpack.c.l.b16 %v755
      %v1051 = vunpack.c.l.b16 %v756
      %v1052 = vunpack.c.l.b16 %v757
      %v1053 = vunpack.c.l.b16 %v758
      %v1054 = vunpack.c.l.b16 %v759
      %v1055 = vunpack.c.l.b16 %v760
      %v1056 = vunpack.c.l.b16 %v761
      %v1057 = vunpack.c.l.b16 %v762
      %v1058 = vunpack.c.l.b16 %v763
      %v1059 = vunpack.c.l.b16 %v764
      %v1060 = vunpack.c.l.b16 %v765
      %v1061 = vunpack.c.l.b16 %v766
      %v1062 = vunpack.c.l.b16 %v767
      %v1063 = vunpack.c.l.b16 %v768
      %v1064 = vunpack.c.l.b16 %v769
      %v1065 = vunpack.c.l.b16 %v770
      %v1066 = vunpack.c.l.b16 %v771
      %v1067 = vunpack.c.l.b16 %v772
      %v1068 = vunpack.c.l.b16 %v773
      %v1069 = vunpack.c.l.b16 %v774
      %v1070 = vunpack.c.l.b16 %v775
      %v1071 = vunpack.c.l.b16 %v776
      %v1072 = vunpack.c.l.b16 %v777
      %v1073 = vunpack.c.l.b16 %v778
      %v1074 = vunpack.c.l.b16 %v779
      %v1075 = vunpack.c.l.b16 %v780
      %v1076 = vunpack.c.l.b16 %v781
      %v1077 = vunpack.c.l.b16 %v782
      %v1078 = vunpack.c.l.b16 %v783
      %v1079 = vunpack.c.l.b16 %v784
      %v1080 = vunpack.c.l.b16 %v785
      %v1081 = vunpack.c.l.b16 %v786
      %v1082 = vunpack.c.l.b16 %v787
      %v1083 = vunpack.c.l.b16 %v788
      %v1084 = vunpack.c.l.b16 %v789
      %v1085 = vunpack.c.l.b16 %v790
      %v1086 = vunpack.c.l.b16 %v791
      %v1087 = vunpack.c.l.b16 %v792
      %v1088 = vunpack.c.l.b16 %v793
      %v1089 = vunpack.c.l.b16 %v794
      %v1090 = vunpack.c.l.b16 %v795
      %v1091 = vunpack.c.l.b16 %v796
      %v1092 = vunpack.c.l.b16 %v797
      %v1093 = vunpack.c.l.b16 %v798
      %v1094 = vunpack.c.l.b16 %v799
      %v1095 = vunpack.c.l.b16 %v800
      %v1096 = vunpack.c.l.b16 %v801
      %v1097 = vunpack.c.l.b16 %v802
      %v1098 = vunpack.c.l.b16 %v803
      %v1099 = vunpack.c.l.b16 %v804
      %v1100 = vunpack.c.l.b16 %v805
      %v1101 = vunpack.c.l.b16 %v806
      %v1102 = vunpack.c.l.b16 %v807
      %v1103 = vunpack.c.l.b16 %v808
      %v1104 = vunpack.c.l.b16 %v809
      %v1105 = vunpack.c.l.b16 %v810
      %v1106 = vunpack.c.l.b16 %v811
      %v1107 = vunpack.c.l.b16 %v812
      %v1108 = vunpack.c.l.b16 %v813
      %v1109 = vunpack.c.l.b16 %v814
      %v1110 = vunpack.c.l.b16 %v815
      %v1111 = vunpack.c.l.b16 %v816
      %v1112 = vunpack.c.l.b16 %v817
      %v1113 = vunpack.c.l.b16 %v818
      %v1114 = vunpack.c.l.b16 %v819
      %v1115 = vunpack.c.l.b16 %v820
      %v1116 = vunpack.c.l.b16 %v821
      %v1117 = vunpack.c.l.b16 %v822
      %v1118 = vunpack.c.l.b16 %v823
      %v1119 = vunpack.c.l.b16 %v824
      %v1120 = vunpack.c.l.b16 %v825
      %v1121 = vunpack.c.l.b16 %v826
      %v1122 = vunpack.c.l.b16 %v827
      %v1123 = vunpack.c.l.b16 %v828
      %v1124 = vunpack.c.l.b16 %v829
      %v1125 = vunpack.c.l.b16 %v830
      %v1126 = vunpack.c.l.b16 %v831
      %v1127 = vunpack.c.l.b16 %v832
      %v1128 = vunpack.c.l.b16 %v833
      %v1129 = vunpack.c.l.b16 %v834
      %v1130 = vunpack.c.l.b16 %v835
      %v1131 = vunpack.c.l.b16 %v836
      %v1132 = vunpack.c.l.b16 %v837
      %v1133 = vunpack.c.l.b16 %v838
      %v1134 = vunpack.c.l.b16 %v839
      %v1135 = vunpack.c.l.b16 %v840
      %v1136 = vunpack.c.l.b16 %v841
      %v1137 = vunpack.c.l.b16 %v842
      %v1138 = vunpack.c.l.b16 %v843
      %v1139 = vunpack.c.l.b16 %v844
      %v1140 = vunpack.c.l.b16 %v845
      %v1141 = vunpack.c.l.b16 %v846
      %v1142 = vunpack.c.l.b16 %v847
      %v1143 = vunpack.c.l.b16 %v848
      %v1144 = vunpack.c.l.b16 %v849
      %v1145 = vunpack.c.l.b16 %v850
      %v1146 = vunpack.c.l.b16 %v851
      %v1147 = vunpack.c.l.b16 %v852
      %v1148 = vunpack.c.l.b16 %v853
      %v1149 = vunpack.c.l.b16 %v854
      %v1150 = vunpack.c.l.b16 %v855
      %v1151 = vunpack.c.l.b16 %v856
      %v1152 = vpack.c.b16 %v1009, %v1008
      %v1153 = vpack.c.b16 %v1011, %v1010
      %v1154 = vpack.c.b16 %v1013, %v1012
      %v1155 = vpack.c.b16 %v1015, %v1014
      %v1156 = vpack.c.b16 %v1017, %v1016
      %v1157 = vpack.c.b16 %v1019, %v1018
      %v1158 = vpack.c.b16 %v1021, %v1020
      %v1159 = vpack.c.b16 %v1023, %v1022
      %v1160 = vpack.c.b16 %v1025, %v1024
      %v1161 = vpack.c.b16 %v1027, %v1026
      %v1162 = vpack.c.b16 %v1029, %v1028
      %v1163 = vpack.c.b16 %v1031, %v1030
      %v1164 = vpack.c.b16 %v1033, %v1032
      %v1165 = vpack.c.b16 %v1035, %v1034
      %v1166 = vpack.c.b16 %v1037, %v1036
      %v1167 = vpack.c.b16 %v1039, %v1038
      %v1168 = vpack.c.b16 %v1041, %v1040
      %v1169 = vpack.c.b16 %v1043, %v1042
      %v1170 = vpack.c.b16 %v1045, %v1044
      %v1171 = vpack.c.b16 %v1047, %v1046
      %v1172 = vpack.c.b16 %v1049, %v1048
      %v1173 = vpack.c.b16 %v1051, %v1050
      %v1174 = vpack.c.b16 %v1053, %v1052
      %v1175 = vpack.c.b16 %v1055, %v1054
      %v1176 = vpack.c.b16 %v1057, %v1056
      %v1177 = vpack.c.b16 %v1059, %v1058
      %v1178 = vpack.c.b16 %v1061, %v1060
      %v1179 = vpack.c.b16 %v1063, %v1062
      %v1180 = vpack.c.b16 %v1065, %v1064
      %v1181 = vpack.c.b16 %v1067, %v1066
      %v1182 = vpack.c.b16 %v1069, %v1068
      %v1183 = vpack.c.b16 %v1071, %v1070
      %v1184 = vpack.c.b16 %v1073, %v1072
      %v1185 = vpack.c.b16 %v1075, %v1074
      %v1186 = vpack.c.b16 %v1077, %v1076
      %v1187 = vpack.c.b16 %v1079, %v1078
      %v1188 = vpack.c.b16 %v1081, %v1080
      %v1189 = vpack.c.b16 %v1083, %v1082
      %v1190 = vpack.c.b16 %v1085, %v1084
      %v1191 = vpack.c.b16 %v1087, %v1086
      %v1192 = vpack.c.b16 %v1089, %v1088
      %v1193 = vpack.c.b16 %v1091, %v1090
      %v1194 = vpack.c.b16 %v1093, %v1092
      %v1195 = vpack.c.b16 %v1095, %v1094
      %v1196 = vpack.c.b16 %v1097, %v1096
      %v1197 = vpack.c.b16 %v1099, %v1098
      %v1198 = vpack.c.b16 %v1101, %v1100
      %v1199 = vpack.c.b16 %v1103, %v1102
      %v1200 = vpack.c.b16 %v1105, %v1104
      %v1201 = vpack.c.b16 %v1107, %v1106
      %v1202 = vpack.c.b16 %v1109, %v1108
      %v1203 = vpack.c.b16 %v1111, %v1110
      %v1204 = vpack.c.b16 %v1113, %v1112
      %v1205 = vpack.c.b16 %v1115, %v1114
      %v1206 = vpack.c.b16 %v1117, %v1116
      %v1207 = vpack.c.b16 %v1119, %v1118
      %v1208 = vpack.c.b16 %v1121, %v1120
      %v1209 = vpack.c.b16 %v1123, %v1122
      %v1210 = vpack.c.b16 %v1125, %v1124
      %v1211 = vpack.c.b16 %v1127, %v1126
      %v1212 = vpack.c.b16 %v1129, %v1128
      %v1213 = vpack.c.b16 %v1131, %v1130
      %v1214 = vpack.c.b16 %v1133, %v1132
      %v1215 = vpack.c.b16 %v1135, %v1134
      %v1216 = vpack.c.b16 %v1137, %v1136
      %v1217 = vpack.c.b16 %v1139, %v1138
      %v1218 = vpack.c.b16 %v1141, %v1140
      %v1219 = vpack.c.b16 %v1143, %v1142
      %v1220 = vpack.c.b16 %v1145, %v1144
      %v1221 = vpack.c.b16 %v1147, %v1146
      %v1222 = vpack.c.b16 %v1149, %v1148
      %v1223 = vpack.c.b16 %v1151, %v1150
      %1296 = vmatprep.subr.bf16.mxu0 0
      %1297 = vmatpush1.bf16.msra.mxu0 %v1159
      %1298 = vmatprep.subr.bf16.mxu0 0
      %1299 = vmatpush1.bf16.msra.mxu0 %v1158
      %1300 = vmatprep.subr.bf16.mxu0 0
      %1301 = vmatpush1.bf16.msra.mxu0 %v1157
      %1302 = vmatprep.subr.bf16.mxu0 0
      %1303 = vmatpush1.bf16.msra.mxu0 %v1156
      %1304 = vmatprep.subr.bf16.mxu0 0
      %1305 = vmatpush1.bf16.msra.mxu0 %v1155
      %1306 = vmatprep.subr.bf16.mxu0 0
      %1307 = vmatpush1.bf16.msra.mxu0 %v1154
      %1308 = vmatprep.subr.bf16.mxu0 0
      %1309 = vmatpush1.bf16.msra.mxu0 %v1153
      %1310 = vmatprep.subr.bf16.mxu0 0
      %1311 = vmatpush1.bf16.msra.mxu0 %v1152
      %1312 = vmatprep.subr.bf16.mxu0 0
      %1313 = vmatpush2.bf16.msra.mxu0 %v1167
      %1314 = vmatprep.subr.bf16.mxu0 0
      %1315 = vmatpush2.bf16.msra.mxu0 %v1166
      %1316 = vmatprep.subr.bf16.mxu0 0
      %1317 = vmatpush2.bf16.msra.mxu0 %v1165
      %1318 = vmatprep.subr.bf16.mxu0 0
      %1319 = vmatpush2.bf16.msra.mxu0 %v1164
      %1320 = vmatprep.subr.bf16.mxu0 0
      %1321 = vmatpush2.bf16.msra.mxu0 %v1163
      %1322 = vmatprep.subr.bf16.mxu0 0
      %1323 = vmatpush2.bf16.msra.mxu0 %v1162
      %1324 = vmatprep.subr.bf16.mxu0 0
      %1325 = vmatpush2.bf16.msra.mxu0 %v1161
      %1326 = vmatprep.subr.bf16.mxu0 0
      %1327 = vmatpush2.bf16.msra.mxu0 %v1160
      %1328 = vmatprep.mubr.bf16.mxu0 %v660
      %1329 = vmatmul.mubr.bf16.gmra.mxu0 %v659
      %v1330 = vpop.f32.mrf.mxu0
      %v1331 = vadd.f32 %v862, %v1330
      %v1332 = vpop.f32.mrf.mxu0
      %v1333 = vpop.f32.mrf.mxu0
      %v1334 = vadd.f32 %v862, %v1333
      %v1335 = vpop.f32.mrf.mxu0
      %1336 = vmatprep.mubr.bf16.mxu0 %v663
      %1337 = vmatmul.mubr.bf16.gmra.mxu0 %v662
      %v1338 = vpop.f32.mrf.mxu0
      %v1339 = vadd.f32 %v862, %v1338
      %v1340 = vpop.f32.mrf.mxu0
      %v1341 = vpop.f32.mrf.mxu0
      %v1342 = vadd.f32 %v862, %v1341
      %v1343 = vpop.f32.mrf.mxu0
      %1344 = vmatprep.mubr.bf16.mxu0 %v666
      %1345 = vmatmul.mubr.bf16.gmra.mxu0 %v665
      %v1346 = vpop.f32.mrf.mxu0
      %v1347 = vadd.f32 %v862, %v1346
      %v1348 = vpop.f32.mrf.mxu0
      %v1349 = vpop.f32.mrf.mxu0
      %v1350 = vadd.f32 %v862, %v1349
      %v1351 = vpop.f32.mrf.mxu0
      %1352 = vmatprep.mubr.bf16.mxu0 %v669
      %1353 = vmatmul.mubr.bf16.gmra.mxu0 %v668
      %v1354 = vpop.f32.mrf.mxu0
      %v1355 = vadd.f32 %v862, %v1354
      %v1356 = vpop.f32.mrf.mxu0
      %v1357 = vpop.f32.mrf.mxu0
      %v1358 = vadd.f32 %v862, %v1357
      %v1359 = vpop.f32.mrf.mxu0
      %1360 = vmatprep.mubr.bf16.mxu0 %v672
      %1361 = vmatmul.mubr.bf16.gmra.mxu0 %v671
      %v1362 = vpop.f32.mrf.mxu0
      %v1363 = vadd.f32 %v862, %v1362
      %v1364 = vpop.f32.mrf.mxu0
      %v1365 = vpop.f32.mrf.mxu0
      %v1366 = vadd.f32 %v862, %v1365
      %v1367 = vpop.f32.mrf.mxu0
      %1368 = vmatprep.mubr.bf16.mxu0 %v675
      %1369 = vmatmul.mubr.bf16.gmra.mxu0 %v674
      %v1370 = vpop.f32.mrf.mxu0
      %v1371 = vadd.f32 %v862, %v1370
      %v1372 = vpop.f32.mrf.mxu0
      %v1373 = vpop.f32.mrf.mxu0
      %v1374 = vadd.f32 %v862, %v1373
      %v1375 = vpop.f32.mrf.mxu0
      %1376 = vmatprep.mubr.bf16.mxu0 %v678
      %1377 = vmatmul.mubr.bf16.gmra.mxu0 %v677
      %v1378 = vpop.f32.mrf.mxu0
      %v1379 = vadd.f32 %v862, %v1378
      %v1380 = vpop.f32.mrf.mxu0
      %v1381 = vpop.f32.mrf.mxu0
      %v1382 = vadd.f32 %v862, %v1381
      %v1383 = vpop.f32.mrf.mxu0
      %1384 = vmatprep.mubr.bf16.mxu0 %v681
      %1385 = vmatmul.mubr.bf16.gmra.mxu0 %v680
      %v1386 = vpop.f32.mrf.mxu0
      %v1387 = vadd.f32 %v862, %v1386
      %v1388 = vpop.f32.mrf.mxu0
      %v1389 = vpop.f32.mrf.mxu0
      %v1390 = vadd.f32 %v862, %v1389
      %v1391 = vpop.f32.mrf.mxu0
      %1392 = vmatprep.mubr.bf16.mxu0 %v684
      %1393 = vmatmul.mubr.bf16.gmra.mxu0 %v683
      %v1394 = vpop.f32.mrf.mxu0
      %v1395 = vadd.f32 %v862, %v1394
      %v1396 = vpop.f32.mrf.mxu0
      %v1397 = vpop.f32.mrf.mxu0
      %v1398 = vadd.f32 %v862, %v1397
      %v1399 = vpop.f32.mrf.mxu0
      %1400 = vmatprep.mubr.bf16.mxu0 %v687
      %1401 = vmatmul.mubr.bf16.gmra.mxu0 %v686
      %v1402 = vpop.f32.mrf.mxu0
      %v1403 = vadd.f32 %v862, %v1402
      %v1404 = vpop.f32.mrf.mxu0
      %v1405 = vpop.f32.mrf.mxu0
      %v1406 = vadd.f32 %v862, %v1405
      %v1407 = vpop.f32.mrf.mxu0
      %1408 = vmatprep.mubr.bf16.mxu0 %v690
      %1409 = vmatmul.mubr.bf16.gmra.mxu0 %v689
      %v1410 = vpop.f32.mrf.mxu0
      %v1411 = vadd.f32 %v862, %v1410
      %v1412 = vpop.f32.mrf.mxu0
      %v1413 = vpop.f32.mrf.mxu0
      %v1414 = vadd.f32 %v862, %v1413
      %v1415 = vpop.f32.mrf.mxu0
      %1416 = vmatprep.mubr.bf16.mxu0 %v693
      %1417 = vmatmul.mubr.bf16.gmra.mxu0 %v692
      %v1418 = vpop.f32.mrf.mxu0
      %v1419 = vadd.f32 %v862, %v1418
      %v1420 = vpop.f32.mrf.mxu0
      %v1421 = vpop.f32.mrf.mxu0
      %v1422 = vadd.f32 %v862, %v1421
      %v1423 = vpop.f32.mrf.mxu0
      %1424 = vmatprep.mubr.bf16.mxu0 %v696
      %1425 = vmatmul.mubr.bf16.gmra.mxu0 %v695
      %v1426 = vpop.f32.mrf.mxu0
      %v1427 = vadd.f32 %v862, %v1426
      %v1428 = vpop.f32.mrf.mxu0
      %v1429 = vpop.f32.mrf.mxu0
      %v1430 = vadd.f32 %v862, %v1429
      %v1431 = vpop.f32.mrf.mxu0
      %1432 = vmatprep.mubr.bf16.mxu0 %v699
      %1433 = vmatmul.mubr.bf16.gmra.mxu0 %v698
      %v1434 = vpop.f32.mrf.mxu0
      %v1435 = vadd.f32 %v862, %v1434
      %v1436 = vpop.f32.mrf.mxu0
      %v1437 = vpop.f32.mrf.mxu0
      %v1438 = vadd.f32 %v862, %v1437
      %v1439 = vpop.f32.mrf.mxu0
      %1440 = vmatprep.mubr.bf16.mxu0 %v702
      %1441 = vmatmul.mubr.bf16.gmra.mxu0 %v701
      %v1442 = vpop.f32.mrf.mxu0
      %v1443 = vadd.f32 %v862, %v1442
      %v1444 = vpop.f32.mrf.mxu0
      %v1445 = vpop.f32.mrf.mxu0
      %v1446 = vadd.f32 %v862, %v1445
      %v1447 = vpop.f32.mrf.mxu0
      %1448 = vmatprep.mubr.bf16.mxu0 %v705
      %1449 = vmatmul.mubr.bf16.gmra.mxu0 %v704
      %v1450 = vpop.f32.mrf.mxu0
      %v1451 = vadd.f32 %v862, %v1450
      %v1452 = vpop.f32.mrf.mxu0
      %v1453 = vpop.f32.mrf.mxu0
      %v1454 = vadd.f32 %v862, %v1453
      %v1455 = vpop.f32.mrf.mxu0
      %1456 = vdwg.mxu0
      %1457 = vmatprep.subr.bf16.mxu0 0
      %1458 = vmatpush1.bf16.msra.mxu0 %v1175
      %1459 = vmatprep.subr.bf16.mxu0 0
      %1460 = vmatpush1.bf16.msra.mxu0 %v1174
      %1461 = vmatprep.subr.bf16.mxu0 0
      %1462 = vmatpush1.bf16.msra.mxu0 %v1173
      %1463 = vmatprep.subr.bf16.mxu0 0
      %1464 = vmatpush1.bf16.msra.mxu0 %v1172
      %1465 = vmatprep.subr.bf16.mxu0 0
      %1466 = vmatpush1.bf16.msra.mxu0 %v1171
      %1467 = vmatprep.subr.bf16.mxu0 0
      %1468 = vmatpush1.bf16.msra.mxu0 %v1170
      %1469 = vmatprep.subr.bf16.mxu0 0
      %1470 = vmatpush1.bf16.msra.mxu0 %v1169
      %1471 = vmatprep.subr.bf16.mxu0 0
      %1472 = vmatpush1.bf16.msra.mxu0 %v1168
      %1473 = vmatprep.subr.bf16.mxu0 0
      %1474 = vmatpush2.bf16.msra.mxu0 %v1183
      %1475 = vmatprep.subr.bf16.mxu0 0
      %1476 = vmatpush2.bf16.msra.mxu0 %v1182
      %1477 = vmatprep.subr.bf16.mxu0 0
      %1478 = vmatpush2.bf16.msra.mxu0 %v1181
      %1479 = vmatprep.subr.bf16.mxu0 0
      %1480 = vmatpush2.bf16.msra.mxu0 %v1180
      %1481 = vmatprep.subr.bf16.mxu0 0
      %1482 = vmatpush2.bf16.msra.mxu0 %v1179
      %1483 = vmatprep.subr.bf16.mxu0 0
      %1484 = vmatpush2.bf16.msra.mxu0 %v1178
      %1485 = vmatprep.subr.bf16.mxu0 0
      %1486 = vmatpush2.bf16.msra.mxu0 %v1177
      %1487 = vmatprep.subr.bf16.mxu0 0
      %1488 = vmatpush2.bf16.msra.mxu0 %v1176
      %1489 = vmatprep.mubr.bf16.mxu0 %v662
      %1490 = vmatmul.mubr.bf16.gmra.mxu0 %v661
      %v1491 = vpop.f32.mrf.mxu0
      %v1492 = vadd.f32 %v1331, %v1491
      %v1493 = vpop.f32.mrf.mxu0
      %v1494 = vpop.f32.mrf.mxu0
      %v1495 = vadd.f32 %v1334, %v1494
      %v1496 = vpop.f32.mrf.mxu0
      %1497 = vmatprep.mubr.bf16.mxu0 %v665
      %1498 = vmatmul.mubr.bf16.gmra.mxu0 %v664
      %v1499 = vpop.f32.mrf.mxu0
      %v1500 = vadd.f32 %v1339, %v1499
      %v1501 = vpop.f32.mrf.mxu0
      %v1502 = vpop.f32.mrf.mxu0
      %v1503 = vadd.f32 %v1342, %v1502
      %v1504 = vpop.f32.mrf.mxu0
      %1505 = vmatprep.mubr.bf16.mxu0 %v668
      %1506 = vmatmul.mubr.bf16.gmra.mxu0 %v667
      %v1507 = vpop.f32.mrf.mxu0
      %v1508 = vadd.f32 %v1347, %v1507
      %v1509 = vpop.f32.mrf.mxu0
      %v1510 = vpop.f32.mrf.mxu0
      %v1511 = vadd.f32 %v1350, %v1510
      %v1512 = vpop.f32.mrf.mxu0
      %1513 = vmatprep.mubr.bf16.mxu0 %v671
      %1514 = vmatmul.mubr.bf16.gmra.mxu0 %v670
      %v1515 = vpop.f32.mrf.mxu0
      %v1516 = vadd.f32 %v1355, %v1515
      %v1517 = vpop.f32.mrf.mxu0
      %v1518 = vpop.f32.mrf.mxu0
      %v1519 = vadd.f32 %v1358, %v1518
      %v1520 = vpop.f32.mrf.mxu0
      %1521 = vmatprep.mubr.bf16.mxu0 %v674
      %1522 = vmatmul.mubr.bf16.gmra.mxu0 %v673
      %v1523 = vpop.f32.mrf.mxu0
      %v1524 = vadd.f32 %v1363, %v1523
      %v1525 = vpop.f32.mrf.mxu0
      %v1526 = vpop.f32.mrf.mxu0
      %v1527 = vadd.f32 %v1366, %v1526
      %v1528 = vpop.f32.mrf.mxu0
      %1529 = vmatprep.mubr.bf16.mxu0 %v677
      %1530 = vmatmul.mubr.bf16.gmra.mxu0 %v676
      %v1531 = vpop.f32.mrf.mxu0
      %v1532 = vadd.f32 %v1371, %v1531
      %v1533 = vpop.f32.mrf.mxu0
      %v1534 = vpop.f32.mrf.mxu0
      %v1535 = vadd.f32 %v1374, %v1534
      %v1536 = vpop.f32.mrf.mxu0
      %1537 = vmatprep.mubr.bf16.mxu0 %v680
      %1538 = vmatmul.mubr.bf16.gmra.mxu0 %v679
      %v1539 = vpop.f32.mrf.mxu0
      %v1540 = vadd.f32 %v1379, %v1539
      %v1541 = vpop.f32.mrf.mxu0
      %v1542 = vpop.f32.mrf.mxu0
      %v1543 = vadd.f32 %v1382, %v1542
      %v1544 = vpop.f32.mrf.mxu0
      %1545 = vmatprep.mubr.bf16.mxu0 %v683
      %1546 = vmatmul.mubr.bf16.gmra.mxu0 %v682
      %v1547 = vpop.f32.mrf.mxu0
      %v1548 = vadd.f32 %v1387, %v1547
      %v1549 = vpop.f32.mrf.mxu0
      %v1550 = vpop.f32.mrf.mxu0
      %v1551 = vadd.f32 %v1390, %v1550
      %v1552 = vpop.f32.mrf.mxu0
      %1553 = vmatprep.mubr.bf16.mxu0 %v686
      %1554 = vmatmul.mubr.bf16.gmra.mxu0 %v685
      %v1555 = vpop.f32.mrf.mxu0
      %v1556 = vadd.f32 %v1395, %v1555
      %v1557 = vpop.f32.mrf.mxu0
      %v1558 = vpop.f32.mrf.mxu0
      %v1559 = vadd.f32 %v1398, %v1558
      %v1560 = vpop.f32.mrf.mxu0
      %1561 = vmatprep.mubr.bf16.mxu0 %v689
      %1562 = vmatmul.mubr.bf16.gmra.mxu0 %v688
      %v1563 = vpop.f32.mrf.mxu0
      %v1564 = vadd.f32 %v1403, %v1563
      %v1565 = vpop.f32.mrf.mxu0
      %v1566 = vpop.f32.mrf.mxu0
      %v1567 = vadd.f32 %v1406, %v1566
      %v1568 = vpop.f32.mrf.mxu0
      %1569 = vmatprep.mubr.bf16.mxu0 %v692
      %1570 = vmatmul.mubr.bf16.gmra.mxu0 %v691
      %v1571 = vpop.f32.mrf.mxu0
      %v1572 = vadd.f32 %v1411, %v1571
      %v1573 = vpop.f32.mrf.mxu0
      %v1574 = vpop.f32.mrf.mxu0
      %v1575 = vadd.f32 %v1414, %v1574
      %v1576 = vpop.f32.mrf.mxu0
      %1577 = vmatprep.mubr.bf16.mxu0 %v695
      %1578 = vmatmul.mubr.bf16.gmra.mxu0 %v694
      %v1579 = vpop.f32.mrf.mxu0
      %v1580 = vadd.f32 %v1419, %v1579
      %v1581 = vpop.f32.mrf.mxu0
      %v1582 = vpop.f32.mrf.mxu0
      %v1583 = vadd.f32 %v1422, %v1582
      %v1584 = vpop.f32.mrf.mxu0
      %1585 = vmatprep.mubr.bf16.mxu0 %v698
      %1586 = vmatmul.mubr.bf16.gmra.mxu0 %v697
      %v1587 = vpop.f32.mrf.mxu0
      %v1588 = vadd.f32 %v1427, %v1587
      %v1589 = vpop.f32.mrf.mxu0
      %v1590 = vpop.f32.mrf.mxu0
      %v1591 = vadd.f32 %v1430, %v1590
      %v1592 = vpop.f32.mrf.mxu0
      %1593 = vmatprep.mubr.bf16.mxu0 %v701
      %1594 = vmatmul.mubr.bf16.gmra.mxu0 %v700
      %v1595 = vpop.f32.mrf.mxu0
      %v1596 = vadd.f32 %v1435, %v1595
      %v1597 = vpop.f32.mrf.mxu0
      %v1598 = vpop.f32.mrf.mxu0
      %v1599 = vadd.f32 %v1438, %v1598
      %v1600 = vpop.f32.mrf.mxu0
      %1601 = vmatprep.mubr.bf16.mxu0 %v704
      %1602 = vmatmul.mubr.bf16.gmra.mxu0 %v703
      %v1603 = vpop.f32.mrf.mxu0
      %v1604 = vadd.f32 %v1443, %v1603
      %v1605 = vpop.f32.mrf.mxu0
      %v1606 = vpop.f32.mrf.mxu0
      %v1607 = vadd.f32 %v1446, %v1606
      %v1608 = vpop.f32.mrf.mxu0
      %1609 = vmatprep.mubr.bf16.mxu0 %v707
      %1610 = vmatmul.mubr.bf16.gmra.mxu0 %v706
      %v1611 = vpop.f32.mrf.mxu0
      %v1612 = vadd.f32 %v1451, %v1611
      %v1613 = vpop.f32.mrf.mxu0
      %v1614 = vpop.f32.mrf.mxu0
      %v1615 = vadd.f32 %v1454, %v1614
      %v1616 = vpop.f32.mrf.mxu0
      %1617 = vdwg.mxu0
      %1618 = vmatprep.subr.bf16.mxu0 0
      %1619 = vmatpush1.bf16.msra.mxu0 %v1191
      %1620 = vmatprep.subr.bf16.mxu0 0
      %1621 = vmatpush1.bf16.msra.mxu0 %v1190
      %1622 = vmatprep.subr.bf16.mxu0 0
      %1623 = vmatpush1.bf16.msra.mxu0 %v1189
      %1624 = vmatprep.subr.bf16.mxu0 0
      %1625 = vmatpush1.bf16.msra.mxu0 %v1188
      %1626 = vmatprep.subr.bf16.mxu0 0
      %1627 = vmatpush1.bf16.msra.mxu0 %v1187
      %1628 = vmatprep.subr.bf16.mxu0 0
      %1629 = vmatpush1.bf16.msra.mxu0 %v1186
      %1630 = vmatprep.subr.bf16.mxu0 0
      %1631 = vmatpush1.bf16.msra.mxu0 %v1185
      %1632 = vmatprep.subr.bf16.mxu0 0
      %1633 = vmatpush1.bf16.msra.mxu0 %v1184
      %1634 = vmatprep.subr.bf16.mxu0 0
      %1635 = vmatpush2.bf16.msra.mxu0 %v1199
      %1636 = vmatprep.subr.bf16.mxu0 0
      %1637 = vmatpush2.bf16.msra.mxu0 %v1198
      %1638 = vmatprep.subr.bf16.mxu0 0
      %1639 = vmatpush2.bf16.msra.mxu0 %v1197
      %1640 = vmatprep.subr.bf16.mxu0 0
      %1641 = vmatpush2.bf16.msra.mxu0 %v1196
      %1642 = vmatprep.subr.bf16.mxu0 0
      %1643 = vmatpush2.bf16.msra.mxu0 %v1195
      %1644 = vmatprep.subr.bf16.mxu0 0
      %1645 = vmatpush2.bf16.msra.mxu0 %v1194
      %1646 = vmatprep.subr.bf16.mxu0 0
      %1647 = vmatpush2.bf16.msra.mxu0 %v1193
      %1648 = vmatprep.subr.bf16.mxu0 0
      %1649 = vmatpush2.bf16.msra.mxu0 %v1192
      %1650 = vmatprep.mubr.bf16.mxu0 %v664
      %1651 = vmatmul.mubr.bf16.gmra.mxu0 %v663
      %v1652 = vpop.f32.mrf.mxu0
      %v1653 = vadd.f32 %v1492, %v1652
      %v1654 = vpop.f32.mrf.mxu0
      %v1655 = vpop.f32.mrf.mxu0
      %v1656 = vadd.f32 %v1495, %v1655
      %v1657 = vpop.f32.mrf.mxu0
      %1658 = vmatprep.mubr.bf16.mxu0 %v667
      %1659 = vmatmul.mubr.bf16.gmra.mxu0 %v666
      %v1660 = vpop.f32.mrf.mxu0
      %v1661 = vadd.f32 %v1500, %v1660
      %v1662 = vpop.f32.mrf.mxu0
      %v1663 = vpop.f32.mrf.mxu0
      %v1664 = vadd.f32 %v1503, %v1663
      %v1665 = vpop.f32.mrf.mxu0
      %1666 = vmatprep.mubr.bf16.mxu0 %v670
      %1667 = vmatmul.mubr.bf16.gmra.mxu0 %v669
      %v1668 = vpop.f32.mrf.mxu0
      %v1669 = vadd.f32 %v1508, %v1668
      %v1670 = vpop.f32.mrf.mxu0
      %v1671 = vpop.f32.mrf.mxu0
      %v1672 = vadd.f32 %v1511, %v1671
      %v1673 = vpop.f32.mrf.mxu0
      %1674 = vmatprep.mubr.bf16.mxu0 %v673
      %1675 = vmatmul.mubr.bf16.gmra.mxu0 %v672
      %v1676 = vpop.f32.mrf.mxu0
      %v1677 = vadd.f32 %v1516, %v1676
      %v1678 = vpop.f32.mrf.mxu0
      %v1679 = vpop.f32.mrf.mxu0
      %v1680 = vadd.f32 %v1519, %v1679
      %v1681 = vpop.f32.mrf.mxu0
      %1682 = vmatprep.mubr.bf16.mxu0 %v676
      %1683 = vmatmul.mubr.bf16.gmra.mxu0 %v675
      %v1684 = vpop.f32.mrf.mxu0
      %v1685 = vadd.f32 %v1524, %v1684
      %v1686 = vpop.f32.mrf.mxu0
      %v1687 = vpop.f32.mrf.mxu0
      %v1688 = vadd.f32 %v1527, %v1687
      %v1689 = vpop.f32.mrf.mxu0
      %1690 = vmatprep.mubr.bf16.mxu0 %v679
      %1691 = vmatmul.mubr.bf16.gmra.mxu0 %v678
      %v1692 = vpop.f32.mrf.mxu0
      %v1693 = vadd.f32 %v1532, %v1692
      %v1694 = vpop.f32.mrf.mxu0
      %v1695 = vpop.f32.mrf.mxu0
      %v1696 = vadd.f32 %v1535, %v1695
      %v1697 = vpop.f32.mrf.mxu0
      %1698 = vmatprep.mubr.bf16.mxu0 %v682
      %1699 = vmatmul.mubr.bf16.gmra.mxu0 %v681
      %v1700 = vpop.f32.mrf.mxu0
      %v1701 = vadd.f32 %v1540, %v1700
      %v1702 = vpop.f32.mrf.mxu0
      %v1703 = vpop.f32.mrf.mxu0
      %v1704 = vadd.f32 %v1543, %v1703
      %v1705 = vpop.f32.mrf.mxu0
      %1706 = vmatprep.mubr.bf16.mxu0 %v685
      %1707 = vmatmul.mubr.bf16.gmra.mxu0 %v684
      %v1708 = vpop.f32.mrf.mxu0
      %v1709 = vadd.f32 %v1548, %v1708
      %v1710 = vpop.f32.mrf.mxu0
      %v1711 = vpop.f32.mrf.mxu0
      %v1712 = vadd.f32 %v1551, %v1711
      %v1713 = vpop.f32.mrf.mxu0
      %1714 = vmatprep.mubr.bf16.mxu0 %v688
      %1715 = vmatmul.mubr.bf16.gmra.mxu0 %v687
      %v1716 = vpop.f32.mrf.mxu0
      %v1717 = vadd.f32 %v1556, %v1716
      %v1718 = vpop.f32.mrf.mxu0
      %v1719 = vpop.f32.mrf.mxu0
      %v1720 = vadd.f32 %v1559, %v1719
      %v1721 = vpop.f32.mrf.mxu0
      %1722 = vmatprep.mubr.bf16.mxu0 %v691
      %1723 = vmatmul.mubr.bf16.gmra.mxu0 %v690
      %v1724 = vpop.f32.mrf.mxu0
      %v1725 = vadd.f32 %v1564, %v1724
      %v1726 = vpop.f32.mrf.mxu0
      %v1727 = vpop.f32.mrf.mxu0
      %v1728 = vadd.f32 %v1567, %v1727
      %v1729 = vpop.f32.mrf.mxu0
      %1730 = vmatprep.mubr.bf16.mxu0 %v694
      %1731 = vmatmul.mubr.bf16.gmra.mxu0 %v693
      %v1732 = vpop.f32.mrf.mxu0
      %v1733 = vadd.f32 %v1572, %v1732
      %v1734 = vpop.f32.mrf.mxu0
      %v1735 = vpop.f32.mrf.mxu0
      %v1736 = vadd.f32 %v1575, %v1735
      %v1737 = vpop.f32.mrf.mxu0
      %1738 = vmatprep.mubr.bf16.mxu0 %v697
      %1739 = vmatmul.mubr.bf16.gmra.mxu0 %v696
      %v1740 = vpop.f32.mrf.mxu0
      %v1741 = vadd.f32 %v1580, %v1740
      %v1742 = vpop.f32.mrf.mxu0
      %v1743 = vpop.f32.mrf.mxu0
      %v1744 = vadd.f32 %v1583, %v1743
      %v1745 = vpop.f32.mrf.mxu0
      %1746 = vmatprep.mubr.bf16.mxu0 %v700
      %1747 = vmatmul.mubr.bf16.gmra.mxu0 %v699
      %v1748 = vpop.f32.mrf.mxu0
      %v1749 = vadd.f32 %v1588, %v1748
      %v1750 = vpop.f32.mrf.mxu0
      %v1751 = vpop.f32.mrf.mxu0
      %v1752 = vadd.f32 %v1591, %v1751
      %v1753 = vpop.f32.mrf.mxu0
      %1754 = vmatprep.mubr.bf16.mxu0 %v703
      %1755 = vmatmul.mubr.bf16.gmra.mxu0 %v702
      %v1756 = vpop.f32.mrf.mxu0
      %v1757 = vadd.f32 %v1596, %v1756
      %v1758 = vpop.f32.mrf.mxu0
      %v1759 = vpop.f32.mrf.mxu0
      %v1760 = vadd.f32 %v1599, %v1759
      %v1761 = vpop.f32.mrf.mxu0
      %1762 = vmatprep.mubr.bf16.mxu0 %v706
      %1763 = vmatmul.mubr.bf16.gmra.mxu0 %v705
      %v1764 = vpop.f32.mrf.mxu0
      %v1765 = vadd.f32 %v1604, %v1764
      %v1766 = vpop.f32.mrf.mxu0
      %v1767 = vpop.f32.mrf.mxu0
      %v1768 = vadd.f32 %v1607, %v1767
      %v1769 = vpop.f32.mrf.mxu0
      %1770 = vmatprep.mubr.bf16.mxu0 %v709
      %1771 = vmatmul.mubr.bf16.gmra.mxu0 %v708
      %v1772 = vpop.f32.mrf.mxu0
      %v1773 = vadd.f32 %v1612, %v1772
      %v1774 = vpop.f32.mrf.mxu0
      %v1775 = vpop.f32.mrf.mxu0
      %v1776 = vadd.f32 %v1615, %v1775
      %v1777 = vpop.f32.mrf.mxu0
      %1778 = vdwg.mxu0
      %1779 = vmatprep.subr.bf16.mxu0 0
      %1780 = vmatpush1.bf16.msra.mxu0 %v1207
      %1781 = vmatprep.subr.bf16.mxu0 0
      %1782 = vmatpush1.bf16.msra.mxu0 %v1206
      %1783 = vmatprep.subr.bf16.mxu0 0
      %1784 = vmatpush1.bf16.msra.mxu0 %v1205
      %1785 = vmatprep.subr.bf16.mxu0 0
      %1786 = vmatpush1.bf16.msra.mxu0 %v1204
      %1787 = vmatprep.subr.bf16.mxu0 0
      %1788 = vmatpush1.bf16.msra.mxu0 %v1203
      %1789 = vmatprep.subr.bf16.mxu0 0
      %1790 = vmatpush1.bf16.msra.mxu0 %v1202
      %1791 = vmatprep.subr.bf16.mxu0 0
      %1792 = vmatpush1.bf16.msra.mxu0 %v1201
      %1793 = vmatprep.subr.bf16.mxu0 0
      %1794 = vmatpush1.bf16.msra.mxu0 %v1200
      %1795 = vmatprep.subr.bf16.mxu0 0
      %1796 = vmatpush2.bf16.msra.mxu0 %v1215
      %1797 = vmatprep.subr.bf16.mxu0 0
      %1798 = vmatpush2.bf16.msra.mxu0 %v1214
      %1799 = vmatprep.subr.bf16.mxu0 0
      %1800 = vmatpush2.bf16.msra.mxu0 %v1213
      %1801 = vmatprep.subr.bf16.mxu0 0
      %1802 = vmatpush2.bf16.msra.mxu0 %v1212
      %1803 = vmatprep.subr.bf16.mxu0 0
      %1804 = vmatpush2.bf16.msra.mxu0 %v1211
      %1805 = vmatprep.subr.bf16.mxu0 0
      %1806 = vmatpush2.bf16.msra.mxu0 %v1210
      %1807 = vmatprep.subr.bf16.mxu0 0
      %1808 = vmatpush2.bf16.msra.mxu0 %v1209
      %1809 = vmatprep.subr.bf16.mxu0 0
      %1810 = vmatpush2.bf16.msra.mxu0 %v1208
      %1811 = vmatprep.mubr.bf16.mxu0 %v666
      %1812 = vmatmul.mubr.bf16.gmra.mxu0 %v665
      %v1813 = vpop.f32.mrf.mxu0
      %v1814 = vadd.f32 %v1653, %v1813
      %v1815 = vpop.f32.mrf.mxu0
      %v1816 = vpop.f32.mrf.mxu0
      %v1817 = vadd.f32 %v1656, %v1816
      %v1818 = vpop.f32.mrf.mxu0
      %1819 = vmatprep.mubr.bf16.mxu0 %v669
      %1820 = vmatmul.mubr.bf16.gmra.mxu0 %v668
      %v1821 = vpop.f32.mrf.mxu0
      %v1822 = vadd.f32 %v1661, %v1821
      %v1823 = vpop.f32.mrf.mxu0
      %v1824 = vpop.f32.mrf.mxu0
      %v1825 = vadd.f32 %v1664, %v1824
      %v1826 = vpop.f32.mrf.mxu0
      %1827 = vmatprep.mubr.bf16.mxu0 %v672
      %1828 = vmatmul.mubr.bf16.gmra.mxu0 %v671
      %v1829 = vpop.f32.mrf.mxu0
      %v1830 = vadd.f32 %v1669, %v1829
      %v1831 = vpop.f32.mrf.mxu0
      %v1832 = vpop.f32.mrf.mxu0
      %v1833 = vadd.f32 %v1672, %v1832
      %v1834 = vpop.f32.mrf.mxu0
      %1835 = vmatprep.mubr.bf16.mxu0 %v675
      %1836 = vmatmul.mubr.bf16.gmra.mxu0 %v674
      %v1837 = vpop.f32.mrf.mxu0
      %v1838 = vadd.f32 %v1677, %v1837
      %v1839 = vpop.f32.mrf.mxu0
      %v1840 = vpop.f32.mrf.mxu0
      %v1841 = vadd.f32 %v1680, %v1840
      %v1842 = vpop.f32.mrf.mxu0
      %1843 = vmatprep.mubr.bf16.mxu0 %v678
      %1844 = vmatmul.mubr.bf16.gmra.mxu0 %v677
      %v1845 = vpop.f32.mrf.mxu0
      %v1846 = vadd.f32 %v1685, %v1845
      %v1847 = vpop.f32.mrf.mxu0
      %v1848 = vpop.f32.mrf.mxu0
      %v1849 = vadd.f32 %v1688, %v1848
      %v1850 = vpop.f32.mrf.mxu0
      %1851 = vmatprep.mubr.bf16.mxu0 %v681
      %1852 = vmatmul.mubr.bf16.gmra.mxu0 %v680
      %v1853 = vpop.f32.mrf.mxu0
      %v1854 = vadd.f32 %v1693, %v1853
      %v1855 = vpop.f32.mrf.mxu0
      %v1856 = vpop.f32.mrf.mxu0
      %v1857 = vadd.f32 %v1696, %v1856
      %v1858 = vpop.f32.mrf.mxu0
      %1859 = vmatprep.mubr.bf16.mxu0 %v684
      %1860 = vmatmul.mubr.bf16.gmra.mxu0 %v683
      %v1861 = vpop.f32.mrf.mxu0
      %v1862 = vadd.f32 %v1701, %v1861
      %v1863 = vpop.f32.mrf.mxu0
      %v1864 = vpop.f32.mrf.mxu0
      %v1865 = vadd.f32 %v1704, %v1864
      %v1866 = vpop.f32.mrf.mxu0
      %1867 = vmatprep.mubr.bf16.mxu0 %v687
      %1868 = vmatmul.mubr.bf16.gmra.mxu0 %v686
      %v1869 = vpop.f32.mrf.mxu0
      %v1870 = vadd.f32 %v1709, %v1869
      %v1871 = vpop.f32.mrf.mxu0
      %v1872 = vpop.f32.mrf.mxu0
      %v1873 = vadd.f32 %v1712, %v1872
      %v1874 = vpop.f32.mrf.mxu0
      %1875 = vmatprep.mubr.bf16.mxu0 %v690
      %1876 = vmatmul.mubr.bf16.gmra.mxu0 %v689
      %v1877 = vpop.f32.mrf.mxu0
      %v1878 = vadd.f32 %v1717, %v1877
      %v1879 = vpop.f32.mrf.mxu0
      %v1880 = vpop.f32.mrf.mxu0
      %v1881 = vadd.f32 %v1720, %v1880
      %v1882 = vpop.f32.mrf.mxu0
      %1883 = vmatprep.mubr.bf16.mxu0 %v693
      %1884 = vmatmul.mubr.bf16.gmra.mxu0 %v692
      %v1885 = vpop.f32.mrf.mxu0
      %v1886 = vadd.f32 %v1725, %v1885
      %v1887 = vpop.f32.mrf.mxu0
      %v1888 = vpop.f32.mrf.mxu0
      %v1889 = vadd.f32 %v1728, %v1888
      %v1890 = vpop.f32.mrf.mxu0
      %1891 = vmatprep.mubr.bf16.mxu0 %v696
      %1892 = vmatmul.mubr.bf16.gmra.mxu0 %v695
      %v1893 = vpop.f32.mrf.mxu0
      %v1894 = vadd.f32 %v1733, %v1893
      %v1895 = vpop.f32.mrf.mxu0
      %v1896 = vpop.f32.mrf.mxu0
      %v1897 = vadd.f32 %v1736, %v1896
      %v1898 = vpop.f32.mrf.mxu0
      %1899 = vmatprep.mubr.bf16.mxu0 %v699
      %1900 = vmatmul.mubr.bf16.gmra.mxu0 %v698
      %v1901 = vpop.f32.mrf.mxu0
      %v1902 = vadd.f32 %v1741, %v1901
      %v1903 = vpop.f32.mrf.mxu0
      %v1904 = vpop.f32.mrf.mxu0
      %v1905 = vadd.f32 %v1744, %v1904
      %v1906 = vpop.f32.mrf.mxu0
      %1907 = vmatprep.mubr.bf16.mxu0 %v702
      %1908 = vmatmul.mubr.bf16.gmra.mxu0 %v701
      %v1909 = vpop.f32.mrf.mxu0
      %v1910 = vadd.f32 %v1749, %v1909
      %v1911 = vpop.f32.mrf.mxu0
      %v1912 = vpop.f32.mrf.mxu0
      %v1913 = vadd.f32 %v1752, %v1912
      %v1914 = vpop.f32.mrf.mxu0
      %1915 = vmatprep.mubr.bf16.mxu0 %v705
      %1916 = vmatmul.mubr.bf16.gmra.mxu0 %v704
      %v1917 = vpop.f32.mrf.mxu0
      %v1918 = vadd.f32 %v1757, %v1917
      %v1919 = vpop.f32.mrf.mxu0
      %v1920 = vpop.f32.mrf.mxu0
      %v1921 = vadd.f32 %v1760, %v1920
      %v1922 = vpop.f32.mrf.mxu0
      %1923 = vmatprep.mubr.bf16.mxu0 %v708
      %1924 = vmatmul.mubr.bf16.gmra.mxu0 %v707
      %v1925 = vpop.f32.mrf.mxu0
      %v1926 = vadd.f32 %v1765, %v1925
      %v1927 = vpop.f32.mrf.mxu0
      %v1928 = vpop.f32.mrf.mxu0
      %v1929 = vadd.f32 %v1768, %v1928
      %v1930 = vpop.f32.mrf.mxu0
      %1931 = vmatprep.mubr.bf16.mxu0 %v711
      %1932 = vmatmul.mubr.bf16.gmra.mxu0 %v710
      %v1933 = vpop.f32.mrf.mxu0
      %v1934 = vadd.f32 %v1773, %v1933
      %v1935 = vpop.f32.mrf.mxu0
      %v1936 = vpop.f32.mrf.mxu0
      %v1937 = vadd.f32 %v1776, %v1936
      %v1938 = vpop.f32.mrf.mxu0
      %1939 = vdwg.mxu0
      %1940 = vmatprep.subr.bf16.mxu0 0
      %1941 = vmatpush1.bf16.msra.mxu0 %v1223
      %1942 = vmatprep.subr.bf16.mxu0 0
      %1943 = vmatpush1.bf16.msra.mxu0 %v1222
      %1944 = vmatprep.subr.bf16.mxu0 0
      %1945 = vmatpush1.bf16.msra.mxu0 %v1221
      %1946 = vmatprep.subr.bf16.mxu0 0
      %1947 = vmatpush1.bf16.msra.mxu0 %v1220
      %1948 = vmatprep.subr.bf16.mxu0 0
      %1949 = vmatpush1.bf16.msra.mxu0 %v1219
      %1950 = vmatprep.subr.bf16.mxu0 0
      %1951 = vmatpush1.bf16.msra.mxu0 %v1218
      %1952 = vmatprep.subr.bf16.mxu0 0
      %1953 = vmatpush1.bf16.msra.mxu0 %v1217
      %1954 = vmatprep.subr.bf16.mxu0 0
      %1955 = vmatpush1.bf16.msra.mxu0 %v1216
      %1956 = vmatprep.subr.bf16.mxu0 0
      %1957 = vmatpush2.bf16.msra.mxu0 0
      %1958 = vmatprep.subr.bf16.mxu0 0
      %1959 = vmatpush2.bf16.msra.mxu0 0
      %1960 = vmatprep.subr.bf16.mxu0 0
      %1961 = vmatpush2.bf16.msra.mxu0 0
      %1962 = vmatprep.subr.bf16.mxu0 0
      %1963 = vmatpush2.bf16.msra.mxu0 0
      %1964 = vmatprep.subr.bf16.mxu0 0
      %1965 = vmatpush2.bf16.msra.mxu0 0
      %1966 = vmatprep.subr.bf16.mxu0 0
      %1967 = vmatpush2.bf16.msra.mxu0 0
      %1968 = vmatprep.subr.bf16.mxu0 0
      %1969 = vmatpush2.bf16.msra.mxu0 0
      %1970 = vmatprep.subr.bf16.mxu0 0
      %1971 = vmatpush2.bf16.msra.mxu0 0
      %1972 = vmatprep.mubr.bf16.mxu0 0
      %1973 = vmatmul.mubr.bf16.gmra.mxu0 %v667
      %v1974 = vpop.f32.mrf.mxu0
      %v1975 = vadd.f32 %v1814, %v1974
      %v1976 = vpop.f32.mrf.mxu0
      %v1977 = vpop.f32.mrf.mxu0
      %v1978 = vadd.f32 %v1817, %v1977
      %v1979 = vpop.f32.mrf.mxu0
      %1980 = vmatprep.mubr.bf16.mxu0 0
      %1981 = vmatmul.mubr.bf16.gmra.mxu0 %v670
      %v1982 = vpop.f32.mrf.mxu0
      %v1983 = vadd.f32 %v1822, %v1982
      %v1984 = vpop.f32.mrf.mxu0
      %v1985 = vpop.f32.mrf.mxu0
      %v1986 = vadd.f32 %v1825, %v1985
      %v1987 = vpop.f32.mrf.mxu0
      %1988 = vmatprep.mubr.bf16.mxu0 0
      %1989 = vmatmul.mubr.bf16.gmra.mxu0 %v673
      %v1990 = vpop.f32.mrf.mxu0
      %v1991 = vadd.f32 %v1830, %v1990
      %v1992 = vpop.f32.mrf.mxu0
      %v1993 = vpop.f32.mrf.mxu0
      %v1994 = vadd.f32 %v1833, %v1993
      %v1995 = vpop.f32.mrf.mxu0
      %1996 = vmatprep.mubr.bf16.mxu0 0
      %1997 = vmatmul.mubr.bf16.gmra.mxu0 %v676
      %v1998 = vpop.f32.mrf.mxu0
      %v1999 = vadd.f32 %v1838, %v1998
      %v2000 = vpop.f32.mrf.mxu0
      %v2001 = vpop.f32.mrf.mxu0
      %v2002 = vadd.f32 %v1841, %v2001
      %v2003 = vpop.f32.mrf.mxu0
      %2004 = vmatprep.mubr.bf16.mxu0 0
      %2005 = vmatmul.mubr.bf16.gmra.mxu0 %v679
      %v2006 = vpop.f32.mrf.mxu0
      %v2007 = vadd.f32 %v1846, %v2006
      %v2008 = vpop.f32.mrf.mxu0
      %v2009 = vpop.f32.mrf.mxu0
      %v2010 = vadd.f32 %v1849, %v2009
      %v2011 = vpop.f32.mrf.mxu0
      %2012 = vmatprep.mubr.bf16.mxu0 0
      %2013 = vmatmul.mubr.bf16.gmra.mxu0 %v682
      %v2014 = vpop.f32.mrf.mxu0
      %v2015 = vadd.f32 %v1854, %v2014
      %v2016 = vpop.f32.mrf.mxu0
      %v2017 = vpop.f32.mrf.mxu0
      %v2018 = vadd.f32 %v1857, %v2017
      %v2019 = vpop.f32.mrf.mxu0
      %2020 = vmatprep.mubr.bf16.mxu0 0
      %2021 = vmatmul.mubr.bf16.gmra.mxu0 %v685
      %v2022 = vpop.f32.mrf.mxu0
      %v2023 = vadd.f32 %v1862, %v2022
      %v2024 = vpop.f32.mrf.mxu0
      %v2025 = vpop.f32.mrf.mxu0
      %v2026 = vadd.f32 %v1865, %v2025
      %v2027 = vpop.f32.mrf.mxu0
      %2028 = vmatprep.mubr.bf16.mxu0 0
      %2029 = vmatmul.mubr.bf16.gmra.mxu0 %v688
      %v2030 = vpop.f32.mrf.mxu0
      %v2031 = vadd.f32 %v1870, %v2030
      %v2032 = vpop.f32.mrf.mxu0
      %v2033 = vpop.f32.mrf.mxu0
      %v2034 = vadd.f32 %v1873, %v2033
      %v2035 = vpop.f32.mrf.mxu0
      %2036 = vmatprep.mubr.bf16.mxu0 0
      %2037 = vmatmul.mubr.bf16.gmra.mxu0 %v691
      %v2038 = vpop.f32.mrf.mxu0
      %v2039 = vadd.f32 %v1878, %v2038
      %v2040 = vpop.f32.mrf.mxu0
      %v2041 = vpop.f32.mrf.mxu0
      %v2042 = vadd.f32 %v1881, %v2041
      %v2043 = vpop.f32.mrf.mxu0
      %2044 = vmatprep.mubr.bf16.mxu0 0
      %2045 = vmatmul.mubr.bf16.gmra.mxu0 %v694
      %v2046 = vpop.f32.mrf.mxu0
      %v2047 = vadd.f32 %v1886, %v2046
      %v2048 = vpop.f32.mrf.mxu0
      %v2049 = vpop.f32.mrf.mxu0
      %v2050 = vadd.f32 %v1889, %v2049
      %v2051 = vpop.f32.mrf.mxu0
      %2052 = vmatprep.mubr.bf16.mxu0 0
      %2053 = vmatmul.mubr.bf16.gmra.mxu0 %v697
      %v2054 = vpop.f32.mrf.mxu0
      %v2055 = vadd.f32 %v1894, %v2054
      %v2056 = vpop.f32.mrf.mxu0
      %v2057 = vpop.f32.mrf.mxu0
      %v2058 = vadd.f32 %v1897, %v2057
      %v2059 = vpop.f32.mrf.mxu0
      %2060 = vmatprep.mubr.bf16.mxu0 0
      %2061 = vmatmul.mubr.bf16.gmra.mxu0 %v700
      %v2062 = vpop.f32.mrf.mxu0
      %v2063 = vadd.f32 %v1902, %v2062
      %v2064 = vpop.f32.mrf.mxu0
      %v2065 = vpop.f32.mrf.mxu0
      %v2066 = vadd.f32 %v1905, %v2065
      %v2067 = vpop.f32.mrf.mxu0
      %2068 = vmatprep.mubr.bf16.mxu0 0
      %2069 = vmatmul.mubr.bf16.gmra.mxu0 %v703
      %v2070 = vpop.f32.mrf.mxu0
      %v2071 = vadd.f32 %v1910, %v2070
      %v2072 = vpop.f32.mrf.mxu0
      %v2073 = vpop.f32.mrf.mxu0
      %v2074 = vadd.f32 %v1913, %v2073
      %v2075 = vpop.f32.mrf.mxu0
      %2076 = vmatprep.mubr.bf16.mxu0 0
      %2077 = vmatmul.mubr.bf16.gmra.mxu0 %v706
      %v2078 = vpop.f32.mrf.mxu0
      %v2079 = vadd.f32 %v1918, %v2078
      %v2080 = vpop.f32.mrf.mxu0
      %v2081 = vpop.f32.mrf.mxu0
      %v2082 = vadd.f32 %v1921, %v2081
      %v2083 = vpop.f32.mrf.mxu0
      %2084 = vmatprep.mubr.bf16.mxu0 0
      %2085 = vmatmul.mubr.bf16.gmra.mxu0 %v709
      %v2086 = vpop.f32.mrf.mxu0
      %v2087 = vadd.f32 %v1926, %v2086
      %v2088 = vpop.f32.mrf.mxu0
      %v2089 = vpop.f32.mrf.mxu0
      %v2090 = vadd.f32 %v1929, %v2089
      %v2091 = vpop.f32.mrf.mxu0
      %2092 = vmatprep.mubr.bf16.mxu0 0
      %2093 = vmatmul.mubr.bf16.gmra.mxu0 %v712
      %v2094 = vpop.f32.mrf.mxu0
      %v2095 = vadd.f32 %v1934, %v2094
      %v2096 = vpop.f32.mrf.mxu0
      %v2097 = vpop.f32.mrf.mxu0
      %v2098 = vadd.f32 %v1937, %v2097
      %v2099 = vpop.f32.mrf.mxu0
      %2100 = vdwg.mxu0
      %v2101 = vmax.f32 %v1975, 0.0
      %v2102 = vmax.f32 %v1978, 0.0
      %v2103 = vmax.f32 %v1983, 0.0
      %v2104 = vmax.f32 %v1986, 0.0
      %v2105 = vmax.f32 %v1991, 0.0
      %v2106 = vmax.f32 %v1994, 0.0
      %v2107 = vmax.f32 %v1999, 0.0
      %v2108 = vmax.f32 %v2002, 0.0
      %v2109 = vmax.f32 %v2007, 0.0
      %v2110 = vmax.f32 %v2010, 0.0
      %v2111 = vmax.f32 %v2015, 0.0
      %v2112 = vmax.f32 %v2018, 0.0
      %v2113 = vmax.f32 %v2023, 0.0
      %v2114 = vmax.f32 %v2026, 0.0
      %v2115 = vmax.f32 %v2031, 0.0
      %v2116 = vmax.f32 %v2034, 0.0
      %v2117 = vmax.f32 %v2039, 0.0
      %v2118 = vmax.f32 %v2042, 0.0
      %v2119 = vmax.f32 %v2047, 0.0
      %v2120 = vmax.f32 %v2050, 0.0
      %v2121 = vmax.f32 %v2055, 0.0
      %v2122 = vmax.f32 %v2058, 0.0
      %v2123 = vmax.f32 %v2063, 0.0
      %v2124 = vmax.f32 %v2066, 0.0
      %v2125 = vmax.f32 %v2071, 0.0
      %v2126 = vmax.f32 %v2074, 0.0
      %v2127 = vmax.f32 %v2079, 0.0
      %v2128 = vmax.f32 %v2082, 0.0
      %v2129 = vmax.f32 %v2087, 0.0
      %v2130 = vmax.f32 %v2090, 0.0
      %v2131 = vmax.f32 %v2095, 0.0
      %v2132 = vmax.f32 %v2098, 0.0
      %2133 = vst [vmem:[%s235] sm:$0xff] %v2101
      %2134 = vst [vmem:[%s235 + $0x8] sm:$0xff] %v2102
      %2135 = vst [vmem:[%s235 + $0x10] sm:$0xff] %v2103
      %2136 = vst [vmem:[%s235 + $0x18] sm:$0xff] %v2104
      %2137 = vst [vmem:[%s235 + $0x20] sm:$0xff] %v2105
      %2138 = vst [vmem:[%s235 + $0x28] sm:$0xff] %v2106
      %2139 = vst [vmem:[%s235 + $0x30] sm:$0xff] %v2107
      %2140 = vst [vmem:[%s235 + $0x38] sm:$0xff] %v2108
      %2141 = vst [vmem:[%s235 + $0x40] sm:$0xff] %v2109
      %2142 = vst [vmem:[%s235 + $0x48] sm:$0xff] %v2110
      %2143 = vst [vmem:[%s235 + $0x50] sm:$0xff] %v2111
      %2144 = vst [vmem:[%s235 + $0x58] sm:$0xff] %v2112
      %2145 = vst [vmem:[%s235 + $0x60] sm:$0xff] %v2113
      %2146 = vst [vmem:[%s235 + $0x68] sm:$0xff] %v2114
      %2147 = vst [vmem:[%s235 + $0x70] sm:$0xff] %v2115
      %2148 = vst [vmem:[%s235 + $0x78] sm:$0xff] %v2116
      %2149 = vst [vmem:[%s235 + $0x80] sm:$0xff] %v2117
      %2150 = vst [vmem:[%s235 + $0x88] sm:$0xff] %v2118
      %2151 = vst [vmem:[%s235 + $0x90] sm:$0xff] %v2119
      %2152 = vst [vmem:[%s235 + $0x98] sm:$0xff] %v2120
      %2153 = vst [vmem:[%s235 + $0xa0] sm:$0xff] %v2121
      %2154 = vst [vmem:[%s235 + $0xa8] sm:$0xff] %v2122
      %2155 = vst [vmem:[%s235 + $0xb0] sm:$0xff] %v2123
      %2156 = vst [vmem:[%s235 + $0xb8] sm:$0xff] %v2124
      %2157 = vst [vmem:[%s235 + $0xc0] sm:$0xff] %v2125
      %2158 = vst [vmem:[%s235 + $0xc8] sm:$0xff] %v2126
      %2159 = vst [vmem:[%s235 + $0xd0] sm:$0xff] %v2127
      %2160 = vst [vmem:[%s235 + $0xd8] sm:$0xff] %v2128
      %2161 = vst [vmem:[%s235 + $0xe0] sm:$0xff] %v2129
      %2162 = vst [vmem:[%s235 + $0xe8] sm:$0xff] %v2130
      %2163 = vst [vmem:[%s235 + $0xf0] sm:$0xff] %v2131
      %2164 = vst [vmem:[%s235 + $0xf8] sm:$0xff] %v2132
      %v2165 = vadd.f32 %v2101, %v2102
      %v2166 = vadd.f32 %v2165, %v2103
      %v2167 = vadd.f32 %v2166, %v2104
      %v2168 = vadd.f32 %v2167, %v2105
      %v2169 = vadd.f32 %v2168, %v2106
      %v2170 = vadd.f32 %v2169, %v2107
      %v2171 = vadd.f32 %v2170, %v2108
      %v2172 = vadd.f32 %v2171, %v2109
      %v2173 = vadd.f32 %v2172, %v2110
      %v2174 = vadd.f32 %v2173, %v2111
      %v2175 = vadd.f32 %v2174, %v2112
      %v2176 = vadd.f32 %v2175, %v2113
      %v2177 = vadd.f32 %v2176, %v2114
      %v2178 = vadd.f32 %v2177, %v2115
      %v2179 = vadd.f32 %v2178, %v2116
      %v2180 = vadd.f32 %v2179, %v2117
      %v2181 = vadd.f32 %v2180, %v2118
      %v2182 = vadd.f32 %v2181, %v2119
      %v2183 = vadd.f32 %v2182, %v2120
      %v2184 = vadd.f32 %v2183, %v2121
      %v2185 = vadd.f32 %v2184, %v2122
      %v2186 = vadd.f32 %v2185, %v2123
      %v2187 = vadd.f32 %v2186, %v2124
      %v2188 = vadd.f32 %v2187, %v2125
      %v2189 = vadd.f32 %v2188, %v2126
      %v2190 = vadd.f32 %v2189, %v2127
      %v2191 = vadd.f32 %v2190, %v2128
      %v2192 = vadd.f32 %v2191, %v2129
      %v2193 = vadd.f32 %v2192, %v2130
      %v2194 = vadd.f32 %v2193, %v2131
      %v2195 = vadd.f32 %v2194, %v2132
      %v2196 = vrot.slane %v2195, 4
      %v2197 = vadd.f32 %v2195, %v2196
      %v2198 = vrot.slane %v2197, 2
      %v2199 = vadd.f32 %v2197, %v2198
      %v2200 = vrot.slane %v2199, 1
      %v2201 = vadd.f32 %v2199, %v2200
      %2202 = vst [vmem:[%s238] sm:$0x1] %v2201
      %v2203 = vmul.f32 %v2101, %v2101
      %v2204 = vmul.f32 %v2102, %v2102
      %v2205 = vmul.f32 %v2103, %v2103
      %v2206 = vmul.f32 %v2104, %v2104
      %v2207 = vmul.f32 %v2105, %v2105
      %v2208 = vmul.f32 %v2106, %v2106
      %v2209 = vmul.f32 %v2107, %v2107
      %v2210 = vmul.f32 %v2108, %v2108
      %v2211 = vmul.f32 %v2109, %v2109
      %v2212 = vmul.f32 %v2110, %v2110
      %v2213 = vmul.f32 %v2111, %v2111
      %v2214 = vmul.f32 %v2112, %v2112
      %v2215 = vmul.f32 %v2113, %v2113
      %v2216 = vmul.f32 %v2114, %v2114
      %v2217 = vmul.f32 %v2115, %v2115
      %v2218 = vmul.f32 %v2116, %v2116
      %v2219 = vmul.f32 %v2117, %v2117
      %v2220 = vmul.f32 %v2118, %v2118
      %v2221 = vmul.f32 %v2119, %v2119
      %v2222 = vmul.f32 %v2120, %v2120
      %v2223 = vmul.f32 %v2121, %v2121
      %v2224 = vmul.f32 %v2122, %v2122
      %v2225 = vmul.f32 %v2123, %v2123
      %v2226 = vmul.f32 %v2124, %v2124
      %v2227 = vmul.f32 %v2125, %v2125
      %v2228 = vmul.f32 %v2126, %v2126
      %v2229 = vmul.f32 %v2127, %v2127
      %v2230 = vmul.f32 %v2128, %v2128
      %v2231 = vmul.f32 %v2129, %v2129
      %v2232 = vmul.f32 %v2130, %v2130
      %v2233 = vmul.f32 %v2131, %v2131
      %v2234 = vmul.f32 %v2132, %v2132
      %v2235 = vadd.f32 %v2203, %v2204
      %v2236 = vadd.f32 %v2235, %v2205
      %v2237 = vadd.f32 %v2236, %v2206
      %v2238 = vadd.f32 %v2237, %v2207
      %v2239 = vadd.f32 %v2238, %v2208
      %v2240 = vadd.f32 %v2239, %v2209
      %v2241 = vadd.f32 %v2240, %v2210
      %v2242 = vadd.f32 %v2241, %v2211
      %v2243 = vadd.f32 %v2242, %v2212
      %v2244 = vadd.f32 %v2243, %v2213
      %v2245 = vadd.f32 %v2244, %v2214
      %v2246 = vadd.f32 %v2245, %v2215
      %v2247 = vadd.f32 %v2246, %v2216
      %v2248 = vadd.f32 %v2247, %v2217
      %v2249 = vadd.f32 %v2248, %v2218
      %v2250 = vadd.f32 %v2249, %v2219
      %v2251 = vadd.f32 %v2250, %v2220
      %v2252 = vadd.f32 %v2251, %v2221
      %v2253 = vadd.f32 %v2252, %v2222
      %v2254 = vadd.f32 %v2253, %v2223
      %v2255 = vadd.f32 %v2254, %v2224
      %v2256 = vadd.f32 %v2255, %v2225
      %v2257 = vadd.f32 %v2256, %v2226
      %v2258 = vadd.f32 %v2257, %v2227
      %v2259 = vadd.f32 %v2258, %v2228
      %v2260 = vadd.f32 %v2259, %v2229
      %v2261 = vadd.f32 %v2260, %v2230
      %v2262 = vadd.f32 %v2261, %v2231
      %v2263 = vadd.f32 %v2262, %v2232
      %v2264 = vadd.f32 %v2263, %v2233
      %v2265 = vadd.f32 %v2264, %v2234
      %v2266 = vrot.slane %v2265, 4
      %v2267 = vadd.f32 %v2265, %v2266
      %v2268 = vrot.slane %v2267, 2
      %v2269 = vadd.f32 %v2267, %v2268
      %v2270 = vrot.slane %v2269, 1
      %v2271 = vadd.f32 %v2269, %v2270
      %2272 = vst [vmem:[%s241] sm:$0x1] %v2271
      %p2273 = scmp.lt.s32.totalorder %s17, 1
      %s2274 = scalar_select %p2273, %s17, 1
      %s2275 = smul.addr %s2274, 32
      %s2276 = smul.addr %s2275, 8
      %s2277 = scalar_lea.vmem %s3, %s2276
      %p2278 = scmp.lt.s32.totalorder %s17, 1
      %s2279 = scalar_select %p2278, %s17, 1
      %s2280 = scalar_lea.vmem %s4, %s2279
      %p2281 = scmp.lt.s32.totalorder %s17, 1
      %s2282 = scalar_select %p2281, %s17, 1
      %s2283 = scalar_lea.vmem %s5, %s2282
      // Predicated region
      $region33: #{conv_block_2d.4} parent=31 // pred_check
        %p2284 = pneg %p103
      $region34: #{conv_block_2d.4} parent=31 // pred_check_branch
        %2286 = sbr.rel (%p2284) target = $region36
      $region35: #{conv_block_2d.4} parent=31 // pred_region
        _
      $region36: #{conv_block_2d.4} parent=31 // pred_fallthru
        _
      // Predicated region
      $region37: #{conv_block_2d.4} parent=31 // pred_check
        %p2287 = pneg %p129
      $region38: #{conv_block_2d.4} parent=31 // pred_check_branch
        %2289 = sbr.rel (%p2287) target = $region40
      $region39: #{conv_block_2d.4} parent=31 // pred_region
        _
      $region40: #{conv_block_2d.4} parent=31 // pred_fallthru
        _
      // Predicated region
      $region41: #{conv_block_2d.4} parent=31 // pred_check
        %p2290 = pneg %p155
      $region42: #{conv_block_2d.4} parent=31 // pred_check_branch
        %2292 = sbr.rel (%p2290) target = $region44
      $region43: #{conv_block_2d.4} parent=31 // pred_region
        _
      $region44: #{conv_block_2d.4} parent=31 // pred_fallthru
        _
    $region32: #{conv_block_2d.4} parent=5 // pred_fallthru
      _
    %p2293 = scmp.le.s32.totalorder 2, %s12
    // Predicated region
    $region45: #{conv_block_2d.4} parent=5 // pred_check
      %p2294 = pneg %p2293
    $region46: #{conv_block_2d.4} parent=5 // pred_check_branch
      %2296 = sbr.rel (%p2294) target = $region48
    $region47: #{conv_block_2d.4} parent=5 // pred_region
      %s2297 = ssub.s32 %s12, 2
      // Predicated region
      $region49: #{conv_block_2d.4} parent=47 // pred_check
        %p2298 = pneg %p109
      $region50: #{conv_block_2d.4} parent=47 // pred_check_branch
        %2300 = sbr.rel (%p2298) target = $region52
      $region51: #{conv_block_2d.4} parent=47 // pred_region
        %p2301 = scmp.lt.s32.totalorder %s18, 1
        %s2302 = scalar_select %p2301, %s18, 1
        %s2303 = smul.addr %s2302, 32
        %s2304 = smul.addr %s2303, 8
        %s2305 = scalar_lea.vmem %s3, %s2304
      $region52: #{conv_block_2d.4} parent=47 // pred_fallthru
        _
      // Predicated region
      $region53: #{conv_block_2d.4} parent=47 // pred_check
        %p2306 = pneg %p135
      $region54: #{conv_block_2d.4} parent=47 // pred_check_branch
        %2308 = sbr.rel (%p2306) target = $region56
      $region55: #{conv_block_2d.4} parent=47 // pred_region
        %p2309 = scmp.lt.s32.totalorder %s18, 1
        %s2310 = scalar_select %p2309, %s18, 1
        %s2311 = scalar_lea.vmem %s4, %s2310
      $region56: #{conv_block_2d.4} parent=47 // pred_fallthru
        _
      // Predicated region
      $region57: #{conv_block_2d.4} parent=47 // pred_check
        %p2312 = pneg %p161
      $region58: #{conv_block_2d.4} parent=47 // pred_check_branch
        %2314 = sbr.rel (%p2312) target = $region60
      $region59: #{conv_block_2d.4} parent=47 // pred_region
        %p2315 = scmp.lt.s32.totalorder %s18, 1
        %s2316 = scalar_select %p2315, %s18, 1
        %s2317 = scalar_lea.vmem %s5, %s2316
      $region60: #{conv_block_2d.4} parent=47 // pred_fallthru
        _
    $region48: #{conv_block_2d.4} parent=5 // pred_fallthru
      _
  $region6: #{conv_block_2d.4} parent=0 // loop_footer
    %s16 = sadd.s32 1, %s12
  $region7: #{conv_block_2d.4} parent=0 // loop_footer_branch
    %11 = sbr.rel target = $region3
  $region8: #{conv_block_2d.4} parent=0 // loop_exit
    _

</llo_original>
